<compile_context>
chip_gen: v6e
topology: v6e:2x2x1
jax: 0.10.0
libtpu: 0.0.40
codegen_flags: <defaults>
</compile_context>

<pallas_src>
import functools

import jax
import jax.numpy as jnp
from jax import lax
from jax.experimental import pallas as pl
from jax.experimental.pallas import tpu as pltpu

EPS = 1e-5  # PyTorch BatchNorm2d default eps


# --------------------------------------------------------------------------
# Fused Pallas kernel
# --------------------------------------------------------------------------
def _residual_kernel(*refs, w, wout, stride, use_1x1conv):
    """conv3x3+BN+ReLU -> conv3x3+BN -> (+skip, f32) -> ReLU, all in VMEM."""
    if stride == 1:
        (x_ref, w1_ref, b1_ref, w2_ref, b2_ref, ws_ref, m1_ref, m2_ref,
         o_ref, xf_ref, yf_ref) = refs
        r_ref = None
    else:
        (x_ref, w1_ref, b1_ref, w2_ref, b2_ref, ws_ref, r_ref, m1_ref, m2_ref,
         o_ref, xf_ref, yf_ref) = refs

    bt = x_ref.shape[0]
    cin, cout = xf_ref.shape[0], yf_ref.shape[0]
    s_full = x_ref.shape[2]          # H*W   (stage-1 computed at full res)
    s2 = m2_ref.shape[1]             # hout*wout
    s_pad = o_ref.shape[2]           # 128-padded, lane-dense output width
    cdt = xf_ref.dtype

    # ---- halo-only zeroing (interiors are fully overwritten every image).
    #      Unconditional: scratch is per-core under megacore, so do not gate
    #      this on program_id == 0.
    xf_ref[:, pl.ds(0, w + 1)] = jnp.zeros((cin, w + 1), cdt)
    xf_ref[:, pl.ds(w + 1 + s_full, w + 1)] = jnp.zeros((cin, w + 1), cdt)
    yf_ref[:, pl.ds(0, wout + 1)] = jnp.zeros((cout, wout + 1), cdt)
    yf_ref[:, pl.ds(wout + 1 + s2, wout + 1)] = jnp.zeros((cout, wout + 1), cdt)
    if s_pad > s2:                   # zero only the 128-padding tail of the block
        o_ref[:, :, pl.ds(s2, s_pad - s2)] = jnp.zeros(
            (bt, cout, s_pad - s2), o_ref.dtype)

    m1l, m1r = m1_ref[0:1, :], m1_ref[1:2, :]
    m2l, m2r = m2_ref[0:1, :], m2_ref[1:2, :]

    def conv3x3(wk_ref, src_ref, row_w, n_out, ml, mr):
        # 3x3 conv = 9 accumulating MXU matmuls on static lane-slices of the
        # row-padded flat activation (no im2col patches, no reshapes).
        # Taps with kw=0 / kw=2 read across a row boundary; the corresponding
        # output columns are the zero column-padding -> mask them (VPU).
        out = None
        for kw in range(3):
            part = None
            for kh in range(3):
                tap = src_ref[:, pl.ds(kh * row_w + kw, n_out)]
                t = jnp.dot(wk_ref[kh * 3 + kw], tap,
                            preferred_element_type=jnp.float32)
                part = t if part is None else part + t
            if kw == 0:
                part = part * ml
            elif kw == 2:
                part = part * mr
            out = part if out is None else out + part
        return out                                    # (Cout, n_out) f32

    for bi in range(bt):             # short static loop: images blocked per step
        x_img = x_ref[bi]                                   # (Cin, H*W) f32

        # ---- stage 1: row-padded flat copy (single contiguous interior store)
        xf_ref[:, pl.ds(w + 1, s_full)] = x_img.astype(cdt)
        y1 = conv3x3(w1_ref, xf_ref, w, s_full, m1l, m1r)
        if stride > 1:
            # subsample full-res stride-1 output -> strided output positions
            y1 = jnp.dot(y1, r_ref[...], preferred_element_type=jnp.float32)
        y1 = jnp.maximum(y1 + b1_ref[...], 0.0)             # BN1 bias + ReLU (f32)

        # ---- stage 2: y1 never leaves VMEM (row-padded flat copy)
        yf_ref[:, pl.ds(wout + 1, s2)] = y1.astype(cdt)
        y2 = conv3x3(w2_ref, yf_ref, wout, s2, m2l, m2r)    # BN2 scale folded

        # ---- residual add in f32 (never routed through the MXU for identity;
        #      1x1 projection is a small separate matmul fed with f32 x)
        if use_1x1conv:
            xs = x_img
            if stride > 1:
                xs = jnp.dot(xs, r_ref[...], preferred_element_type=jnp.float32)
            skip = jnp.dot(ws_ref[...], xs, preferred_element_type=jnp.float32)
        else:
            skip = x_img                                    # Cin==Cout, stride==1
        res = jnp.maximum(y2 + b2_ref[...] + skip, 0.0)
        o_ref[bi, :, pl.ds(0, s2)] = res.astype(o_ref.dtype)


# --------------------------------------------------------------------------
# Wrapper helpers
# --------------------------------------------------------------------------
def _fold_bn(conv_bias, gamma, beta, mean, var):
    scale = gamma * lax.rsqrt(var + EPS)
    bias = (conv_bias - mean) * scale + beta
    return scale.astype(jnp.float32), bias.astype(jnp.float32)


def _round_up(v, m):
    return ((v + m - 1) // m) * m


def _col_masks(width, n):
    col = jnp.arange(n, dtype=jnp.int32) % width
    return jnp.stack([(col != 0), (col != width - 1)], axis=0).astype(jnp.float32)


def _pick_batch_tile(batch, img_bytes, target=512 * 1024, cap=4 * 1024 * 1024):
    """Largest divisor of `batch` whose x-block stays <= cap; stop once the
    per-step DMA reaches `target` (amortizes per-step pipeline overhead)."""
    bt = 1
    for d in range(1, batch + 1):
        if batch % d:
            continue
        if d * img_bytes > cap:
            break
        bt = d
        if d * img_bytes >= target:
            break
    return bt


def residual_forward(x_nchw, p, *, use_1x1conv, strides=1,
                     compute_dtype=jnp.bfloat16):
    """x_nchw: (B, Cin, H, W). compute_dtype controls the MXU input precision
    of the two 3x3 convs (bf16 default; accumulation and epilogue are f32)."""
    x = x_nchw.astype(jnp.float32)
    B, Cin, H, W = x.shape
    Cout = p["w1"].shape[0]
    if not use_1x1conv:
        assert Cin == Cout and strides == 1, (
            "identity shortcut requires in_channels == num_channels and strides == 1")

    hout = (H - 1) // strides + 1
    wout = (W - 1) // strides + 1
    s_full, s2 = H * W, hout * wout
    s_pad = _round_up(s2, 128)

    scale1, bias1 = _fold_bn(p["b1"], p["g1"], p["be1"], p["m1"], p["v1"])
    scale2, bias2 = _fold_bn(p["b2"], p["g2"], p["be2"], p["m2"], p["v2"])

    # tap-major (9, Cout, Cin) weights with the BN scale folded in
    w1 = (jnp.transpose(p["w1"], (2, 3, 0, 1)).reshape(9, Cout, Cin)
          * scale1[None, :, None]).astype(compute_dtype)
    w2 = (jnp.transpose(p["w2"], (2, 3, 0, 1)).reshape(9, Cout, Cout)
          * scale2[None, :, None]).astype(compute_dtype)
    b1 = bias1.reshape(Cout, 1)
    if use_1x1conv:
        ws = p["ws"][:, :, 0, 0].astype(jnp.float32)
        b2 = (bias2 + p["bs"].astype(jnp.float32)).reshape(Cout, 1)
    else:
        ws = jnp.zeros((Cout, Cin), jnp.float32)   # unused (static branch)
        b2 = bias2.reshape(Cout, 1)

    m1 = _col_masks(W, s_full)        # masks for taps crossing a row boundary
    m2 = _col_masks(wout, s2)

    x2d = x.reshape(B, Cin, s_full)   # free reshape: lane-dense input blocks
    bt = _pick_batch_tile(B, Cin * s_full * 4)

    inputs = [x2d, w1, b1, w2, b2, ws]
    in_specs = [
        pl.BlockSpec((bt, Cin, s_full), lambda g: (g, 0, 0)),
        pl.BlockSpec((9, Cout, Cin), lambda g: (0, 0, 0)),
        pl.BlockSpec((Cout, 1), lambda g: (0, 0)),
        pl.BlockSpec((9, Cout, Cout), lambda g: (0, 0, 0)),
        pl.BlockSpec((Cout, 1), lambda g: (0, 0)),
        pl.BlockSpec((Cout, Cin), lambda g: (0, 0)),
    ]
    if strides > 1:
        sel = ((jnp.arange(hout) * strides)[:, None] * W
               + (jnp.arange(wout) * strides)[None, :]).reshape(-1)
        r_sel = jax.nn.one_hot(sel, s_full, dtype=jnp.float32).T   # (s_full, s2)
        inputs.append(r_sel)
        in_specs.append(pl.BlockSpec((s_full, s2), lambda g: (0, 0)))
    inputs += [m1, m2]
    in_specs += [pl.BlockSpec((2, s_full), lambda g: (0, 0)),
                 pl.BlockSpec((2, s2), lambda g: (0, 0))]

    nf1 = s_full + 2 * W + 2
    nf2 = s2 + 2 * wout + 2
    scratch = [pltpu.VMEM((Cin, nf1), compute_dtype),
               pltpu.VMEM((Cout, nf2), compute_dtype)]

    # VMEM budget from actual resident buffers (double-buffered blocks +
    # weights + scratch), with headroom; capped below v7x's 64 MiB physical.
    est = (2 * bt * (Cin * s_full + Cout * s_pad) * 4
           + 9 * Cout * (Cin + Cout) * 4
           + (s_full * s2 * 4 if strides > 1 else 0)
           + (Cin * nf1 + Cout * nf2) * 4
           + 2 * (s_full + s2) * 4)
    vmem_limit = int(min(48 * 2**20, max(8 * 2**20, 4 * est)))

    out3 = pl.pallas_call(
        functools.partial(_residual_kernel, w=W, wout=wout, stride=strides,
                          use_1x1conv=use_1x1conv),
        out_shape=jax.ShapeDtypeStruct((B, Cout, s_pad), jnp.float32),
        grid=(B // bt,),
        in_specs=in_specs,
        out_specs=pl.BlockSpec((bt, Cout, s_pad), lambda g: (g, 0, 0)),
        scratch_shapes=scratch,
        compiler_params=pltpu.CompilerParams(
            dimension_semantics=("parallel",),
            vmem_limit_bytes=vmem_limit),
    )(*inputs)

    out = out3 if s_pad == s2 else out3[..., :s2]
    return out.reshape(B, Cout, hout, wout)


# --------------------------------------------------------------------------
# Pure-JAX reference (correctness check)
# --------------------------------------------------------------------------
def _bn_ref(z, g, be, m, v):
    b = lambda a: a[None, :, None, None]
    return b(g) * (z - b(m)) / jnp.sqrt(b(v) + EPS) + b(be)


def residual_ref(x, p, *, use_1x1conv, strides):
    dn = ("NCHW", "OIHW", "NCHW")
    y = lax.conv_general_dilated(x, p["w1"], (strides, strides),
                                 ((1, 1), (1, 1)), dimension_numbers=dn)
    y = _bn_ref(y + p["b1"][None, :, None, None],
                p["g1"], p["be1"], p["m1"], p["v1"])
    y = jnp.maximum(y, 0.0)
    y = lax.conv_general_dilated(y, p["w2"], (1, 1),
                                 ((1, 1), (1, 1)), dimension_numbers=dn)
    y = _bn_ref(y + p["b2"][None, :, None, None],
                p["g2"], p["be2"], p["m2"], p["v2"])
    if use_1x1conv:
        sc = lax.conv_general_dilated(x, p["ws"], (strides, strides),
                                      ((0, 0), (0, 0)), dimension_numbers=dn)
        sc = sc + p["bs"][None, :, None, None]
    else:
        sc = x
    return jnp.maximum(y + sc, 0.0)


# --------------------------------------------------------------------------
# Deterministic parameter init (shapes from Residual.__init__)
# --------------------------------------------------------------------------
def init_params(key, cin, cout):
    ks = jax.random.split(key, 16)
    n = lambda k, s, sc: sc * jax.random.normal(k, s, jnp.float32)
    return {
        "w1": n(ks[0], (cout, cin, 3, 3), 0.1),
        "b1": n(ks[1], (cout,), 0.05),
        "g1": 1.0 + n(ks[2], (cout,), 0.1),
        "be1": n(ks[3], (cout,), 0.05),
        "m1": n(ks[4], (cout,), 0.05),
        "v1": 0.5 + jax.random.uniform(ks[5], (cout,), jnp.float32),
        "w2": n(ks[6], (cout, cout, 3, 3), 0.1),
        "b2": n(ks[7], (cout,), 0.05),
        "g2": 1.0 + n(ks[8], (cout,), 0.1),
        "be2": n(ks[9], (cout,), 0.05),
        "m2": n(ks[10], (cout,), 0.05),
        "v2": 0.5 + jax.random.uniform(ks[11], (cout,), jnp.float32),
        "ws": n(ks[12], (cout, cin, 1, 1), 0.1),
        "bs": n(ks[13], (cout,), 0.05),
    }


if __name__ == "__main__":
    key = jax.random.PRNGKey(0)
    kx, kp, kx2, kp2, kx3, kp3 = jax.random.split(key, 6)

    # ---- config 1: projection (1x1 conv) shortcut, exact f32 MXU path -------
    B, Cin, Cout, H, W = 2, 4, 8, 16, 16
    x = jax.random.normal(kx, (B, Cin, H, W), jnp.float32)
    params = init_params(kp, Cin, Cout)
    out = jax.block_until_ready(
        residual_forward(x, params, use_1x1conv=True, strides=1,
                         compute_dtype=jnp.float32))
    ref = residual_ref(x, params, use_1x1conv=True, strides=1)
    assert out.shape == ref.shape, (out.shape, ref.shape)
    assert jnp.allclose(out, ref, atol=1e-4, rtol=1e-4), \
        float(jnp.max(jnp.abs(out - ref)))

    # ---- same config, default bf16 MXU path (f32 skip/epilogue) -------------
    out_bf = jax.block_until_ready(
        residual_forward(x, params, use_1x1conv=True, strides=1))
    assert jnp.allclose(out_bf, ref, atol=1e-1, rtol=1e-1), \
        float(jnp.max(jnp.abs(out_bf - ref)))

    # ---- config 2: identity shortcut (Cin == Cout, stride 1) ----------------
    x2 = jax.random.normal(kx2, (B, 8, H, W), jnp.float32)
    params2 = init_params(kp2, 8, 8)
    out2 = jax.block_until_ready(
        residual_forward(x2, params2, use_1x1conv=False, strides=1,
                         compute_dtype=jnp.float32))
    ref2 = residual_ref(x2, params2, use_1x1conv=False, strides=1)
    assert jnp.allclose(out2, ref2, atol=1e-4, rtol=1e-4), \
        float(jnp.max(jnp.abs(out2 - ref2)))

    # ---- config 3: stride-2 downsampling block (previously untested path) ---
    x3 = jax.random.normal(kx3, (B, Cin, H, W), jnp.float32)
    params3 = init_params(kp3, Cin, Cout)
    out3 = jax.block_until_ready(
        residual_forward(x3, params3, use_1x1conv=True, strides=2,
                         compute_dtype=jnp.float32))
    ref3 = residual_ref(x3, params3, use_1x1conv=True, strides=2)
    assert out3.shape == ref3.shape, (out3.shape, ref3.shape)
    assert jnp.allclose(out3, ref3, atol=1e-4, rtol=1e-4), \
        float(jnp.max(jnp.abs(out3 - ref3)))

    print("KERNEL_OK")
</pallas_src>

<mosaic_0001>
module attributes {stable_mosaic.version = 11 : i64} {
  func.func @_residual_kernel(%arg0: i32, %arg1: memref<2x4x256xf32, #tpu.memory_space<vmem>>, %arg2: memref<9x8x4xf32, #tpu.memory_space<vmem>>, %arg3: memref<8x1xf32, #tpu.memory_space<vmem>>, %arg4: memref<9x8x8xf32, #tpu.memory_space<vmem>>, %arg5: memref<8x1xf32, #tpu.memory_space<vmem>>, %arg6: memref<8x4xf32, #tpu.memory_space<vmem>>, %arg7: memref<2x256xf32, #tpu.memory_space<vmem>>, %arg8: memref<2x256xf32, #tpu.memory_space<vmem>>, %arg9: memref<2x8x256xf32, #tpu.memory_space<vmem>>, %arg10: memref<4x290xf32, #tpu.memory_space<vmem>>, %arg11: memref<8x290xf32, #tpu.memory_space<vmem>>) attributes {dimension_semantics = [#tpu.dimension_semantics<parallel>], iteration_bounds = array<i64: 1>, scalar_prefetch = 0 : i64, scratch_operands = 2 : i64, tpu.core_type = #tpu.core_type<tc>, window_params = [{transform_indices = @transform_0, window_bounds = array<i64: 2, 4, 256>}, {pipeline_mode = #tpu.pipeline_mode<synchronous>, transform_indices = @transform_1, window_bounds = array<i64: 9, 8, 4>}, {pipeline_mode = #tpu.pipeline_mode<synchronous>, transform_indices = @transform_2, window_bounds = array<i64: 8, 1>}, {pipeline_mode = #tpu.pipeline_mode<synchronous>, transform_indices = @transform_3, window_bounds = array<i64: 9, 8, 8>}, {pipeline_mode = #tpu.pipeline_mode<synchronous>, transform_indices = @transform_4, window_bounds = array<i64: 8, 1>}, {pipeline_mode = #tpu.pipeline_mode<synchronous>, transform_indices = @transform_5, window_bounds = array<i64: 8, 4>}, {pipeline_mode = #tpu.pipeline_mode<synchronous>, transform_indices = @transform_6, window_bounds = array<i64: 2, 256>}, {pipeline_mode = #tpu.pipeline_mode<synchronous>, transform_indices = @transform_7, window_bounds = array<i64: 2, 256>}, {transform_indices = @transform_8, window_bounds = array<i64: 2, 8, 256>}]} {
    %cst = arith.constant 0.000000e+00 : f32
    %0 = vector.broadcast %cst : f32 to vector<4x17xf32>
    %c0 = arith.constant 0 : index
    %c0_0 = arith.constant 0 : index
    %1 = vector.load %arg10[%c0, %c0_0] : memref<4x290xf32, #tpu.memory_space<vmem>>, vector<4x17xf32>
    tpu.vector_store %arg10[%c0, %c0_0], %0 {strides = array<i32>} : memref<4x290xf32, #tpu.memory_space<vmem>>, vector<4x17xf32>,
    %cst_1 = arith.constant 0.000000e+00 : f32
    %2 = vector.broadcast %cst_1 : f32 to vector<4x17xf32>
    %c0_2 = arith.constant 0 : index
    %c273 = arith.constant 273 : index
    %3 = vector.load %arg10[%c0_2, %c273] : memref<4x290xf32, #tpu.memory_space<vmem>>, vector<4x17xf32>
    tpu.vector_store %arg10[%c0_2, %c273], %2 {strides = array<i32>} : memref<4x290xf32, #tpu.memory_space<vmem>>, vector<4x17xf32>,
    %cst_3 = arith.constant 0.000000e+00 : f32
    %4 = vector.broadcast %cst_3 : f32 to vector<8x17xf32>
    %c0_4 = arith.constant 0 : index
    %c0_5 = arith.constant 0 : index
    %5 = vector.load %arg11[%c0_4, %c0_5] : memref<8x290xf32, #tpu.memory_space<vmem>>, vector<8x17xf32>
    tpu.vector_store %arg11[%c0_4, %c0_5], %4 {strides = array<i32>} : memref<8x290xf32, #tpu.memory_space<vmem>>, vector<8x17xf32>,
    %cst_6 = arith.constant 0.000000e+00 : f32
    %6 = vector.broadcast %cst_6 : f32 to vector<8x17xf32>
    %c0_7 = arith.constant 0 : index
    %c273_8 = arith.constant 273 : index
    %7 = vector.load %arg11[%c0_7, %c273_8] : memref<8x290xf32, #tpu.memory_space<vmem>>, vector<8x17xf32>
    tpu.vector_store %arg11[%c0_7, %c273_8], %6 {strides = array<i32>} : memref<8x290xf32, #tpu.memory_space<vmem>>, vector<8x17xf32>,
    %c0_9 = arith.constant 0 : index
    %c0_10 = arith.constant 0 : index
    %8 = vector.load %arg7[%c0_9, %c0_10] : memref<2x256xf32, #tpu.memory_space<vmem>>, vector<1x256xf32>
    %c1 = arith.constant 1 : index
    %c0_11 = arith.constant 0 : index
    %9 = vector.load %arg7[%c1, %c0_11] : memref<2x256xf32, #tpu.memory_space<vmem>>, vector<1x256xf32>
    %c0_12 = arith.constant 0 : index
    %c0_13 = arith.constant 0 : index
    %10 = vector.load %arg8[%c0_12, %c0_13] : memref<2x256xf32, #tpu.memory_space<vmem>>, vector<1x256xf32>
    %c1_14 = arith.constant 1 : index
    %c0_15 = arith.constant 0 : index
    %11 = vector.load %arg8[%c1_14, %c0_15] : memref<2x256xf32, #tpu.memory_space<vmem>>, vector<1x256xf32>
    %c0_16 = arith.constant 0 : index
    %c0_17 = arith.constant 0 : index
    %c0_18 = arith.constant 0 : index
    %12 = vector.load %arg1[%c0_16, %c0_17, %c0_18] : memref<2x4x256xf32, #tpu.memory_space<vmem>>, vector<1x4x256xf32>
    %13 = vector.shape_cast %12 : vector<1x4x256xf32> to vector<4x256xf32>
    %c0_19 = arith.constant 0 : index
    %c17 = arith.constant 17 : index
    %14 = vector.load %arg10[%c0_19, %c17] : memref<4x290xf32, #tpu.memory_space<vmem>>, vector<4x256xf32>
    tpu.vector_store %arg10[%c0_19, %c17], %13 {strides = array<i32>} : memref<4x290xf32, #tpu.memory_space<vmem>>, vector<4x256xf32>,
    %c0_20 = arith.constant 0 : index
    %c0_21 = arith.constant 0 : index
    %15 = vector.load %arg10[%c0_20, %c0_21] : memref<4x290xf32, #tpu.memory_space<vmem>>, vector<4x256xf32>
    %c0_22 = arith.constant 0 : index
    %c0_23 = arith.constant 0 : index
    %c0_24 = arith.constant 0 : index
    %16 = vector.load %arg2[%c0_22, %c0_23, %c0_24] : memref<9x8x4xf32, #tpu.memory_space<vmem>>, vector<1x8x4xf32>
    %17 = vector.shape_cast %16 : vector<1x8x4xf32> to vector<8x4xf32>
    %cst_25 = arith.constant dense<0.000000e+00> : vector<8x256xf32>
    %18 = tpu.matmul %17, %15, %cst_25 {dimension_numbers = #tpu.dot_dimension_numbers<[1], [0], [0], [1], [0, 0, 1, 1], [], []>} : vector<8x4xf32>, vector<4x256xf32>, vector<8x256xf32> -> vector<8x256xf32>
    %c0_26 = arith.constant 0 : index
    %c16 = arith.constant 16 : index
    %19 = vector.load %arg10[%c0_26, %c16] : memref<4x290xf32, #tpu.memory_space<vmem>>, vector<4x256xf32>
    %c3 = arith.constant 3 : index
    %c0_27 = arith.constant 0 : index
    %c0_28 = arith.constant 0 : index
    %20 = vector.load %arg2[%c3, %c0_27, %c0_28] : memref<9x8x4xf32, #tpu.memory_space<vmem>>, vector<1x8x4xf32>
    %21 = vector.shape_cast %20 : vector<1x8x4xf32> to vector<8x4xf32>
    %cst_29 = arith.constant dense<0.000000e+00> : vector<8x256xf32>
    %22 = tpu.matmul %21, %19, %cst_29 {dimension_numbers = #tpu.dot_dimension_numbers<[1], [0], [0], [1], [0, 0, 1, 1], [], []>} : vector<8x4xf32>, vector<4x256xf32>, vector<8x256xf32> -> vector<8x256xf32>
    %23 = arith.addf %18, %22 : vector<8x256xf32>
    %c0_30 = arith.constant 0 : index
    %c32 = arith.constant 32 : index
    %24 = vector.load %arg10[%c0_30, %c32] : memref<4x290xf32, #tpu.memory_space<vmem>>, vector<4x256xf32>
    %c6 = arith.constant 6 : index
    %c0_31 = arith.constant 0 : index
    %c0_32 = arith.constant 0 : index
    %25 = vector.load %arg2[%c6, %c0_31, %c0_32] : memref<9x8x4xf32, #tpu.memory_space<vmem>>, vector<1x8x4xf32>
    %26 = vector.shape_cast %25 : vector<1x8x4xf32> to vector<8x4xf32>
    %cst_33 = arith.constant dense<0.000000e+00> : vector<8x256xf32>
    %27 = tpu.matmul %26, %24, %cst_33 {dimension_numbers = #tpu.dot_dimension_numbers<[1], [0], [0], [1], [0, 0, 1, 1], [], []>} : vector<8x4xf32>, vector<4x256xf32>, vector<8x256xf32> -> vector<8x256xf32>
    %28 = arith.addf %23, %27 : vector<8x256xf32>
    %29 = vector.broadcast %8 : vector<1x256xf32> to vector<8x256xf32>
    %30 = arith.mulf %28, %29 : vector<8x256xf32>
    %c0_34 = arith.constant 0 : index
    %c1_35 = arith.constant 1 : index
    %31 = vector.load %arg10[%c0_34, %c1_35] : memref<4x290xf32, #tpu.memory_space<vmem>>, vector<4x256xf32>
    %c1_36 = arith.constant 1 : index
    %c0_37 = arith.constant 0 : index
    %c0_38 = arith.constant 0 : index
    %32 = vector.load %arg2[%c1_36, %c0_37, %c0_38] : memref<9x8x4xf32, #tpu.memory_space<vmem>>, vector<1x8x4xf32>
    %33 = vector.shape_cast %32 : vector<1x8x4xf32> to vector<8x4xf32>
    %cst_39 = arith.constant dense<0.000000e+00> : vector<8x256xf32>
    %34 = tpu.matmul %33, %31, %cst_39 {dimension_numbers = #tpu.dot_dimension_numbers<[1], [0], [0], [1], [0, 0, 1, 1], [], []>} : vector<8x4xf32>, vector<4x256xf32>, vector<8x256xf32> -> vector<8x256xf32>
    %c0_40 = arith.constant 0 : index
    %c17_41 = arith.constant 17 : index
    %35 = vector.load %arg10[%c0_40, %c17_41] : memref<4x290xf32, #tpu.memory_space<vmem>>, vector<4x256xf32>
    %c4 = arith.constant 4 : index
    %c0_42 = arith.constant 0 : index
    %c0_43 = arith.constant 0 : index
    %36 = vector.load %arg2[%c4, %c0_42, %c0_43] : memref<9x8x4xf32, #tpu.memory_space<vmem>>, vector<1x8x4xf32>
    %37 = vector.shape_cast %36 : vector<1x8x4xf32> to vector<8x4xf32>
    %cst_44 = arith.constant dense<0.000000e+00> : vector<8x256xf32>
    %38 = tpu.matmul %37, %35, %cst_44 {dimension_numbers = #tpu.dot_dimension_numbers<[1], [0], [0], [1], [0, 0, 1, 1], [], []>} : vector<8x4xf32>, vector<4x256xf32>, vector<8x256xf32> -> vector<8x256xf32>
    %39 = arith.addf %34, %38 : vector<8x256xf32>
    %c0_45 = arith.constant 0 : index
    %c33 = arith.constant 33 : index
    %40 = vector.load %arg10[%c0_45, %c33] : memref<4x290xf32, #tpu.memory_space<vmem>>, vector<4x256xf32>
    %c7 = arith.constant 7 : index
    %c0_46 = arith.constant 0 : index
    %c0_47 = arith.constant 0 : index
    %41 = vector.load %arg2[%c7, %c0_46, %c0_47] : memref<9x8x4xf32, #tpu.memory_space<vmem>>, vector<1x8x4xf32>
    %42 = vector.shape_cast %41 : vector<1x8x4xf32> to vector<8x4xf32>
    %cst_48 = arith.constant dense<0.000000e+00> : vector<8x256xf32>
    %43 = tpu.matmul %42, %40, %cst_48 {dimension_numbers = #tpu.dot_dimension_numbers<[1], [0], [0], [1], [0, 0, 1, 1], [], []>} : vector<8x4xf32>, vector<4x256xf32>, vector<8x256xf32> -> vector<8x256xf32>
    %44 = arith.addf %39, %43 : vector<8x256xf32>
    %45 = arith.addf %30, %44 : vector<8x256xf32>
    %c0_49 = arith.constant 0 : index
    %c2 = arith.constant 2 : index
    %46 = vector.load %arg10[%c0_49, %c2] : memref<4x290xf32, #tpu.memory_space<vmem>>, vector<4x256xf32>
    %c2_50 = arith.constant 2 : index
    %c0_51 = arith.constant 0 : index
    %c0_52 = arith.constant 0 : index
    %47 = vector.load %arg2[%c2_50, %c0_51, %c0_52] : memref<9x8x4xf32, #tpu.memory_space<vmem>>, vector<1x8x4xf32>
    %48 = vector.shape_cast %47 : vector<1x8x4xf32> to vector<8x4xf32>
    %cst_53 = arith.constant dense<0.000000e+00> : vector<8x256xf32>
    %49 = tpu.matmul %48, %46, %cst_53 {dimension_numbers = #tpu.dot_dimension_numbers<[1], [0], [0], [1], [0, 0, 1, 1], [], []>} : vector<8x4xf32>, vector<4x256xf32>, vector<8x256xf32> -> vector<8x256xf32>
    %c0_54 = arith.constant 0 : index
    %c18 = arith.constant 18 : index
    %50 = vector.load %arg10[%c0_54, %c18] : memref<4x290xf32, #tpu.memory_space<vmem>>, vector<4x256xf32>
    %c5 = arith.constant 5 : index
    %c0_55 = arith.constant 0 : index
    %c0_56 = arith.constant 0 : index
    %51 = vector.load %arg2[%c5, %c0_55, %c0_56] : memref<9x8x4xf32, #tpu.memory_space<vmem>>, vector<1x8x4xf32>
    %52 = vector.shape_cast %51 : vector<1x8x4xf32> to vector<8x4xf32>
    %cst_57 = arith.constant dense<0.000000e+00> : vector<8x256xf32>
    %53 = tpu.matmul %52, %50, %cst_57 {dimension_numbers = #tpu.dot_dimension_numbers<[1], [0], [0], [1], [0, 0, 1, 1], [], []>} : vector<8x4xf32>, vector<4x256xf32>, vector<8x256xf32> -> vector<8x256xf32>
    %54 = arith.addf %49, %53 : vector<8x256xf32>
    %c0_58 = arith.constant 0 : index
    %c34 = arith.constant 34 : index
    %55 = vector.load %arg10[%c0_58, %c34] : memref<4x290xf32, #tpu.memory_space<vmem>>, vector<4x256xf32>
    %c8 = arith.constant 8 : index
    %c0_59 = arith.constant 0 : index
    %c0_60 = arith.constant 0 : index
    %56 = vector.load %arg2[%c8, %c0_59, %c0_60] : memref<9x8x4xf32, #tpu.memory_space<vmem>>, vector<1x8x4xf32>
    %57 = vector.shape_cast %56 : vector<1x8x4xf32> to vector<8x4xf32>
    %cst_61 = arith.constant dense<0.000000e+00> : vector<8x256xf32>
    %58 = tpu.matmul %57, %55, %cst_61 {dimension_numbers = #tpu.dot_dimension_numbers<[1], [0], [0], [1], [0, 0, 1, 1], [], []>} : vector<8x4xf32>, vector<4x256xf32>, vector<8x256xf32> -> vector<8x256xf32>
    %59 = arith.addf %54, %58 : vector<8x256xf32>
    %60 = vector.broadcast %9 : vector<1x256xf32> to vector<8x256xf32>
    %61 = arith.mulf %59, %60 : vector<8x256xf32>
    %62 = arith.addf %45, %61 : vector<8x256xf32>
    %c0_62 = arith.constant 0 : index
    %c0_63 = arith.constant 0 : index
    %63 = vector.load %arg3[%c0_62, %c0_63] : memref<8x1xf32, #tpu.memory_space<vmem>>, vector<8x1xf32>
    %64 = vector.broadcast %63 : vector<8x1xf32> to vector<8x256xf32>
    %65 = arith.addf %62, %64 : vector<8x256xf32>
    %cst_64 = arith.constant 0.000000e+00 : f32
    %66 = vector.broadcast %cst_64 : f32 to vector<8x256xf32>
    %67 = arith.maximumf %65, %66 : vector<8x256xf32>
    %c0_65 = arith.constant 0 : index
    %c17_66 = arith.constant 17 : index
    %68 = vector.load %arg11[%c0_65, %c17_66] : memref<8x290xf32, #tpu.memory_space<vmem>>, vector<8x256xf32>
    tpu.vector_store %arg11[%c0_65, %c17_66], %67 {strides = array<i32>} : memref<8x290xf32, #tpu.memory_space<vmem>>, vector<8x256xf32>,
    %c0_67 = arith.constant 0 : index
    %c0_68 = arith.constant 0 : index
    %69 = vector.load %arg11[%c0_67, %c0_68] : memref<8x290xf32, #tpu.memory_space<vmem>>, vector<8x256xf32>
    %c0_69 = arith.constant 0 : index
    %c0_70 = arith.constant 0 : index
    %c0_71 = arith.constant 0 : index
    %70 = vector.load %arg4[%c0_69, %c0_70, %c0_71] : memref<9x8x8xf32, #tpu.memory_space<vmem>>, vector<1x8x8xf32>
    %71 = vector.shape_cast %70 : vector<1x8x8xf32> to vector<8x8xf32>
    %cst_72 = arith.constant dense<0.000000e+00> : vector<8x256xf32>
    %72 = tpu.matmul %71, %69, %cst_72 {dimension_numbers = #tpu.dot_dimension_numbers<[1], [0], [0], [1], [0, 0, 1, 1], [], []>} : vector<8x8xf32>, vector<8x256xf32>, vector<8x256xf32> -> vector<8x256xf32>
    %c0_73 = arith.constant 0 : index
    %c16_74 = arith.constant 16 : index
    %73 = vector.load %arg11[%c0_73, %c16_74] : memref<8x290xf32, #tpu.memory_space<vmem>>, vector<8x256xf32>
    %c3_75 = arith.constant 3 : index
    %c0_76 = arith.constant 0 : index
    %c0_77 = arith.constant 0 : index
    %74 = vector.load %arg4[%c3_75, %c0_76, %c0_77] : memref<9x8x8xf32, #tpu.memory_space<vmem>>, vector<1x8x8xf32>
    %75 = vector.shape_cast %74 : vector<1x8x8xf32> to vector<8x8xf32>
    %cst_78 = arith.constant dense<0.000000e+00> : vector<8x256xf32>
    %76 = tpu.matmul %75, %73, %cst_78 {dimension_numbers = #tpu.dot_dimension_numbers<[1], [0], [0], [1], [0, 0, 1, 1], [], []>} : vector<8x8xf32>, vector<8x256xf32>, vector<8x256xf32> -> vector<8x256xf32>
    %77 = arith.addf %72, %76 : vector<8x256xf32>
    %c0_79 = arith.constant 0 : index
    %c32_80 = arith.constant 32 : index
    %78 = vector.load %arg11[%c0_79, %c32_80] : memref<8x290xf32, #tpu.memory_space<vmem>>, vector<8x256xf32>
    %c6_81 = arith.constant 6 : index
    %c0_82 = arith.constant 0 : index
    %c0_83 = arith.constant 0 : index
    %79 = vector.load %arg4[%c6_81, %c0_82, %c0_83] : memref<9x8x8xf32, #tpu.memory_space<vmem>>, vector<1x8x8xf32>
    %80 = vector.shape_cast %79 : vector<1x8x8xf32> to vector<8x8xf32>
    %cst_84 = arith.constant dense<0.000000e+00> : vector<8x256xf32>
    %81 = tpu.matmul %80, %78, %cst_84 {dimension_numbers = #tpu.dot_dimension_numbers<[1], [0], [0], [1], [0, 0, 1, 1], [], []>} : vector<8x8xf32>, vector<8x256xf32>, vector<8x256xf32> -> vector<8x256xf32>
    %82 = arith.addf %77, %81 : vector<8x256xf32>
    %83 = vector.broadcast %10 : vector<1x256xf32> to vector<8x256xf32>
    %84 = arith.mulf %82, %83 : vector<8x256xf32>
    %c0_85 = arith.constant 0 : index
    %c1_86 = arith.constant 1 : index
    %85 = vector.load %arg11[%c0_85, %c1_86] : memref<8x290xf32, #tpu.memory_space<vmem>>, vector<8x256xf32>
    %c1_87 = arith.constant 1 : index
    %c0_88 = arith.constant 0 : index
    %c0_89 = arith.constant 0 : index
    %86 = vector.load %arg4[%c1_87, %c0_88, %c0_89] : memref<9x8x8xf32, #tpu.memory_space<vmem>>, vector<1x8x8xf32>
    %87 = vector.shape_cast %86 : vector<1x8x8xf32> to vector<8x8xf32>
    %cst_90 = arith.constant dense<0.000000e+00> : vector<8x256xf32>
    %88 = tpu.matmul %87, %85, %cst_90 {dimension_numbers = #tpu.dot_dimension_numbers<[1], [0], [0], [1], [0, 0, 1, 1], [], []>} : vector<8x8xf32>, vector<8x256xf32>, vector<8x256xf32> -> vector<8x256xf32>
    %c0_91 = arith.constant 0 : index
    %c17_92 = arith.constant 17 : index
    %89 = vector.load %arg11[%c0_91, %c17_92] : memref<8x290xf32, #tpu.memory_space<vmem>>, vector<8x256xf32>
    %c4_93 = arith.constant 4 : index
    %c0_94 = arith.constant 0 : index
    %c0_95 = arith.constant 0 : index
    %90 = vector.load %arg4[%c4_93, %c0_94, %c0_95] : memref<9x8x8xf32, #tpu.memory_space<vmem>>, vector<1x8x8xf32>
    %91 = vector.shape_cast %90 : vector<1x8x8xf32> to vector<8x8xf32>
    %cst_96 = arith.constant dense<0.000000e+00> : vector<8x256xf32>
    %92 = tpu.matmul %91, %89, %cst_96 {dimension_numbers = #tpu.dot_dimension_numbers<[1], [0], [0], [1], [0, 0, 1, 1], [], []>} : vector<8x8xf32>, vector<8x256xf32>, vector<8x256xf32> -> vector<8x256xf32>
    %93 = arith.addf %88, %92 : vector<8x256xf32>
    %c0_97 = arith.constant 0 : index
    %c33_98 = arith.constant 33 : index
    %94 = vector.load %arg11[%c0_97, %c33_98] : memref<8x290xf32, #tpu.memory_space<vmem>>, vector<8x256xf32>
    %c7_99 = arith.constant 7 : index
    %c0_100 = arith.constant 0 : index
    %c0_101 = arith.constant 0 : index
    %95 = vector.load %arg4[%c7_99, %c0_100, %c0_101] : memref<9x8x8xf32, #tpu.memory_space<vmem>>, vector<1x8x8xf32>
    %96 = vector.shape_cast %95 : vector<1x8x8xf32> to vector<8x8xf32>
    %cst_102 = arith.constant dense<0.000000e+00> : vector<8x256xf32>
    %97 = tpu.matmul %96, %94, %cst_102 {dimension_numbers = #tpu.dot_dimension_numbers<[1], [0], [0], [1], [0, 0, 1, 1], [], []>} : vector<8x8xf32>, vector<8x256xf32>, vector<8x256xf32> -> vector<8x256xf32>
    %98 = arith.addf %93, %97 : vector<8x256xf32>
    %99 = arith.addf %84, %98 : vector<8x256xf32>
    %c0_103 = arith.constant 0 : index
    %c2_104 = arith.constant 2 : index
    %100 = vector.load %arg11[%c0_103, %c2_104] : memref<8x290xf32, #tpu.memory_space<vmem>>, vector<8x256xf32>
    %c2_105 = arith.constant 2 : index
    %c0_106 = arith.constant 0 : index
    %c0_107 = arith.constant 0 : index
    %101 = vector.load %arg4[%c2_105, %c0_106, %c0_107] : memref<9x8x8xf32, #tpu.memory_space<vmem>>, vector<1x8x8xf32>
    %102 = vector.shape_cast %101 : vector<1x8x8xf32> to vector<8x8xf32>
    %cst_108 = arith.constant dense<0.000000e+00> : vector<8x256xf32>
    %103 = tpu.matmul %102, %100, %cst_108 {dimension_numbers = #tpu.dot_dimension_numbers<[1], [0], [0], [1], [0, 0, 1, 1], [], []>} : vector<8x8xf32>, vector<8x256xf32>, vector<8x256xf32> -> vector<8x256xf32>
    %c0_109 = arith.constant 0 : index
    %c18_110 = arith.constant 18 : index
    %104 = vector.load %arg11[%c0_109, %c18_110] : memref<8x290xf32, #tpu.memory_space<vmem>>, vector<8x256xf32>
    %c5_111 = arith.constant 5 : index
    %c0_112 = arith.constant 0 : index
    %c0_113 = arith.constant 0 : index
    %105 = vector.load %arg4[%c5_111, %c0_112, %c0_113] : memref<9x8x8xf32, #tpu.memory_space<vmem>>, vector<1x8x8xf32>
    %106 = vector.shape_cast %105 : vector<1x8x8xf32> to vector<8x8xf32>
    %cst_114 = arith.constant dense<0.000000e+00> : vector<8x256xf32>
    %107 = tpu.matmul %106, %104, %cst_114 {dimension_numbers = #tpu.dot_dimension_numbers<[1], [0], [0], [1], [0, 0, 1, 1], [], []>} : vector<8x8xf32>, vector<8x256xf32>, vector<8x256xf32> -> vector<8x256xf32>
    %108 = arith.addf %103, %107 : vector<8x256xf32>
    %c0_115 = arith.constant 0 : index
    %c34_116 = arith.constant 34 : index
    %109 = vector.load %arg11[%c0_115, %c34_116] : memref<8x290xf32, #tpu.memory_space<vmem>>, vector<8x256xf32>
    %c8_117 = arith.constant 8 : index
    %c0_118 = arith.constant 0 : index
    %c0_119 = arith.constant 0 : index
    %110 = vector.load %arg4[%c8_117, %c0_118, %c0_119] : memref<9x8x8xf32, #tpu.memory_space<vmem>>, vector<1x8x8xf32>
    %111 = vector.shape_cast %110 : vector<1x8x8xf32> to vector<8x8xf32>
    %cst_120 = arith.constant dense<0.000000e+00> : vector<8x256xf32>
    %112 = tpu.matmul %111, %109, %cst_120 {dimension_numbers = #tpu.dot_dimension_numbers<[1], [0], [0], [1], [0, 0, 1, 1], [], []>} : vector<8x8xf32>, vector<8x256xf32>, vector<8x256xf32> -> vector<8x256xf32>
    %113 = arith.addf %108, %112 : vector<8x256xf32>
    %114 = vector.broadcast %11 : vector<1x256xf32> to vector<8x256xf32>
    %115 = arith.mulf %113, %114 : vector<8x256xf32>
    %116 = arith.addf %99, %115 : vector<8x256xf32>
    %c0_121 = arith.constant 0 : index
    %c0_122 = arith.constant 0 : index
    %117 = vector.load %arg6[%c0_121, %c0_122] : memref<8x4xf32, #tpu.memory_space<vmem>>, vector<8x4xf32>
    %cst_123 = arith.constant dense<0.000000e+00> : vector<8x256xf32>
    %118 = tpu.matmul %117, %13, %cst_123 {dimension_numbers = #tpu.dot_dimension_numbers<[1], [0], [0], [1], [0, 0, 1, 1], [], []>} : vector<8x4xf32>, vector<4x256xf32>, vector<8x256xf32> -> vector<8x256xf32>
    %c0_124 = arith.constant 0 : index
    %c0_125 = arith.constant 0 : index
    %119 = vector.load %arg5[%c0_124, %c0_125] : memref<8x1xf32, #tpu.memory_space<vmem>>, vector<8x1xf32>
    %120 = vector.broadcast %119 : vector<8x1xf32> to vector<8x256xf32>
    %121 = arith.addf %116, %120 : vector<8x256xf32>
    %122 = arith.addf %121, %118 : vector<8x256xf32>
    %cst_126 = arith.constant 0.000000e+00 : f32
    %123 = vector.broadcast %cst_126 : f32 to vector<8x256xf32>
    %124 = arith.maximumf %122, %123 : vector<8x256xf32>
    %c0_127 = arith.constant 0 : index
    %c0_128 = arith.constant 0 : index
    %c0_129 = arith.constant 0 : index
    %125 = vector.load %arg9[%c0_127, %c0_128, %c0_129] : memref<2x8x256xf32, #tpu.memory_space<vmem>>, vector<1x8x256xf32>
    %126 = vector.shape_cast %125 : vector<1x8x256xf32> to vector<8x256xf32>
    %127 = vector.shape_cast %124 : vector<8x256xf32> to vector<1x8x256xf32>
    tpu.vector_store %arg9[%c0_127, %c0_128, %c0_129], %127 {strides = array<i32>} : memref<2x8x256xf32, #tpu.memory_space<vmem>>, vector<1x8x256xf32>,
    %c1_130 = arith.constant 1 : index
    %c0_131 = arith.constant 0 : index
    %c0_132 = arith.constant 0 : index
    %128 = vector.load %arg1[%c1_130, %c0_131, %c0_132] : memref<2x4x256xf32, #tpu.memory_space<vmem>>, vector<1x4x256xf32>
    %129 = vector.shape_cast %128 : vector<1x4x256xf32> to vector<4x256xf32>
    %c0_133 = arith.constant 0 : index
    %c17_134 = arith.constant 17 : index
    %130 = vector.load %arg10[%c0_133, %c17_134] : memref<4x290xf32, #tpu.memory_space<vmem>>, vector<4x256xf32>
    tpu.vector_store %arg10[%c0_133, %c17_134], %129 {strides = array<i32>} : memref<4x290xf32, #tpu.memory_space<vmem>>, vector<4x256xf32>,
    %c0_135 = arith.constant 0 : index
    %c0_136 = arith.constant 0 : index
    %131 = vector.load %arg10[%c0_135, %c0_136] : memref<4x290xf32, #tpu.memory_space<vmem>>, vector<4x256xf32>
    %c0_137 = arith.constant 0 : index
    %c0_138 = arith.constant 0 : index
    %c0_139 = arith.constant 0 : index
    %132 = vector.load %arg2[%c0_137, %c0_138, %c0_139] : memref<9x8x4xf32, #tpu.memory_space<vmem>>, vector<1x8x4xf32>
    %133 = vector.shape_cast %132 : vector<1x8x4xf32> to vector<8x4xf32>
    %cst_140 = arith.constant dense<0.000000e+00> : vector<8x256xf32>
    %134 = tpu.matmul %133, %131, %cst_140 {dimension_numbers = #tpu.dot_dimension_numbers<[1], [0], [0], [1], [0, 0, 1, 1], [], []>} : vector<8x4xf32>, vector<4x256xf32>, vector<8x256xf32> -> vector<8x256xf32>
    %c0_141 = arith.constant 0 : index
    %c16_142 = arith.constant 16 : index
    %135 = vector.load %arg10[%c0_141, %c16_142] : memref<4x290xf32, #tpu.memory_space<vmem>>, vector<4x256xf32>
    %c3_143 = arith.constant 3 : index
    %c0_144 = arith.constant 0 : index
    %c0_145 = arith.constant 0 : index
    %136 = vector.load %arg2[%c3_143, %c0_144, %c0_145] : memref<9x8x4xf32, #tpu.memory_space<vmem>>, vector<1x8x4xf32>
    %137 = vector.shape_cast %136 : vector<1x8x4xf32> to vector<8x4xf32>
    %cst_146 = arith.constant dense<0.000000e+00> : vector<8x256xf32>
    %138 = tpu.matmul %137, %135, %cst_146 {dimension_numbers = #tpu.dot_dimension_numbers<[1], [0], [0], [1], [0, 0, 1, 1], [], []>} : vector<8x4xf32>, vector<4x256xf32>, vector<8x256xf32> -> vector<8x256xf32>
    %139 = arith.addf %134, %138 : vector<8x256xf32>
    %c0_147 = arith.constant 0 : index
    %c32_148 = arith.constant 32 : index
    %140 = vector.load %arg10[%c0_147, %c32_148] : memref<4x290xf32, #tpu.memory_space<vmem>>, vector<4x256xf32>
    %c6_149 = arith.constant 6 : index
    %c0_150 = arith.constant 0 : index
    %c0_151 = arith.constant 0 : index
    %141 = vector.load %arg2[%c6_149, %c0_150, %c0_151] : memref<9x8x4xf32, #tpu.memory_space<vmem>>, vector<1x8x4xf32>
    %142 = vector.shape_cast %141 : vector<1x8x4xf32> to vector<8x4xf32>
    %cst_152 = arith.constant dense<0.000000e+00> : vector<8x256xf32>
    %143 = tpu.matmul %142, %140, %cst_152 {dimension_numbers = #tpu.dot_dimension_numbers<[1], [0], [0], [1], [0, 0, 1, 1], [], []>} : vector<8x4xf32>, vector<4x256xf32>, vector<8x256xf32> -> vector<8x256xf32>
    %144 = arith.addf %139, %143 : vector<8x256xf32>
    %145 = vector.broadcast %8 : vector<1x256xf32> to vector<8x256xf32>
    %146 = arith.mulf %144, %145 : vector<8x256xf32>
    %c0_153 = arith.constant 0 : index
    %c1_154 = arith.constant 1 : index
    %147 = vector.load %arg10[%c0_153, %c1_154] : memref<4x290xf32, #tpu.memory_space<vmem>>, vector<4x256xf32>
    %c1_155 = arith.constant 1 : index
    %c0_156 = arith.constant 0 : index
    %c0_157 = arith.constant 0 : index
    %148 = vector.load %arg2[%c1_155, %c0_156, %c0_157] : memref<9x8x4xf32, #tpu.memory_space<vmem>>, vector<1x8x4xf32>
    %149 = vector.shape_cast %148 : vector<1x8x4xf32> to vector<8x4xf32>
    %cst_158 = arith.constant dense<0.000000e+00> : vector<8x256xf32>
    %150 = tpu.matmul %149, %147, %cst_158 {dimension_numbers = #tpu.dot_dimension_numbers<[1], [0], [0], [1], [0, 0, 1, 1], [], []>} : vector<8x4xf32>, vector<4x256xf32>, vector<8x256xf32> -> vector<8x256xf32>
    %c0_159 = arith.constant 0 : index
    %c17_160 = arith.constant 17 : index
    %151 = vector.load %arg10[%c0_159, %c17_160] : memref<4x290xf32, #tpu.memory_space<vmem>>, vector<4x256xf32>
    %c4_161 = arith.constant 4 : index
    %c0_162 = arith.constant 0 : index
    %c0_163 = arith.constant 0 : index
    %152 = vector.load %arg2[%c4_161, %c0_162, %c0_163] : memref<9x8x4xf32, #tpu.memory_space<vmem>>, vector<1x8x4xf32>
    %153 = vector.shape_cast %152 : vector<1x8x4xf32> to vector<8x4xf32>
    %cst_164 = arith.constant dense<0.000000e+00> : vector<8x256xf32>
    %154 = tpu.matmul %153, %151, %cst_164 {dimension_numbers = #tpu.dot_dimension_numbers<[1], [0], [0], [1], [0, 0, 1, 1], [], []>} : vector<8x4xf32>, vector<4x256xf32>, vector<8x256xf32> -> vector<8x256xf32>
    %155 = arith.addf %150, %154 : vector<8x256xf32>
    %c0_165 = arith.constant 0 : index
    %c33_166 = arith.constant 33 : index
    %156 = vector.load %arg10[%c0_165, %c33_166] : memref<4x290xf32, #tpu.memory_space<vmem>>, vector<4x256xf32>
    %c7_167 = arith.constant 7 : index
    %c0_168 = arith.constant 0 : index
    %c0_169 = arith.constant 0 : index
    %157 = vector.load %arg2[%c7_167, %c0_168, %c0_169] : memref<9x8x4xf32, #tpu.memory_space<vmem>>, vector<1x8x4xf32>
    %158 = vector.shape_cast %157 : vector<1x8x4xf32> to vector<8x4xf32>
    %cst_170 = arith.constant dense<0.000000e+00> : vector<8x256xf32>
    %159 = tpu.matmul %158, %156, %cst_170 {dimension_numbers = #tpu.dot_dimension_numbers<[1], [0], [0], [1], [0, 0, 1, 1], [], []>} : vector<8x4xf32>, vector<4x256xf32>, vector<8x256xf32> -> vector<8x256xf32>
    %160 = arith.addf %155, %159 : vector<8x256xf32>
    %161 = arith.addf %146, %160 : vector<8x256xf32>
    %c0_171 = arith.constant 0 : index
    %c2_172 = arith.constant 2 : index
    %162 = vector.load %arg10[%c0_171, %c2_172] : memref<4x290xf32, #tpu.memory_space<vmem>>, vector<4x256xf32>
    %c2_173 = arith.constant 2 : index
    %c0_174 = arith.constant 0 : index
    %c0_175 = arith.constant 0 : index
    %163 = vector.load %arg2[%c2_173, %c0_174, %c0_175] : memref<9x8x4xf32, #tpu.memory_space<vmem>>, vector<1x8x4xf32>
    %164 = vector.shape_cast %163 : vector<1x8x4xf32> to vector<8x4xf32>
    %cst_176 = arith.constant dense<0.000000e+00> : vector<8x256xf32>
    %165 = tpu.matmul %164, %162, %cst_176 {dimension_numbers = #tpu.dot_dimension_numbers<[1], [0], [0], [1], [0, 0, 1, 1], [], []>} : vector<8x4xf32>, vector<4x256xf32>, vector<8x256xf32> -> vector<8x256xf32>
    %c0_177 = arith.constant 0 : index
    %c18_178 = arith.constant 18 : index
    %166 = vector.load %arg10[%c0_177, %c18_178] : memref<4x290xf32, #tpu.memory_space<vmem>>, vector<4x256xf32>
    %c5_179 = arith.constant 5 : index
    %c0_180 = arith.constant 0 : index
    %c0_181 = arith.constant 0 : index
    %167 = vector.load %arg2[%c5_179, %c0_180, %c0_181] : memref<9x8x4xf32, #tpu.memory_space<vmem>>, vector<1x8x4xf32>
    %168 = vector.shape_cast %167 : vector<1x8x4xf32> to vector<8x4xf32>
    %cst_182 = arith.constant dense<0.000000e+00> : vector<8x256xf32>
    %169 = tpu.matmul %168, %166, %cst_182 {dimension_numbers = #tpu.dot_dimension_numbers<[1], [0], [0], [1], [0, 0, 1, 1], [], []>} : vector<8x4xf32>, vector<4x256xf32>, vector<8x256xf32> -> vector<8x256xf32>
    %170 = arith.addf %165, %169 : vector<8x256xf32>
    %c0_183 = arith.constant 0 : index
    %c34_184 = arith.constant 34 : index
    %171 = vector.load %arg10[%c0_183, %c34_184] : memref<4x290xf32, #tpu.memory_space<vmem>>, vector<4x256xf32>
    %c8_185 = arith.constant 8 : index
    %c0_186 = arith.constant 0 : index
    %c0_187 = arith.constant 0 : index
    %172 = vector.load %arg2[%c8_185, %c0_186, %c0_187] : memref<9x8x4xf32, #tpu.memory_space<vmem>>, vector<1x8x4xf32>
    %173 = vector.shape_cast %172 : vector<1x8x4xf32> to vector<8x4xf32>
    %cst_188 = arith.constant dense<0.000000e+00> : vector<8x256xf32>
    %174 = tpu.matmul %173, %171, %cst_188 {dimension_numbers = #tpu.dot_dimension_numbers<[1], [0], [0], [1], [0, 0, 1, 1], [], []>} : vector<8x4xf32>, vector<4x256xf32>, vector<8x256xf32> -> vector<8x256xf32>
    %175 = arith.addf %170, %174 : vector<8x256xf32>
    %176 = vector.broadcast %9 : vector<1x256xf32> to vector<8x256xf32>
    %177 = arith.mulf %175, %176 : vector<8x256xf32>
    %178 = arith.addf %161, %177 : vector<8x256xf32>
    %c0_189 = arith.constant 0 : index
    %c0_190 = arith.constant 0 : index
    %179 = vector.load %arg3[%c0_189, %c0_190] : memref<8x1xf32, #tpu.memory_space<vmem>>, vector<8x1xf32>
    %180 = vector.broadcast %179 : vector<8x1xf32> to vector<8x256xf32>
    %181 = arith.addf %178, %180 : vector<8x256xf32>
    %cst_191 = arith.constant 0.000000e+00 : f32
    %182 = vector.broadcast %cst_191 : f32 to vector<8x256xf32>
    %183 = arith.maximumf %181, %182 : vector<8x256xf32>
    %c0_192 = arith.constant 0 : index
    %c17_193 = arith.constant 17 : index
    %184 = vector.load %arg11[%c0_192, %c17_193] : memref<8x290xf32, #tpu.memory_space<vmem>>, vector<8x256xf32>
    tpu.vector_store %arg11[%c0_192, %c17_193], %183 {strides = array<i32>} : memref<8x290xf32, #tpu.memory_space<vmem>>, vector<8x256xf32>,
    %c0_194 = arith.constant 0 : index
    %c0_195 = arith.constant 0 : index
    %185 = vector.load %arg11[%c0_194, %c0_195] : memref<8x290xf32, #tpu.memory_space<vmem>>, vector<8x256xf32>
    %c0_196 = arith.constant 0 : index
    %c0_197 = arith.constant 0 : index
    %c0_198 = arith.constant 0 : index
    %186 = vector.load %arg4[%c0_196, %c0_197, %c0_198] : memref<9x8x8xf32, #tpu.memory_space<vmem>>, vector<1x8x8xf32>
    %187 = vector.shape_cast %186 : vector<1x8x8xf32> to vector<8x8xf32>
    %cst_199 = arith.constant dense<0.000000e+00> : vector<8x256xf32>
    %188 = tpu.matmul %187, %185, %cst_199 {dimension_numbers = #tpu.dot_dimension_numbers<[1], [0], [0], [1], [0, 0, 1, 1], [], []>} : vector<8x8xf32>, vector<8x256xf32>, vector<8x256xf32> -> vector<8x256xf32>
    %c0_200 = arith.constant 0 : index
    %c16_201 = arith.constant 16 : index
    %189 = vector.load %arg11[%c0_200, %c16_201] : memref<8x290xf32, #tpu.memory_space<vmem>>, vector<8x256xf32>
    %c3_202 = arith.constant 3 : index
    %c0_203 = arith.constant 0 : index
    %c0_204 = arith.constant 0 : index
    %190 = vector.load %arg4[%c3_202, %c0_203, %c0_204] : memref<9x8x8xf32, #tpu.memory_space<vmem>>, vector<1x8x8xf32>
    %191 = vector.shape_cast %190 : vector<1x8x8xf32> to vector<8x8xf32>
    %cst_205 = arith.constant dense<0.000000e+00> : vector<8x256xf32>
    %192 = tpu.matmul %191, %189, %cst_205 {dimension_numbers = #tpu.dot_dimension_numbers<[1], [0], [0], [1], [0, 0, 1, 1], [], []>} : vector<8x8xf32>, vector<8x256xf32>, vector<8x256xf32> -> vector<8x256xf32>
    %193 = arith.addf %188, %192 : vector<8x256xf32>
    %c0_206 = arith.constant 0 : index
    %c32_207 = arith.constant 32 : index
    %194 = vector.load %arg11[%c0_206, %c32_207] : memref<8x290xf32, #tpu.memory_space<vmem>>, vector<8x256xf32>
    %c6_208 = arith.constant 6 : index
    %c0_209 = arith.constant 0 : index
    %c0_210 = arith.constant 0 : index
    %195 = vector.load %arg4[%c6_208, %c0_209, %c0_210] : memref<9x8x8xf32, #tpu.memory_space<vmem>>, vector<1x8x8xf32>
    %196 = vector.shape_cast %195 : vector<1x8x8xf32> to vector<8x8xf32>
    %cst_211 = arith.constant dense<0.000000e+00> : vector<8x256xf32>
    %197 = tpu.matmul %196, %194, %cst_211 {dimension_numbers = #tpu.dot_dimension_numbers<[1], [0], [0], [1], [0, 0, 1, 1], [], []>} : vector<8x8xf32>, vector<8x256xf32>, vector<8x256xf32> -> vector<8x256xf32>
    %198 = arith.addf %193, %197 : vector<8x256xf32>
    %199 = vector.broadcast %10 : vector<1x256xf32> to vector<8x256xf32>
    %200 = arith.mulf %198, %199 : vector<8x256xf32>
    %c0_212 = arith.constant 0 : index
    %c1_213 = arith.constant 1 : index
    %201 = vector.load %arg11[%c0_212, %c1_213] : memref<8x290xf32, #tpu.memory_space<vmem>>, vector<8x256xf32>
    %c1_214 = arith.constant 1 : index
    %c0_215 = arith.constant 0 : index
    %c0_216 = arith.constant 0 : index
    %202 = vector.load %arg4[%c1_214, %c0_215, %c0_216] : memref<9x8x8xf32, #tpu.memory_space<vmem>>, vector<1x8x8xf32>
    %203 = vector.shape_cast %202 : vector<1x8x8xf32> to vector<8x8xf32>
    %cst_217 = arith.constant dense<0.000000e+00> : vector<8x256xf32>
    %204 = tpu.matmul %203, %201, %cst_217 {dimension_numbers = #tpu.dot_dimension_numbers<[1], [0], [0], [1], [0, 0, 1, 1], [], []>} : vector<8x8xf32>, vector<8x256xf32>, vector<8x256xf32> -> vector<8x256xf32>
    %c0_218 = arith.constant 0 : index
    %c17_219 = arith.constant 17 : index
    %205 = vector.load %arg11[%c0_218, %c17_219] : memref<8x290xf32, #tpu.memory_space<vmem>>, vector<8x256xf32>
    %c4_220 = arith.constant 4 : index
    %c0_221 = arith.constant 0 : index
    %c0_222 = arith.constant 0 : index
    %206 = vector.load %arg4[%c4_220, %c0_221, %c0_222] : memref<9x8x8xf32, #tpu.memory_space<vmem>>, vector<1x8x8xf32>
    %207 = vector.shape_cast %206 : vector<1x8x8xf32> to vector<8x8xf32>
    %cst_223 = arith.constant dense<0.000000e+00> : vector<8x256xf32>
    %208 = tpu.matmul %207, %205, %cst_223 {dimension_numbers = #tpu.dot_dimension_numbers<[1], [0], [0], [1], [0, 0, 1, 1], [], []>} : vector<8x8xf32>, vector<8x256xf32>, vector<8x256xf32> -> vector<8x256xf32>
    %209 = arith.addf %204, %208 : vector<8x256xf32>
    %c0_224 = arith.constant 0 : index
    %c33_225 = arith.constant 33 : index
    %210 = vector.load %arg11[%c0_224, %c33_225] : memref<8x290xf32, #tpu.memory_space<vmem>>, vector<8x256xf32>
    %c7_226 = arith.constant 7 : index
    %c0_227 = arith.constant 0 : index
    %c0_228 = arith.constant 0 : index
    %211 = vector.load %arg4[%c7_226, %c0_227, %c0_228] : memref<9x8x8xf32, #tpu.memory_space<vmem>>, vector<1x8x8xf32>
    %212 = vector.shape_cast %211 : vector<1x8x8xf32> to vector<8x8xf32>
    %cst_229 = arith.constant dense<0.000000e+00> : vector<8x256xf32>
    %213 = tpu.matmul %212, %210, %cst_229 {dimension_numbers = #tpu.dot_dimension_numbers<[1], [0], [0], [1], [0, 0, 1, 1], [], []>} : vector<8x8xf32>, vector<8x256xf32>, vector<8x256xf32> -> vector<8x256xf32>
    %214 = arith.addf %209, %213 : vector<8x256xf32>
    %215 = arith.addf %200, %214 : vector<8x256xf32>
    %c0_230 = arith.constant 0 : index
    %c2_231 = arith.constant 2 : index
    %216 = vector.load %arg11[%c0_230, %c2_231] : memref<8x290xf32, #tpu.memory_space<vmem>>, vector<8x256xf32>
    %c2_232 = arith.constant 2 : index
    %c0_233 = arith.constant 0 : index
    %c0_234 = arith.constant 0 : index
    %217 = vector.load %arg4[%c2_232, %c0_233, %c0_234] : memref<9x8x8xf32, #tpu.memory_space<vmem>>, vector<1x8x8xf32>
    %218 = vector.shape_cast %217 : vector<1x8x8xf32> to vector<8x8xf32>
    %cst_235 = arith.constant dense<0.000000e+00> : vector<8x256xf32>
    %219 = tpu.matmul %218, %216, %cst_235 {dimension_numbers = #tpu.dot_dimension_numbers<[1], [0], [0], [1], [0, 0, 1, 1], [], []>} : vector<8x8xf32>, vector<8x256xf32>, vector<8x256xf32> -> vector<8x256xf32>
    %c0_236 = arith.constant 0 : index
    %c18_237 = arith.constant 18 : index
    %220 = vector.load %arg11[%c0_236, %c18_237] : memref<8x290xf32, #tpu.memory_space<vmem>>, vector<8x256xf32>
    %c5_238 = arith.constant 5 : index
    %c0_239 = arith.constant 0 : index
    %c0_240 = arith.constant 0 : index
    %221 = vector.load %arg4[%c5_238, %c0_239, %c0_240] : memref<9x8x8xf32, #tpu.memory_space<vmem>>, vector<1x8x8xf32>
    %222 = vector.shape_cast %221 : vector<1x8x8xf32> to vector<8x8xf32>
    %cst_241 = arith.constant dense<0.000000e+00> : vector<8x256xf32>
    %223 = tpu.matmul %222, %220, %cst_241 {dimension_numbers = #tpu.dot_dimension_numbers<[1], [0], [0], [1], [0, 0, 1, 1], [], []>} : vector<8x8xf32>, vector<8x256xf32>, vector<8x256xf32> -> vector<8x256xf32>
    %224 = arith.addf %219, %223 : vector<8x256xf32>
    %c0_242 = arith.constant 0 : index
    %c34_243 = arith.constant 34 : index
    %225 = vector.load %arg11[%c0_242, %c34_243] : memref<8x290xf32, #tpu.memory_space<vmem>>, vector<8x256xf32>
    %c8_244 = arith.constant 8 : index
    %c0_245 = arith.constant 0 : index
    %c0_246 = arith.constant 0 : index
    %226 = vector.load %arg4[%c8_244, %c0_245, %c0_246] : memref<9x8x8xf32, #tpu.memory_space<vmem>>, vector<1x8x8xf32>
    %227 = vector.shape_cast %226 : vector<1x8x8xf32> to vector<8x8xf32>
    %cst_247 = arith.constant dense<0.000000e+00> : vector<8x256xf32>
    %228 = tpu.matmul %227, %225, %cst_247 {dimension_numbers = #tpu.dot_dimension_numbers<[1], [0], [0], [1], [0, 0, 1, 1], [], []>} : vector<8x8xf32>, vector<8x256xf32>, vector<8x256xf32> -> vector<8x256xf32>
    %229 = arith.addf %224, %228 : vector<8x256xf32>
    %230 = vector.broadcast %11 : vector<1x256xf32> to vector<8x256xf32>
    %231 = arith.mulf %229, %230 : vector<8x256xf32>
    %232 = arith.addf %215, %231 : vector<8x256xf32>
    %c0_248 = arith.constant 0 : index
    %c0_249 = arith.constant 0 : index
    %233 = vector.load %arg6[%c0_248, %c0_249] : memref<8x4xf32, #tpu.memory_space<vmem>>, vector<8x4xf32>
    %cst_250 = arith.constant dense<0.000000e+00> : vector<8x256xf32>
    %234 = tpu.matmul %233, %129, %cst_250 {dimension_numbers = #tpu.dot_dimension_numbers<[1], [0], [0], [1], [0, 0, 1, 1], [], []>} : vector<8x4xf32>, vector<4x256xf32>, vector<8x256xf32> -> vector<8x256xf32>
    %c0_251 = arith.constant 0 : index
    %c0_252 = arith.constant 0 : index
    %235 = vector.load %arg5[%c0_251, %c0_252] : memref<8x1xf32, #tpu.memory_space<vmem>>, vector<8x1xf32>
    %236 = vector.broadcast %235 : vector<8x1xf32> to vector<8x256xf32>
    %237 = arith.addf %232, %236 : vector<8x256xf32>
    %238 = arith.addf %237, %234 : vector<8x256xf32>
    %cst_253 = arith.constant 0.000000e+00 : f32
    %239 = vector.broadcast %cst_253 : f32 to vector<8x256xf32>
    %240 = arith.maximumf %238, %239 : vector<8x256xf32>
    %c1_254 = arith.constant 1 : index
    %c0_255 = arith.constant 0 : index
    %c0_256 = arith.constant 0 : index
    %241 = vector.load %arg9[%c1_254, %c0_255, %c0_256] : memref<2x8x256xf32, #tpu.memory_space<vmem>>, vector<1x8x256xf32>
    %242 = vector.shape_cast %241 : vector<1x8x256xf32> to vector<8x256xf32>
    %243 = vector.shape_cast %240 : vector<8x256xf32> to vector<1x8x256xf32>
    tpu.vector_store %arg9[%c1_254, %c0_255, %c0_256], %243 {strides = array<i32>} : memref<2x8x256xf32, #tpu.memory_space<vmem>>, vector<1x8x256xf32>,
    return
  }
  func.func @transform_0(%arg0: i32) -> (i32, i32, i32) {
    %c0_i32 = arith.constant 0 : i32
    %c0_i32_0 = arith.constant 0 : i32
    %c0_i32_1 = arith.constant 0 : i32
    return %arg0, %c0_i32, %c0_i32_0 : i32, i32, i32
  }
  func.func @transform_1(%arg0: i32) -> (i32, i32, i32) {
    %c0_i32 = arith.constant 0 : i32
    %c0_i32_0 = arith.constant 0 : i32
    %c0_i32_1 = arith.constant 0 : i32
    %c0_i32_2 = arith.constant 0 : i32
    return %c0_i32, %c0_i32_0, %c0_i32_1 : i32, i32, i32
  }
  func.func @transform_2(%arg0: i32) -> (i32, i32) {
    %c0_i32 = arith.constant 0 : i32
    %c0_i32_0 = arith.constant 0 : i32
    %c0_i32_1 = arith.constant 0 : i32
    return %c0_i32, %c0_i32_0 : i32, i32
  }
  func.func @transform_3(%arg0: i32) -> (i32, i32, i32) {
    %c0_i32 = arith.constant 0 : i32
    %c0_i32_0 = arith.constant 0 : i32
    %c0_i32_1 = arith.constant 0 : i32
    %c0_i32_2 = arith.constant 0 : i32
    return %c0_i32, %c0_i32_0, %c0_i32_1 : i32, i32, i32
  }
  func.func @transform_4(%arg0: i32) -> (i32, i32) {
    %c0_i32 = arith.constant 0 : i32
    %c0_i32_0 = arith.constant 0 : i32
    %c0_i32_1 = arith.constant 0 : i32
    return %c0_i32, %c0_i32_0 : i32, i32
  }
  func.func @transform_5(%arg0: i32) -> (i32, i32) {
    %c0_i32 = arith.constant 0 : i32
    %c0_i32_0 = arith.constant 0 : i32
    %c0_i32_1 = arith.constant 0 : i32
    return %c0_i32, %c0_i32_0 : i32, i32
  }
  func.func @transform_6(%arg0: i32) -> (i32, i32) {
    %c0_i32 = arith.constant 0 : i32
    %c0_i32_0 = arith.constant 0 : i32
    %c0_i32_1 = arith.constant 0 : i32
    return %c0_i32, %c0_i32_0 : i32, i32
  }
  func.func @transform_7(%arg0: i32) -> (i32, i32) {
    %c0_i32 = arith.constant 0 : i32
    %c0_i32_0 = arith.constant 0 : i32
    %c0_i32_1 = arith.constant 0 : i32
    return %c0_i32, %c0_i32_0 : i32, i32
  }
  func.func @transform_8(%arg0: i32) -> (i32, i32, i32) {
    %c0_i32 = arith.constant 0 : i32
    %c0_i32_0 = arith.constant 0 : i32
    %c0_i32_1 = arith.constant 0 : i32
    return %arg0, %c0_i32, %c0_i32_0 : i32, i32, i32
  }
}

</mosaic_0001>

<llo_original>
// kernel: tpu_custom_call.1
$region0: #{tpu_custom_call.1}
  #allocation0 [shape = 'u32[]', space=smem, size = 0x4, offset = 0x4, fixed_abs, tag = 'smem constant byte address 0x4 - core index']
  #allocation1 [shape = 'u32[144,128]{1,0:T(1,128)}', space=vmem, size = 0x12000, scoped, tag = 'internal scratch']
  #allocation2 [shape = 'f32[4,290]{1,0:T(4,128)}', space=vmem, size = 0x1800, scoped, tag = 'scratch operand']
  #allocation3 [shape = 'f32[8,290]{1,0:T(8,128)}', space=vmem, size = 0x3000, scoped, tag = 'scratch operand']
  %s0 = inlined_call_operand.vmem [shape: f32[2,4,256], index: 0, kind: input, shape index: {}]
  %s1 = inlined_call_operand.vmem [shape: f32[9,8,4], index: 1, kind: input, shape index: {}]
  %s2 = inlined_call_operand.vmem [shape: f32[8,1], index: 2, kind: input, shape index: {}]
  %s3 = inlined_call_operand.vmem [shape: f32[9,8,8], index: 3, kind: input, shape index: {}]
  %s4 = inlined_call_operand.vmem [shape: f32[8,1], index: 4, kind: input, shape index: {}]
  %s5 = inlined_call_operand.vmem [shape: f32[8,4], index: 5, kind: input, shape index: {}]
  %s6 = inlined_call_operand.vmem [shape: f32[2,256], index: 6, kind: input, shape index: {}]
  %s7 = inlined_call_operand.vmem [shape: f32[2,256], index: 7, kind: input, shape index: {}]
  %s8 = inlined_call_operand.hbm [shape: f32[2,8,256], index: 8, kind: output, shape index: {}]
  %s9 = sld [smem:[#allocation0]]
  $region42: #{tpu_custom_call.1} parent=0
    _
  %s11 = ssub.s32 1, %s9
  %s12 = scalar_select 0, %s11, %s9
  $region1: #{tpu_custom_call.1} parent=0
    #allocation4 [shape = 'u8[16384]{0}', space=vmem, size = 0x4000, scoped, tag = 'output window, operand 0, single buffered']
    #allocation5 [shape = 's32[1]{0}', space=sflag, size = 0x4, scoped, tag = 'scoped memory for tpu_custom_call.1']
    %13 = vsyncpa [#allocation5], 0
    // Predicated region
    $region2: #{tpu_custom_call.1} parent=1 // pred_check
      _
    $region3: #{tpu_custom_call.1} parent=1 // pred_check_branch
      %15 = sbr.rel (0) target = $region5
    $region4: #{tpu_custom_call.1} parent=1 // pred_region
      _
    $region5: #{tpu_custom_call.1} parent=1 // pred_fallthru
      _
    // Predicated region
    $region6: #{tpu_custom_call.1} parent=1 // pred_check
      _
    $region7: #{tpu_custom_call.1} parent=1 // pred_check_branch
      %17 = sbr.rel (0) target = $region9
    $region8: #{tpu_custom_call.1} parent=1 // pred_region
      _
    $region9: #{tpu_custom_call.1} parent=1 // pred_fallthru
      _
    // Predicated region
    $region10: #{tpu_custom_call.1} parent=1 // pred_check
      _
    $region11: #{tpu_custom_call.1} parent=1 // pred_check_branch
      %19 = sbr.rel (0) target = $region13
    $region12: #{tpu_custom_call.1} parent=1 // pred_region
      _
    $region13: #{tpu_custom_call.1} parent=1 // pred_fallthru
      _
    // Predicated region
    $region14: #{tpu_custom_call.1} parent=1 // pred_check
      _
    $region15: #{tpu_custom_call.1} parent=1 // pred_check_branch
      %21 = sbr.rel (0) target = $region17
    $region16: #{tpu_custom_call.1} parent=1 // pred_region
      _
    $region17: #{tpu_custom_call.1} parent=1 // pred_fallthru
      _
    // Predicated region
    $region18: #{tpu_custom_call.1} parent=1 // pred_check
      _
    $region19: #{tpu_custom_call.1} parent=1 // pred_check_branch
      %23 = sbr.rel (0) target = $region21
    $region20: #{tpu_custom_call.1} parent=1 // pred_region
      _
    $region21: #{tpu_custom_call.1} parent=1 // pred_fallthru
      _
    // Predicated region
    $region22: #{tpu_custom_call.1} parent=1 // pred_check
      _
    $region23: #{tpu_custom_call.1} parent=1 // pred_check_branch
      %25 = sbr.rel (0) target = $region25
    $region24: #{tpu_custom_call.1} parent=1 // pred_region
      _
    $region25: #{tpu_custom_call.1} parent=1 // pred_fallthru
      _
    // Predicated region
    $region26: #{tpu_custom_call.1} parent=1 // pred_check
      _
    $region27: #{tpu_custom_call.1} parent=1 // pred_check_branch
      %27 = sbr.rel (0) target = $region29
    $region28: #{tpu_custom_call.1} parent=1 // pred_region
      _
    $region29: #{tpu_custom_call.1} parent=1 // pred_fallthru
      _
    // Predicated region
    $region30: #{tpu_custom_call.1} parent=1 // pred_check
      _
    $region31: #{tpu_custom_call.1} parent=1 // pred_check_branch
      %29 = sbr.rel (0) target = $region33
    $region32: #{tpu_custom_call.1} parent=1 // pred_region
      _
    $region33: #{tpu_custom_call.1} parent=1 // pred_fallthru
      _
    %vm30 = vcmask 134144
    %31 = vst.msk [vmem:[#allocation2] sm:$0xf] %vm30, 0.0
    %vm32 = vcmask 273544
    %33 = vst.msk [vmem:[#allocation2 + $0x8] sm:$0xf] %vm32, 0.0
    %vm34 = vcmask 138240
    %35 = vst.msk [vmem:[#allocation3] sm:$0xff] %vm34, 0.0
    %vm36 = vcmask 277640
    %37 = vst.msk [vmem:[#allocation3 + $0x10] sm:$0xff] %vm36, 0.0
    %v38 = vld [vmem:[%s6] ss:$2 sm:$0x3]
    %s39 = scalar_lea.vmem %s6, 1
    %v40 = vld [vmem:[%s39] ss:$2 sm:$0x3]
    %v41 = vld [vmem:[%s7] ss:$2 sm:$0x3]
    %s42 = scalar_lea.vmem %s7, 1
    %v43 = vld [vmem:[%s42] ss:$2 sm:$0x3]
    %v44 = vld [vmem:[%s0] sm:$0xff]
    %46 = vrot.lane.b32.xlu0 %v44, 17
    %v47 = vpop.permute.xlu0 %46
    %v48 = vrot.slane %v47, 4
    %v49 = vsel %vm34, %v48, %v47
    %vm52 = vcmask 1043592
    %vm53 = vcmask 1047556
    %vm54 = vmor %vm53, %vm52
    %55 = vst.msk [vmem:[#allocation2] sm:$0xff] %vm54, %v49
    %56 = vst.msk [vmem:[#allocation2 + $0x8] sm:$0xf] %vm30, %v48
    %v57 = vld [vmem:[#allocation2] sm:$0xff]
    %v58 = vld [vmem:[%s1] sm:$0xff]
    %v59 = vld [vmem:[#allocation2 + $0x8] sm:$0xf]
    %s60 = scalar_lea.vmem %s1, 24
    %v61 = vld [vmem:[%s60] sm:$0xff]
    %v64 = vcombine.high %v57, %v57
    %65 = vrot.lane.b32.xlu0 %v57, 112
    %v66 = vpop.permute.xlu0 %65
    %67 = vrot.lane.b32.xlu0 %v64, 112
    %v68 = vpop.permute.xlu0 %67
    %69 = vrot.lane.b32.xlu0 %v59, 112
    %v70 = vpop.permute.xlu0 %69
    %vm71 = vcmask 916480
    %v72 = vsel %vm71, %v66, %v68
    %v73 = vsel %vm71, %v68, %v70
    %vm74 = vcmask 31744
    %v76 = vsel %vm74, %v61, 0
    %vm78 = vcmask 1043456
    %v79 = vsel %vm78, %v72, 0
    %v81 = vsel %vm78, %v73, 0
    %83 = vmatprep.subr.mxu0 0.0
    %84 = vmatpush1.msra.mxu0 0.0
    %85 = vmatprep.subr.mxu0 0.0
    %86 = vmatpush1.msra.mxu0 0.0
    %87 = vmatprep.subr.mxu0 0.0
    %88 = vmatpush1.msra.mxu0 0.0
    %89 = vmatprep.subr.mxu0 0.0
    %90 = vmatpush1.msra.mxu0 0.0
    %91 = vmatprep.subr.mxu0 0.0
    %92 = vmatpush1.msra.mxu0 0.0
    %93 = vmatprep.subr.mxu0 0.0
    %94 = vmatpush1.msra.mxu0 0.0
    %95 = vmatprep.subr.mxu0 0.0
    %96 = vmatpush1.msra.mxu0 0.0
    %97 = vmatprep.subr.mxu0 0.0
    %98 = vmatpush1.msra.mxu0 0.0
    %99 = vmatprep.subr.mxu0 0.0
    %100 = vmatpush1.msra.mxu0 0.0
    %101 = vmatprep.subr.mxu0 0.0
    %102 = vmatpush1.msra.mxu0 0.0
    %103 = vmatprep.subr.mxu0 0.0
    %104 = vmatpush1.msra.mxu0 0.0
    %105 = vmatprep.subr.mxu0 0.0
    %106 = vmatpush1.msra.mxu0 0.0
    %107 = vmatprep.subr.mxu0 0.0
    %108 = vmatpush1.msra.mxu0 0.0
    %109 = vmatprep.subr.mxu0 0.0
    %110 = vmatpush1.msra.mxu0 0.0
    %111 = vmatprep.subr.mxu0 0.0
    %112 = vmatpush1.msra.mxu0 0.0
    %113 = vmatprep.subr.mxu0 %v81
    %114 = vmatpush1.msra.mxu0 %v79
    %115 = vmatprep.subr.mxu0 0.0
    %116 = vmatpush2.msra.mxu0 0.0
    %117 = vmatprep.subr.mxu0 0.0
    %118 = vmatpush2.msra.mxu0 0.0
    %119 = vmatprep.subr.mxu0 0.0
    %120 = vmatpush2.msra.mxu0 0.0
    %121 = vmatprep.subr.mxu0 0.0
    %122 = vmatpush2.msra.mxu0 0.0
    %123 = vmatprep.subr.mxu0 0.0
    %124 = vmatpush2.msra.mxu0 0.0
    %125 = vmatprep.subr.mxu0 0.0
    %126 = vmatpush2.msra.mxu0 0.0
    %127 = vmatprep.subr.mxu0 0.0
    %128 = vmatpush2.msra.mxu0 0.0
    %129 = vmatprep.subr.mxu0 0.0
    %130 = vmatpush2.msra.mxu0 0.0
    %131 = vmatprep.subr.mxu0 0.0
    %132 = vmatpush2.msra.mxu0 0.0
    %133 = vmatprep.subr.mxu0 0.0
    %134 = vmatpush2.msra.mxu0 0.0
    %135 = vmatprep.subr.mxu0 0.0
    %136 = vmatpush2.msra.mxu0 0.0
    %137 = vmatprep.subr.mxu0 0.0
    %138 = vmatpush2.msra.mxu0 0.0
    %139 = vmatprep.subr.mxu0 0.0
    %140 = vmatpush2.msra.mxu0 0.0
    %141 = vmatprep.subr.mxu0 0.0
    %142 = vmatpush2.msra.mxu0 0.0
    %143 = vmatprep.subr.mxu0 0.0
    %144 = vmatpush2.msra.mxu0 0.0
    %145 = vmatprep.subr.mxu0 0.0
    %146 = vmatpush2.msra.mxu0 0.0
    %147 = vmatprep.mubr.f32.mxu0 0.0
    %148 = vmatmul.mubr.f32.gmra.mxu0 %v76
    %v149 = vpop.f32.mrf.mxu0
    %v150 = vadd.f32 0.0, %v149
    %v151 = vpop.f32.mrf.mxu0
    %v152 = vadd.f32 0.0, %v151
    %153 = vdwg.mxu0
    %v155 = vsel %vm74, %v58, 0
    %v157 = vsel %vm78, %v57, 0
    %v159 = vsel %vm78, %v64, 0
    %161 = vmatprep.subr.mxu0 0.0
    %162 = vmatpush1.msra.mxu0 0.0
    %163 = vmatprep.subr.mxu0 0.0
    %164 = vmatpush1.msra.mxu0 0.0
    %165 = vmatprep.subr.mxu0 0.0
    %166 = vmatpush1.msra.mxu0 0.0
    %167 = vmatprep.subr.mxu0 0.0
    %168 = vmatpush1.msra.mxu0 0.0
    %169 = vmatprep.subr.mxu0 0.0
    %170 = vmatpush1.msra.mxu0 0.0
    %171 = vmatprep.subr.mxu0 0.0
    %172 = vmatpush1.msra.mxu0 0.0
    %173 = vmatprep.subr.mxu0 0.0
    %174 = vmatpush1.msra.mxu0 0.0
    %175 = vmatprep.subr.mxu0 0.0
    %176 = vmatpush1.msra.mxu0 0.0
    %177 = vmatprep.subr.mxu0 0.0
    %178 = vmatpush1.msra.mxu0 0.0
    %179 = vmatprep.subr.mxu0 0.0
    %180 = vmatpush1.msra.mxu0 0.0
    %181 = vmatprep.subr.mxu0 0.0
    %182 = vmatpush1.msra.mxu0 0.0
    %183 = vmatprep.subr.mxu0 0.0
    %184 = vmatpush1.msra.mxu0 0.0
    %185 = vmatprep.subr.mxu0 0.0
    %186 = vmatpush1.msra.mxu0 0.0
    %187 = vmatprep.subr.mxu0 0.0
    %188 = vmatpush1.msra.mxu0 0.0
    %189 = vmatprep.subr.mxu0 0.0
    %190 = vmatpush1.msra.mxu0 0.0
    %191 = vmatprep.subr.mxu0 %v159
    %192 = vmatpush1.msra.mxu0 %v157
    %193 = vmatprep.subr.mxu0 0.0
    %194 = vmatpush2.msra.mxu0 0.0
    %195 = vmatprep.subr.mxu0 0.0
    %196 = vmatpush2.msra.mxu0 0.0
    %197 = vmatprep.subr.mxu0 0.0
    %198 = vmatpush2.msra.mxu0 0.0
    %199 = vmatprep.subr.mxu0 0.0
    %200 = vmatpush2.msra.mxu0 0.0
    %201 = vmatprep.subr.mxu0 0.0
    %202 = vmatpush2.msra.mxu0 0.0
    %203 = vmatprep.subr.mxu0 0.0
    %204 = vmatpush2.msra.mxu0 0.0
    %205 = vmatprep.subr.mxu0 0.0
    %206 = vmatpush2.msra.mxu0 0.0
    %207 = vmatprep.subr.mxu0 0.0
    %208 = vmatpush2.msra.mxu0 0.0
    %209 = vmatprep.subr.mxu0 0.0
    %210 = vmatpush2.msra.mxu0 0.0
    %211 = vmatprep.subr.mxu0 0.0
    %212 = vmatpush2.msra.mxu0 0.0
    %213 = vmatprep.subr.mxu0 0.0
    %214 = vmatpush2.msra.mxu0 0.0
    %215 = vmatprep.subr.mxu0 0.0
    %216 = vmatpush2.msra.mxu0 0.0
    %217 = vmatprep.subr.mxu0 0.0
    %218 = vmatpush2.msra.mxu0 0.0
    %219 = vmatprep.subr.mxu0 0.0
    %220 = vmatpush2.msra.mxu0 0.0
    %221 = vmatprep.subr.mxu0 0.0
    %222 = vmatpush2.msra.mxu0 0.0
    %223 = vmatprep.subr.mxu0 0.0
    %224 = vmatpush2.msra.mxu0 0.0
    %225 = vmatprep.mubr.f32.mxu0 0.0
    %226 = vmatmul.mubr.f32.gmra.mxu0 %v155
    %v227 = vpop.f32.mrf.mxu0
    %v228 = vadd.f32 %v150, %v227
    %v229 = vpop.f32.mrf.mxu0
    %v230 = vadd.f32 %v152, %v229
    %231 = vdwg.mxu0
    %v232 = vld [vmem:[#allocation2] sm:$0xff]
    %v233 = vld [vmem:[#allocation2 + $0x8] sm:$0xf]
    %s234 = scalar_lea.vmem %s1, 48
    %v235 = vld [vmem:[%s234] sm:$0xff]
    %v238 = vcombine.high %v232, %v232
    %239 = vrot.lane.b32.xlu0 %v232, 96
    %v240 = vpop.permute.xlu0 %239
    %241 = vrot.lane.b32.xlu0 %v238, 96
    %v242 = vpop.permute.xlu0 %241
    %243 = vrot.lane.b32.xlu0 %v233, 96
    %v244 = vpop.permute.xlu0 %243
    %vm245 = vcmask 785408
    %v246 = vsel %vm245, %v240, %v242
    %v247 = vsel %vm245, %v242, %v244
    %v249 = vsel %vm74, %v235, 0
    %v251 = vsel %vm78, %v246, 0
    %v253 = vsel %vm78, %v247, 0
    %255 = vmatprep.subr.mxu0 0.0
    %256 = vmatpush1.msra.mxu0 0.0
    %257 = vmatprep.subr.mxu0 0.0
    %258 = vmatpush1.msra.mxu0 0.0
    %259 = vmatprep.subr.mxu0 0.0
    %260 = vmatpush1.msra.mxu0 0.0
    %261 = vmatprep.subr.mxu0 0.0
    %262 = vmatpush1.msra.mxu0 0.0
    %263 = vmatprep.subr.mxu0 0.0
    %264 = vmatpush1.msra.mxu0 0.0
    %265 = vmatprep.subr.mxu0 0.0
    %266 = vmatpush1.msra.mxu0 0.0
    %267 = vmatprep.subr.mxu0 0.0
    %268 = vmatpush1.msra.mxu0 0.0
    %269 = vmatprep.subr.mxu0 0.0
    %270 = vmatpush1.msra.mxu0 0.0
    %271 = vmatprep.subr.mxu0 0.0
    %272 = vmatpush1.msra.mxu0 0.0
    %273 = vmatprep.subr.mxu0 0.0
    %274 = vmatpush1.msra.mxu0 0.0
    %275 = vmatprep.subr.mxu0 0.0
    %276 = vmatpush1.msra.mxu0 0.0
    %277 = vmatprep.subr.mxu0 0.0
    %278 = vmatpush1.msra.mxu0 0.0
    %279 = vmatprep.subr.mxu0 0.0
    %280 = vmatpush1.msra.mxu0 0.0
    %281 = vmatprep.subr.mxu0 0.0
    %282 = vmatpush1.msra.mxu0 0.0
    %283 = vmatprep.subr.mxu0 0.0
    %284 = vmatpush1.msra.mxu0 0.0
    %285 = vmatprep.subr.mxu0 %v253
    %286 = vmatpush1.msra.mxu0 %v251
    %287 = vmatprep.subr.mxu0 0.0
    %288 = vmatpush2.msra.mxu0 0.0
    %289 = vmatprep.subr.mxu0 0.0
    %290 = vmatpush2.msra.mxu0 0.0
    %291 = vmatprep.subr.mxu0 0.0
    %292 = vmatpush2.msra.mxu0 0.0
    %293 = vmatprep.subr.mxu0 0.0
    %294 = vmatpush2.msra.mxu0 0.0
    %295 = vmatprep.subr.mxu0 0.0
    %296 = vmatpush2.msra.mxu0 0.0
    %297 = vmatprep.subr.mxu0 0.0
    %298 = vmatpush2.msra.mxu0 0.0
    %299 = vmatprep.subr.mxu0 0.0
    %300 = vmatpush2.msra.mxu0 0.0
    %301 = vmatprep.subr.mxu0 0.0
    %302 = vmatpush2.msra.mxu0 0.0
    %303 = vmatprep.subr.mxu0 0.0
    %304 = vmatpush2.msra.mxu0 0.0
    %305 = vmatprep.subr.mxu0 0.0
    %306 = vmatpush2.msra.mxu0 0.0
    %307 = vmatprep.subr.mxu0 0.0
    %308 = vmatpush2.msra.mxu0 0.0
    %309 = vmatprep.subr.mxu0 0.0
    %310 = vmatpush2.msra.mxu0 0.0
    %311 = vmatprep.subr.mxu0 0.0
    %312 = vmatpush2.msra.mxu0 0.0
    %313 = vmatprep.subr.mxu0 0.0
    %314 = vmatpush2.msra.mxu0 0.0
    %315 = vmatprep.subr.mxu0 0.0
    %316 = vmatpush2.msra.mxu0 0.0
    %317 = vmatprep.subr.mxu0 0.0
    %318 = vmatpush2.msra.mxu0 0.0
    %319 = vmatprep.mubr.f32.mxu0 0.0
    %320 = vmatmul.mubr.f32.gmra.mxu0 %v249
    %v321 = vpop.f32.mrf.mxu0
    %v322 = vadd.f32 0.0, %v321
    %v323 = vpop.f32.mrf.mxu0
    %v324 = vadd.f32 0.0, %v323
    %325 = vdwg.mxu0
    %v326 = vadd.f32 %v228, %v322
    %v327 = vadd.f32 %v230, %v324
    %v329 = vlaneseq
    %v330 = vshrl.u32 %v329, 7
    %v331 = vsub.s32 0, %v330
    %v332 = vrot.slane %v38, %v331
    %v333 = vlaneseq
    %v334 = vshrl.u32 %v333, 7
    %v335 = vsub.s32 1, %v334
    %v336 = vrot.slane %v38, %v335
    %v339 = vmul.f32 %v326, %v332
    %v340 = vmul.f32 %v327, %v336
    %v341 = vld [vmem:[#allocation2] sm:$0xff]
    %v342 = vld [vmem:[#allocation2 + $0x8] sm:$0xf]
    %s343 = scalar_lea.vmem %s1, 8
    %v344 = vld [vmem:[%s343] sm:$0xff]
    %s345 = scalar_lea.vmem %s1, 32
    %v346 = vld [vmem:[%s345] sm:$0xff]
    %v349 = vcombine.high %v341, %v341
    %350 = vrot.lane.b32.xlu0 %v341, 111
    %v351 = vpop.permute.xlu0 %350
    %352 = vrot.lane.b32.xlu0 %v349, 111
    %v353 = vpop.permute.xlu0 %352
    %354 = vrot.lane.b32.xlu0 %v342, 111
    %v355 = vpop.permute.xlu0 %354
    %vm356 = vcmask 908288
    %v357 = vsel %vm356, %v351, %v353
    %v358 = vsel %vm356, %v353, %v355
    %v360 = vsel %vm74, %v346, 0
    %v362 = vsel %vm78, %v357, 0
    %v364 = vsel %vm78, %v358, 0
    %366 = vmatprep.subr.mxu0 0.0
    %367 = vmatpush1.msra.mxu0 0.0
    %368 = vmatprep.subr.mxu0 0.0
    %369 = vmatpush1.msra.mxu0 0.0
    %370 = vmatprep.subr.mxu0 0.0
    %371 = vmatpush1.msra.mxu0 0.0
    %372 = vmatprep.subr.mxu0 0.0
    %373 = vmatpush1.msra.mxu0 0.0
    %374 = vmatprep.subr.mxu0 0.0
    %375 = vmatpush1.msra.mxu0 0.0
    %376 = vmatprep.subr.mxu0 0.0
    %377 = vmatpush1.msra.mxu0 0.0
    %378 = vmatprep.subr.mxu0 0.0
    %379 = vmatpush1.msra.mxu0 0.0
    %380 = vmatprep.subr.mxu0 0.0
    %381 = vmatpush1.msra.mxu0 0.0
    %382 = vmatprep.subr.mxu0 0.0
    %383 = vmatpush1.msra.mxu0 0.0
    %384 = vmatprep.subr.mxu0 0.0
    %385 = vmatpush1.msra.mxu0 0.0
    %386 = vmatprep.subr.mxu0 0.0
    %387 = vmatpush1.msra.mxu0 0.0
    %388 = vmatprep.subr.mxu0 0.0
    %389 = vmatpush1.msra.mxu0 0.0
    %390 = vmatprep.subr.mxu0 0.0
    %391 = vmatpush1.msra.mxu0 0.0
    %392 = vmatprep.subr.mxu0 0.0
    %393 = vmatpush1.msra.mxu0 0.0
    %394 = vmatprep.subr.mxu0 0.0
    %395 = vmatpush1.msra.mxu0 0.0
    %396 = vmatprep.subr.mxu0 %v364
    %397 = vmatpush1.msra.mxu0 %v362
    %398 = vmatprep.subr.mxu0 0.0
    %399 = vmatpush2.msra.mxu0 0.0
    %400 = vmatprep.subr.mxu0 0.0
    %401 = vmatpush2.msra.mxu0 0.0
    %402 = vmatprep.subr.mxu0 0.0
    %403 = vmatpush2.msra.mxu0 0.0
    %404 = vmatprep.subr.mxu0 0.0
    %405 = vmatpush2.msra.mxu0 0.0
    %406 = vmatprep.subr.mxu0 0.0
    %407 = vmatpush2.msra.mxu0 0.0
    %408 = vmatprep.subr.mxu0 0.0
    %409 = vmatpush2.msra.mxu0 0.0
    %410 = vmatprep.subr.mxu0 0.0
    %411 = vmatpush2.msra.mxu0 0.0
    %412 = vmatprep.subr.mxu0 0.0
    %413 = vmatpush2.msra.mxu0 0.0
    %414 = vmatprep.subr.mxu0 0.0
    %415 = vmatpush2.msra.mxu0 0.0
    %416 = vmatprep.subr.mxu0 0.0
    %417 = vmatpush2.msra.mxu0 0.0
    %418 = vmatprep.subr.mxu0 0.0
    %419 = vmatpush2.msra.mxu0 0.0
    %420 = vmatprep.subr.mxu0 0.0
    %421 = vmatpush2.msra.mxu0 0.0
    %422 = vmatprep.subr.mxu0 0.0
    %423 = vmatpush2.msra.mxu0 0.0
    %424 = vmatprep.subr.mxu0 0.0
    %425 = vmatpush2.msra.mxu0 0.0
    %426 = vmatprep.subr.mxu0 0.0
    %427 = vmatpush2.msra.mxu0 0.0
    %428 = vmatprep.subr.mxu0 0.0
    %429 = vmatpush2.msra.mxu0 0.0
    %430 = vmatprep.mubr.f32.mxu0 0.0
    %431 = vmatmul.mubr.f32.gmra.mxu0 %v360
    %v432 = vpop.f32.mrf.mxu0
    %v433 = vadd.f32 0.0, %v432
    %v434 = vpop.f32.mrf.mxu0
    %v435 = vadd.f32 0.0, %v434
    %436 = vdwg.mxu0
    %437 = vrot.lane.b32.xlu0 %v341, 127
    %v438 = vpop.permute.xlu0 %437
    %439 = vrot.lane.b32.xlu0 %v349, 127
    %v440 = vpop.permute.xlu0 %439
    %441 = vrot.lane.b32.xlu0 %v342, 127
    %v442 = vpop.permute.xlu0 %441
    %vm443 = vcmask 1039360
    %v444 = vsel %vm443, %v438, %v440
    %v445 = vsel %vm443, %v440, %v442
    %v447 = vsel %vm74, %v344, 0
    %v449 = vsel %vm78, %v444, 0
    %v451 = vsel %vm78, %v445, 0
    %453 = vmatprep.subr.mxu0 0.0
    %454 = vmatpush1.msra.mxu0 0.0
    %455 = vmatprep.subr.mxu0 0.0
    %456 = vmatpush1.msra.mxu0 0.0
    %457 = vmatprep.subr.mxu0 0.0
    %458 = vmatpush1.msra.mxu0 0.0
    %459 = vmatprep.subr.mxu0 0.0
    %460 = vmatpush1.msra.mxu0 0.0
    %461 = vmatprep.subr.mxu0 0.0
    %462 = vmatpush1.msra.mxu0 0.0
    %463 = vmatprep.subr.mxu0 0.0
    %464 = vmatpush1.msra.mxu0 0.0
    %465 = vmatprep.subr.mxu0 0.0
    %466 = vmatpush1.msra.mxu0 0.0
    %467 = vmatprep.subr.mxu0 0.0
    %468 = vmatpush1.msra.mxu0 0.0
    %469 = vmatprep.subr.mxu0 0.0
    %470 = vmatpush1.msra.mxu0 0.0
    %471 = vmatprep.subr.mxu0 0.0
    %472 = vmatpush1.msra.mxu0 0.0
    %473 = vmatprep.subr.mxu0 0.0
    %474 = vmatpush1.msra.mxu0 0.0
    %475 = vmatprep.subr.mxu0 0.0
    %476 = vmatpush1.msra.mxu0 0.0
    %477 = vmatprep.subr.mxu0 0.0
    %478 = vmatpush1.msra.mxu0 0.0
    %479 = vmatprep.subr.mxu0 0.0
    %480 = vmatpush1.msra.mxu0 0.0
    %481 = vmatprep.subr.mxu0 0.0
    %482 = vmatpush1.msra.mxu0 0.0
    %483 = vmatprep.subr.mxu0 %v451
    %484 = vmatpush1.msra.mxu0 %v449
    %485 = vmatprep.subr.mxu0 0.0
    %486 = vmatpush2.msra.mxu0 0.0
    %487 = vmatprep.subr.mxu0 0.0
    %488 = vmatpush2.msra.mxu0 0.0
    %489 = vmatprep.subr.mxu0 0.0
    %490 = vmatpush2.msra.mxu0 0.0
    %491 = vmatprep.subr.mxu0 0.0
    %492 = vmatpush2.msra.mxu0 0.0
    %493 = vmatprep.subr.mxu0 0.0
    %494 = vmatpush2.msra.mxu0 0.0
    %495 = vmatprep.subr.mxu0 0.0
    %496 = vmatpush2.msra.mxu0 0.0
    %497 = vmatprep.subr.mxu0 0.0
    %498 = vmatpush2.msra.mxu0 0.0
    %499 = vmatprep.subr.mxu0 0.0
    %500 = vmatpush2.msra.mxu0 0.0
    %501 = vmatprep.subr.mxu0 0.0
    %502 = vmatpush2.msra.mxu0 0.0
    %503 = vmatprep.subr.mxu0 0.0
    %504 = vmatpush2.msra.mxu0 0.0
    %505 = vmatprep.subr.mxu0 0.0
    %506 = vmatpush2.msra.mxu0 0.0
    %507 = vmatprep.subr.mxu0 0.0
    %508 = vmatpush2.msra.mxu0 0.0
    %509 = vmatprep.subr.mxu0 0.0
    %510 = vmatpush2.msra.mxu0 0.0
    %511 = vmatprep.subr.mxu0 0.0
    %512 = vmatpush2.msra.mxu0 0.0
    %513 = vmatprep.subr.mxu0 0.0
    %514 = vmatpush2.msra.mxu0 0.0
    %515 = vmatprep.subr.mxu0 0.0
    %516 = vmatpush2.msra.mxu0 0.0
    %517 = vmatprep.mubr.f32.mxu0 0.0
    %518 = vmatmul.mubr.f32.gmra.mxu0 %v447
    %v519 = vpop.f32.mrf.mxu0
    %v520 = vadd.f32 %v433, %v519
    %v521 = vpop.f32.mrf.mxu0
    %v522 = vadd.f32 %v435, %v521
    %523 = vdwg.mxu0
    %v524 = vld [vmem:[#allocation2] sm:$0xff]
    %v525 = vld [vmem:[#allocation2 + $0x8] sm:$0xf]
    %s526 = scalar_lea.vmem %s1, 56
    %v527 = vld [vmem:[%s526] sm:$0xff]
    %v530 = vcombine.high %v524, %v524
    %531 = vrot.lane.b32.xlu0 %v524, 95
    %v532 = vpop.permute.xlu0 %531
    %533 = vrot.lane.b32.xlu0 %v530, 95
    %v534 = vpop.permute.xlu0 %533
    %535 = vrot.lane.b32.xlu0 %v525, 95
    %v536 = vpop.permute.xlu0 %535
    %vm537 = vcmask 777216
    %v538 = vsel %vm537, %v532, %v534
    %v539 = vsel %vm537, %v534, %v536
    %v541 = vsel %vm74, %v527, 0
    %v543 = vsel %vm78, %v538, 0
    %v545 = vsel %vm78, %v539, 0
    %547 = vmatprep.subr.mxu0 0.0
    %548 = vmatpush1.msra.mxu0 0.0
    %549 = vmatprep.subr.mxu0 0.0
    %550 = vmatpush1.msra.mxu0 0.0
    %551 = vmatprep.subr.mxu0 0.0
    %552 = vmatpush1.msra.mxu0 0.0
    %553 = vmatprep.subr.mxu0 0.0
    %554 = vmatpush1.msra.mxu0 0.0
    %555 = vmatprep.subr.mxu0 0.0
    %556 = vmatpush1.msra.mxu0 0.0
    %557 = vmatprep.subr.mxu0 0.0
    %558 = vmatpush1.msra.mxu0 0.0
    %559 = vmatprep.subr.mxu0 0.0
    %560 = vmatpush1.msra.mxu0 0.0
    %561 = vmatprep.subr.mxu0 0.0
    %562 = vmatpush1.msra.mxu0 0.0
    %563 = vmatprep.subr.mxu0 0.0
    %564 = vmatpush1.msra.mxu0 0.0
    %565 = vmatprep.subr.mxu0 0.0
    %566 = vmatpush1.msra.mxu0 0.0
    %567 = vmatprep.subr.mxu0 0.0
    %568 = vmatpush1.msra.mxu0 0.0
    %569 = vmatprep.subr.mxu0 0.0
    %570 = vmatpush1.msra.mxu0 0.0
    %571 = vmatprep.subr.mxu0 0.0
    %572 = vmatpush1.msra.mxu0 0.0
    %573 = vmatprep.subr.mxu0 0.0
    %574 = vmatpush1.msra.mxu0 0.0
    %575 = vmatprep.subr.mxu0 0.0
    %576 = vmatpush1.msra.mxu0 0.0
    %577 = vmatprep.subr.mxu0 %v545
    %578 = vmatpush1.msra.mxu0 %v543
    %579 = vmatprep.subr.mxu0 0.0
    %580 = vmatpush2.msra.mxu0 0.0
    %581 = vmatprep.subr.mxu0 0.0
    %582 = vmatpush2.msra.mxu0 0.0
    %583 = vmatprep.subr.mxu0 0.0
    %584 = vmatpush2.msra.mxu0 0.0
    %585 = vmatprep.subr.mxu0 0.0
    %586 = vmatpush2.msra.mxu0 0.0
    %587 = vmatprep.subr.mxu0 0.0
    %588 = vmatpush2.msra.mxu0 0.0
    %589 = vmatprep.subr.mxu0 0.0
    %590 = vmatpush2.msra.mxu0 0.0
    %591 = vmatprep.subr.mxu0 0.0
    %592 = vmatpush2.msra.mxu0 0.0
    %593 = vmatprep.subr.mxu0 0.0
    %594 = vmatpush2.msra.mxu0 0.0
    %595 = vmatprep.subr.mxu0 0.0
    %596 = vmatpush2.msra.mxu0 0.0
    %597 = vmatprep.subr.mxu0 0.0
    %598 = vmatpush2.msra.mxu0 0.0
    %599 = vmatprep.subr.mxu0 0.0
    %600 = vmatpush2.msra.mxu0 0.0
    %601 = vmatprep.subr.mxu0 0.0
    %602 = vmatpush2.msra.mxu0 0.0
    %603 = vmatprep.subr.mxu0 0.0
    %604 = vmatpush2.msra.mxu0 0.0
    %605 = vmatprep.subr.mxu0 0.0
    %606 = vmatpush2.msra.mxu0 0.0
    %607 = vmatprep.subr.mxu0 0.0
    %608 = vmatpush2.msra.mxu0 0.0
    %609 = vmatprep.subr.mxu0 0.0
    %610 = vmatpush2.msra.mxu0 0.0
    %611 = vmatprep.mubr.f32.mxu0 0.0
    %612 = vmatmul.mubr.f32.gmra.mxu0 %v541
    %v613 = vpop.f32.mrf.mxu0
    %v614 = vadd.f32 0.0, %v613
    %v615 = vpop.f32.mrf.mxu0
    %v616 = vadd.f32 0.0, %v615
    %617 = vdwg.mxu0
    %v618 = vadd.f32 %v520, %v614
    %v619 = vadd.f32 %v522, %v616
    %v620 = vadd.f32 %v339, %v618
    %v621 = vadd.f32 %v340, %v619
    %v622 = vld [vmem:[#allocation2] sm:$0xff]
    %v623 = vld [vmem:[#allocation2 + $0x8] sm:$0xf]
    %s624 = scalar_lea.vmem %s1, 16
    %v625 = vld [vmem:[%s624] sm:$0xff]
    %s626 = scalar_lea.vmem %s1, 40
    %v627 = vld [vmem:[%s626] sm:$0xff]
    %v630 = vcombine.high %v622, %v622
    %631 = vrot.lane.b32.xlu0 %v622, 110
    %v632 = vpop.permute.xlu0 %631
    %633 = vrot.lane.b32.xlu0 %v630, 110
    %v634 = vpop.permute.xlu0 %633
    %635 = vrot.lane.b32.xlu0 %v623, 110
    %v636 = vpop.permute.xlu0 %635
    %vm637 = vcmask 900096
    %v638 = vsel %vm637, %v632, %v634
    %v639 = vsel %vm637, %v634, %v636
    %v641 = vsel %vm74, %v627, 0
    %v643 = vsel %vm78, %v638, 0
    %v645 = vsel %vm78, %v639, 0
    %647 = vmatprep.subr.mxu0 0.0
    %648 = vmatpush1.msra.mxu0 0.0
    %649 = vmatprep.subr.mxu0 0.0
    %650 = vmatpush1.msra.mxu0 0.0
    %651 = vmatprep.subr.mxu0 0.0
    %652 = vmatpush1.msra.mxu0 0.0
    %653 = vmatprep.subr.mxu0 0.0
    %654 = vmatpush1.msra.mxu0 0.0
    %655 = vmatprep.subr.mxu0 0.0
    %656 = vmatpush1.msra.mxu0 0.0
    %657 = vmatprep.subr.mxu0 0.0
    %658 = vmatpush1.msra.mxu0 0.0
    %659 = vmatprep.subr.mxu0 0.0
    %660 = vmatpush1.msra.mxu0 0.0
    %661 = vmatprep.subr.mxu0 0.0
    %662 = vmatpush1.msra.mxu0 0.0
    %663 = vmatprep.subr.mxu0 0.0
    %664 = vmatpush1.msra.mxu0 0.0
    %665 = vmatprep.subr.mxu0 0.0
    %666 = vmatpush1.msra.mxu0 0.0
    %667 = vmatprep.subr.mxu0 0.0
    %668 = vmatpush1.msra.mxu0 0.0
    %669 = vmatprep.subr.mxu0 0.0
    %670 = vmatpush1.msra.mxu0 0.0
    %671 = vmatprep.subr.mxu0 0.0
    %672 = vmatpush1.msra.mxu0 0.0
    %673 = vmatprep.subr.mxu0 0.0
    %674 = vmatpush1.msra.mxu0 0.0
    %675 = vmatprep.subr.mxu0 0.0
    %676 = vmatpush1.msra.mxu0 0.0
    %677 = vmatprep.subr.mxu0 %v645
    %678 = vmatpush1.msra.mxu0 %v643
    %679 = vmatprep.subr.mxu0 0.0
    %680 = vmatpush2.msra.mxu0 0.0
    %681 = vmatprep.subr.mxu0 0.0
    %682 = vmatpush2.msra.mxu0 0.0
    %683 = vmatprep.subr.mxu0 0.0
    %684 = vmatpush2.msra.mxu0 0.0
    %685 = vmatprep.subr.mxu0 0.0
    %686 = vmatpush2.msra.mxu0 0.0
    %687 = vmatprep.subr.mxu0 0.0
    %688 = vmatpush2.msra.mxu0 0.0
    %689 = vmatprep.subr.mxu0 0.0
    %690 = vmatpush2.msra.mxu0 0.0
    %691 = vmatprep.subr.mxu0 0.0
    %692 = vmatpush2.msra.mxu0 0.0
    %693 = vmatprep.subr.mxu0 0.0
    %694 = vmatpush2.msra.mxu0 0.0
    %695 = vmatprep.subr.mxu0 0.0
    %696 = vmatpush2.msra.mxu0 0.0
    %697 = vmatprep.subr.mxu0 0.0
    %698 = vmatpush2.msra.mxu0 0.0
    %699 = vmatprep.subr.mxu0 0.0
    %700 = vmatpush2.msra.mxu0 0.0
    %701 = vmatprep.subr.mxu0 0.0
    %702 = vmatpush2.msra.mxu0 0.0
    %703 = vmatprep.subr.mxu0 0.0
    %704 = vmatpush2.msra.mxu0 0.0
    %705 = vmatprep.subr.mxu0 0.0
    %706 = vmatpush2.msra.mxu0 0.0
    %707 = vmatprep.subr.mxu0 0.0
    %708 = vmatpush2.msra.mxu0 0.0
    %709 = vmatprep.subr.mxu0 0.0
    %710 = vmatpush2.msra.mxu0 0.0
    %711 = vmatprep.mubr.f32.mxu0 0.0
    %712 = vmatmul.mubr.f32.gmra.mxu0 %v641
    %v713 = vpop.f32.mrf.mxu0
    %v714 = vadd.f32 0.0, %v713
    %v715 = vpop.f32.mrf.mxu0
    %v716 = vadd.f32 0.0, %v715
    %717 = vdwg.mxu0
    %718 = vrot.lane.b32.xlu0 %v622, 126
    %v719 = vpop.permute.xlu0 %718
    %720 = vrot.lane.b32.xlu0 %v630, 126
    %v721 = vpop.permute.xlu0 %720
    %722 = vrot.lane.b32.xlu0 %v623, 126
    %v723 = vpop.permute.xlu0 %722
    %vm724 = vcmask 1031168
    %v725 = vsel %vm724, %v719, %v721
    %v726 = vsel %vm724, %v721, %v723
    %v728 = vsel %vm74, %v625, 0
    %v730 = vsel %vm78, %v725, 0
    %v732 = vsel %vm78, %v726, 0
    %734 = vmatprep.subr.mxu0 0.0
    %735 = vmatpush1.msra.mxu0 0.0
    %736 = vmatprep.subr.mxu0 0.0
    %737 = vmatpush1.msra.mxu0 0.0
    %738 = vmatprep.subr.mxu0 0.0
    %739 = vmatpush1.msra.mxu0 0.0
    %740 = vmatprep.subr.mxu0 0.0
    %741 = vmatpush1.msra.mxu0 0.0
    %742 = vmatprep.subr.mxu0 0.0
    %743 = vmatpush1.msra.mxu0 0.0
    %744 = vmatprep.subr.mxu0 0.0
    %745 = vmatpush1.msra.mxu0 0.0
    %746 = vmatprep.subr.mxu0 0.0
    %747 = vmatpush1.msra.mxu0 0.0
    %748 = vmatprep.subr.mxu0 0.0
    %749 = vmatpush1.msra.mxu0 0.0
    %750 = vmatprep.subr.mxu0 0.0
    %751 = vmatpush1.msra.mxu0 0.0
    %752 = vmatprep.subr.mxu0 0.0
    %753 = vmatpush1.msra.mxu0 0.0
    %754 = vmatprep.subr.mxu0 0.0
    %755 = vmatpush1.msra.mxu0 0.0
    %756 = vmatprep.subr.mxu0 0.0
    %757 = vmatpush1.msra.mxu0 0.0
    %758 = vmatprep.subr.mxu0 0.0
    %759 = vmatpush1.msra.mxu0 0.0
    %760 = vmatprep.subr.mxu0 0.0
    %761 = vmatpush1.msra.mxu0 0.0
    %762 = vmatprep.subr.mxu0 0.0
    %763 = vmatpush1.msra.mxu0 0.0
    %764 = vmatprep.subr.mxu0 %v732
    %765 = vmatpush1.msra.mxu0 %v730
    %766 = vmatprep.subr.mxu0 0.0
    %767 = vmatpush2.msra.mxu0 0.0
    %768 = vmatprep.subr.mxu0 0.0
    %769 = vmatpush2.msra.mxu0 0.0
    %770 = vmatprep.subr.mxu0 0.0
    %771 = vmatpush2.msra.mxu0 0.0
    %772 = vmatprep.subr.mxu0 0.0
    %773 = vmatpush2.msra.mxu0 0.0
    %774 = vmatprep.subr.mxu0 0.0
    %775 = vmatpush2.msra.mxu0 0.0
    %776 = vmatprep.subr.mxu0 0.0
    %777 = vmatpush2.msra.mxu0 0.0
    %778 = vmatprep.subr.mxu0 0.0
    %779 = vmatpush2.msra.mxu0 0.0
    %780 = vmatprep.subr.mxu0 0.0
    %781 = vmatpush2.msra.mxu0 0.0
    %782 = vmatprep.subr.mxu0 0.0
    %783 = vmatpush2.msra.mxu0 0.0
    %784 = vmatprep.subr.mxu0 0.0
    %785 = vmatpush2.msra.mxu0 0.0
    %786 = vmatprep.subr.mxu0 0.0
    %787 = vmatpush2.msra.mxu0 0.0
    %788 = vmatprep.subr.mxu0 0.0
    %789 = vmatpush2.msra.mxu0 0.0
    %790 = vmatprep.subr.mxu0 0.0
    %791 = vmatpush2.msra.mxu0 0.0
    %792 = vmatprep.subr.mxu0 0.0
    %793 = vmatpush2.msra.mxu0 0.0
    %794 = vmatprep.subr.mxu0 0.0
    %795 = vmatpush2.msra.mxu0 0.0
    %796 = vmatprep.subr.mxu0 0.0
    %797 = vmatpush2.msra.mxu0 0.0
    %798 = vmatprep.mubr.f32.mxu0 0.0
    %799 = vmatmul.mubr.f32.gmra.mxu0 %v728
    %v800 = vpop.f32.mrf.mxu0
    %v801 = vadd.f32 %v714, %v800
    %v802 = vpop.f32.mrf.mxu0
    %v803 = vadd.f32 %v716, %v802
    %804 = vdwg.mxu0
    %v805 = vld [vmem:[#allocation2] sm:$0xff]
    %v806 = vld [vmem:[#allocation2 + $0x8] sm:$0xf]
    %s807 = scalar_lea.vmem %s1, 64
    %v808 = vld [vmem:[%s807] sm:$0xff]
    %v811 = vcombine.high %v805, %v805
    %812 = vrot.lane.b32.xlu0 %v805, 94
    %v813 = vpop.permute.xlu0 %812
    %814 = vrot.lane.b32.xlu0 %v811, 94
    %v815 = vpop.permute.xlu0 %814
    %816 = vrot.lane.b32.xlu0 %v806, 94
    %v817 = vpop.permute.xlu0 %816
    %vm818 = vcmask 769024
    %v819 = vsel %vm818, %v813, %v815
    %v820 = vsel %vm818, %v815, %v817
    %v822 = vsel %vm74, %v808, 0
    %v824 = vsel %vm78, %v819, 0
    %v826 = vsel %vm78, %v820, 0
    %828 = vmatprep.subr.mxu0 0.0
    %829 = vmatpush1.msra.mxu0 0.0
    %830 = vmatprep.subr.mxu0 0.0
    %831 = vmatpush1.msra.mxu0 0.0
    %832 = vmatprep.subr.mxu0 0.0
    %833 = vmatpush1.msra.mxu0 0.0
    %834 = vmatprep.subr.mxu0 0.0
    %835 = vmatpush1.msra.mxu0 0.0
    %836 = vmatprep.subr.mxu0 0.0
    %837 = vmatpush1.msra.mxu0 0.0
    %838 = vmatprep.subr.mxu0 0.0
    %839 = vmatpush1.msra.mxu0 0.0
    %840 = vmatprep.subr.mxu0 0.0
    %841 = vmatpush1.msra.mxu0 0.0
    %842 = vmatprep.subr.mxu0 0.0
    %843 = vmatpush1.msra.mxu0 0.0
    %844 = vmatprep.subr.mxu0 0.0
    %845 = vmatpush1.msra.mxu0 0.0
    %846 = vmatprep.subr.mxu0 0.0
    %847 = vmatpush1.msra.mxu0 0.0
    %848 = vmatprep.subr.mxu0 0.0
    %849 = vmatpush1.msra.mxu0 0.0
    %850 = vmatprep.subr.mxu0 0.0
    %851 = vmatpush1.msra.mxu0 0.0
    %852 = vmatprep.subr.mxu0 0.0
    %853 = vmatpush1.msra.mxu0 0.0
    %854 = vmatprep.subr.mxu0 0.0
    %855 = vmatpush1.msra.mxu0 0.0
    %856 = vmatprep.subr.mxu0 0.0
    %857 = vmatpush1.msra.mxu0 0.0
    %858 = vmatprep.subr.mxu0 %v826
    %859 = vmatpush1.msra.mxu0 %v824
    %860 = vmatprep.subr.mxu0 0.0
    %861 = vmatpush2.msra.mxu0 0.0
    %862 = vmatprep.subr.mxu0 0.0
    %863 = vmatpush2.msra.mxu0 0.0
    %864 = vmatprep.subr.mxu0 0.0
    %865 = vmatpush2.msra.mxu0 0.0
    %866 = vmatprep.subr.mxu0 0.0
    %867 = vmatpush2.msra.mxu0 0.0
    %868 = vmatprep.subr.mxu0 0.0
    %869 = vmatpush2.msra.mxu0 0.0
    %870 = vmatprep.subr.mxu0 0.0
    %871 = vmatpush2.msra.mxu0 0.0
    %872 = vmatprep.subr.mxu0 0.0
    %873 = vmatpush2.msra.mxu0 0.0
    %874 = vmatprep.subr.mxu0 0.0
    %875 = vmatpush2.msra.mxu0 0.0
    %876 = vmatprep.subr.mxu0 0.0
    %877 = vmatpush2.msra.mxu0 0.0
    %878 = vmatprep.subr.mxu0 0.0
    %879 = vmatpush2.msra.mxu0 0.0
    %880 = vmatprep.subr.mxu0 0.0
    %881 = vmatpush2.msra.mxu0 0.0
    %882 = vmatprep.subr.mxu0 0.0
    %883 = vmatpush2.msra.mxu0 0.0
    %884 = vmatprep.subr.mxu0 0.0
    %885 = vmatpush2.msra.mxu0 0.0
    %886 = vmatprep.subr.mxu0 0.0
    %887 = vmatpush2.msra.mxu0 0.0
    %888 = vmatprep.subr.mxu0 0.0
    %889 = vmatpush2.msra.mxu0 0.0
    %890 = vmatprep.subr.mxu0 0.0
    %891 = vmatpush2.msra.mxu0 0.0
    %892 = vmatprep.mubr.f32.mxu0 0.0
    %893 = vmatmul.mubr.f32.gmra.mxu0 %v822
    %v894 = vpop.f32.mrf.mxu0
    %v895 = vadd.f32 0.0, %v894
    %v896 = vpop.f32.mrf.mxu0
    %v897 = vadd.f32 0.0, %v896
    %898 = vdwg.mxu0
    %v899 = vadd.f32 %v801, %v895
    %v900 = vadd.f32 %v803, %v897
    %v902 = vlaneseq
    %v903 = vshrl.u32 %v902, 7
    %v904 = vsub.s32 0, %v903
    %v905 = vrot.slane %v40, %v904
    %v906 = vlaneseq
    %v907 = vshrl.u32 %v906, 7
    %v908 = vsub.s32 1, %v907
    %v909 = vrot.slane %v40, %v908
    %v912 = vmul.f32 %v899, %v905
    %v913 = vmul.f32 %v900, %v909
    %v914 = vadd.f32 %v620, %v912
    %v915 = vadd.f32 %v621, %v913
    %v916 = vld [vmem:[%s2] sm:$0xff]
    %918 = vset.pattern.permute.xlu0 0
    %919 = vperm.xlu0 %918, %v916
    %v920 = vpop.permute.xlu0 %919
    %v922 = vadd.f32 %v914, %v920
    %v923 = vadd.f32 %v915, %v920
    %v924 = vmax.f32 %v922, 0.0
    %v925 = vmax.f32 %v923, 0.0
    %928 = vrot.lane.b32.xlu0 %v924, 17
    %v929 = vpop.permute.xlu0 %928
    %930 = vrot.lane.b32.xlu0 %v925, 17
    %v931 = vpop.permute.xlu0 %930
    %v932 = vsel %vm34, %v929, %v931
    %vm936 = vcmask 1047688
    %937 = vst.msk [vmem:[#allocation3] sm:$0xff] %vm936, %v929
    %938 = vst [vmem:[#allocation3 + $0x8] sm:$0xff] %v932
    %939 = vst.msk [vmem:[#allocation3 + $0x10] sm:$0xff] %vm34, %v931
    %v940 = vld [vmem:[#allocation3] sm:$0xff]
    %v941 = vld [vmem:[#allocation3 + $0x8] sm:$0xff]
    %v942 = vld [vmem:[%s3] sm:$0xff]
    %v943 = vld [vmem:[#allocation3 + $0x10] sm:$0xff]
    %s944 = scalar_lea.vmem %s3, 24
    %v945 = vld [vmem:[%s944] sm:$0xff]
    %949 = vrot.lane.b32.xlu0 %v940, 112
    %v950 = vpop.permute.xlu0 %949
    %951 = vrot.lane.b32.xlu0 %v941, 112
    %v952 = vpop.permute.xlu0 %951
    %953 = vrot.lane.b32.xlu0 %v943, 112
    %v954 = vpop.permute.xlu0 %953
    %v955 = vsel %vm71, %v950, %v952
    %v956 = vsel %vm71, %v952, %v954
    %vm959 = vcmask 64512
    %v961 = vsel %vm959, %v945, 0
    %963 = vmatprep.subr.mxu0 0.0
    %964 = vmatpush1.msra.mxu0 0.0
    %965 = vmatprep.subr.mxu0 0.0
    %966 = vmatpush1.msra.mxu0 0.0
    %967 = vmatprep.subr.mxu0 0.0
    %968 = vmatpush1.msra.mxu0 0.0
    %969 = vmatprep.subr.mxu0 0.0
    %970 = vmatpush1.msra.mxu0 0.0
    %971 = vmatprep.subr.mxu0 0.0
    %972 = vmatpush1.msra.mxu0 0.0
    %973 = vmatprep.subr.mxu0 0.0
    %974 = vmatpush1.msra.mxu0 0.0
    %975 = vmatprep.subr.mxu0 0.0
    %976 = vmatpush1.msra.mxu0 0.0
    %977 = vmatprep.subr.mxu0 0.0
    %978 = vmatpush1.msra.mxu0 0.0
    %979 = vmatprep.subr.mxu0 0.0
    %980 = vmatpush1.msra.mxu0 0.0
    %981 = vmatprep.subr.mxu0 0.0
    %982 = vmatpush1.msra.mxu0 0.0
    %983 = vmatprep.subr.mxu0 0.0
    %984 = vmatpush1.msra.mxu0 0.0
    %985 = vmatprep.subr.mxu0 0.0
    %986 = vmatpush1.msra.mxu0 0.0
    %987 = vmatprep.subr.mxu0 0.0
    %988 = vmatpush1.msra.mxu0 0.0
    %989 = vmatprep.subr.mxu0 0.0
    %990 = vmatpush1.msra.mxu0 0.0
    %991 = vmatprep.subr.mxu0 0.0
    %992 = vmatpush1.msra.mxu0 0.0
    %993 = vmatprep.subr.mxu0 %v956
    %994 = vmatpush1.msra.mxu0 %v955
    %995 = vmatprep.subr.mxu0 0.0
    %996 = vmatpush2.msra.mxu0 0.0
    %997 = vmatprep.subr.mxu0 0.0
    %998 = vmatpush2.msra.mxu0 0.0
    %999 = vmatprep.subr.mxu0 0.0
    %1000 = vmatpush2.msra.mxu0 0.0
    %1001 = vmatprep.subr.mxu0 0.0
    %1002 = vmatpush2.msra.mxu0 0.0
    %1003 = vmatprep.subr.mxu0 0.0
    %1004 = vmatpush2.msra.mxu0 0.0
    %1005 = vmatprep.subr.mxu0 0.0
    %1006 = vmatpush2.msra.mxu0 0.0
    %1007 = vmatprep.subr.mxu0 0.0
    %1008 = vmatpush2.msra.mxu0 0.0
    %1009 = vmatprep.subr.mxu0 0.0
    %1010 = vmatpush2.msra.mxu0 0.0
    %1011 = vmatprep.subr.mxu0 0.0
    %1012 = vmatpush2.msra.mxu0 0.0
    %1013 = vmatprep.subr.mxu0 0.0
    %1014 = vmatpush2.msra.mxu0 0.0
    %1015 = vmatprep.subr.mxu0 0.0
    %1016 = vmatpush2.msra.mxu0 0.0
    %1017 = vmatprep.subr.mxu0 0.0
    %1018 = vmatpush2.msra.mxu0 0.0
    %1019 = vmatprep.subr.mxu0 0.0
    %1020 = vmatpush2.msra.mxu0 0.0
    %1021 = vmatprep.subr.mxu0 0.0
    %1022 = vmatpush2.msra.mxu0 0.0
    %1023 = vmatprep.subr.mxu0 0.0
    %1024 = vmatpush2.msra.mxu0 0.0
    %1025 = vmatprep.subr.mxu0 0.0
    %1026 = vmatpush2.msra.mxu0 0.0
    %1027 = vmatprep.mubr.f32.mxu0 0.0
    %1028 = vmatmul.mubr.f32.gmra.mxu0 %v961
    %v1029 = vpop.f32.mrf.mxu0
    %v1030 = vadd.f32 0.0, %v1029
    %v1031 = vpop.f32.mrf.mxu0
    %v1032 = vadd.f32 0.0, %v1031
    %1033 = vdwg.mxu0
    %v1035 = vsel %vm959, %v942, 0
    %1037 = vmatprep.subr.mxu0 0.0
    %1038 = vmatpush1.msra.mxu0 0.0
    %1039 = vmatprep.subr.mxu0 0.0
    %1040 = vmatpush1.msra.mxu0 0.0
    %1041 = vmatprep.subr.mxu0 0.0
    %1042 = vmatpush1.msra.mxu0 0.0
    %1043 = vmatprep.subr.mxu0 0.0
    %1044 = vmatpush1.msra.mxu0 0.0
    %1045 = vmatprep.subr.mxu0 0.0
    %1046 = vmatpush1.msra.mxu0 0.0
    %1047 = vmatprep.subr.mxu0 0.0
    %1048 = vmatpush1.msra.mxu0 0.0
    %1049 = vmatprep.subr.mxu0 0.0
    %1050 = vmatpush1.msra.mxu0 0.0
    %1051 = vmatprep.subr.mxu0 0.0
    %1052 = vmatpush1.msra.mxu0 0.0
    %1053 = vmatprep.subr.mxu0 0.0
    %1054 = vmatpush1.msra.mxu0 0.0
    %1055 = vmatprep.subr.mxu0 0.0
    %1056 = vmatpush1.msra.mxu0 0.0
    %1057 = vmatprep.subr.mxu0 0.0
    %1058 = vmatpush1.msra.mxu0 0.0
    %1059 = vmatprep.subr.mxu0 0.0
    %1060 = vmatpush1.msra.mxu0 0.0
    %1061 = vmatprep.subr.mxu0 0.0
    %1062 = vmatpush1.msra.mxu0 0.0
    %1063 = vmatprep.subr.mxu0 0.0
    %1064 = vmatpush1.msra.mxu0 0.0
    %1065 = vmatprep.subr.mxu0 0.0
    %1066 = vmatpush1.msra.mxu0 0.0
    %1067 = vmatprep.subr.mxu0 %v941
    %1068 = vmatpush1.msra.mxu0 %v940
    %1069 = vmatprep.subr.mxu0 0.0
    %1070 = vmatpush2.msra.mxu0 0.0
    %1071 = vmatprep.subr.mxu0 0.0
    %1072 = vmatpush2.msra.mxu0 0.0
    %1073 = vmatprep.subr.mxu0 0.0
    %1074 = vmatpush2.msra.mxu0 0.0
    %1075 = vmatprep.subr.mxu0 0.0
    %1076 = vmatpush2.msra.mxu0 0.0
    %1077 = vmatprep.subr.mxu0 0.0
    %1078 = vmatpush2.msra.mxu0 0.0
    %1079 = vmatprep.subr.mxu0 0.0
    %1080 = vmatpush2.msra.mxu0 0.0
    %1081 = vmatprep.subr.mxu0 0.0
    %1082 = vmatpush2.msra.mxu0 0.0
    %1083 = vmatprep.subr.mxu0 0.0
    %1084 = vmatpush2.msra.mxu0 0.0
    %1085 = vmatprep.subr.mxu0 0.0
    %1086 = vmatpush2.msra.mxu0 0.0
    %1087 = vmatprep.subr.mxu0 0.0
    %1088 = vmatpush2.msra.mxu0 0.0
    %1089 = vmatprep.subr.mxu0 0.0
    %1090 = vmatpush2.msra.mxu0 0.0
    %1091 = vmatprep.subr.mxu0 0.0
    %1092 = vmatpush2.msra.mxu0 0.0
    %1093 = vmatprep.subr.mxu0 0.0
    %1094 = vmatpush2.msra.mxu0 0.0
    %1095 = vmatprep.subr.mxu0 0.0
    %1096 = vmatpush2.msra.mxu0 0.0
    %1097 = vmatprep.subr.mxu0 0.0
    %1098 = vmatpush2.msra.mxu0 0.0
    %1099 = vmatprep.subr.mxu0 0.0
    %1100 = vmatpush2.msra.mxu0 0.0
    %1101 = vmatprep.mubr.f32.mxu0 0.0
    %1102 = vmatmul.mubr.f32.gmra.mxu0 %v1035
    %v1103 = vpop.f32.mrf.mxu0
    %v1104 = vadd.f32 %v1030, %v1103
    %v1105 = vpop.f32.mrf.mxu0
    %v1106 = vadd.f32 %v1032, %v1105
    %1107 = vdwg.mxu0
    %s1108 = scalar_lea.vmem %s3, 48
    %v1109 = vld [vmem:[%s1108] sm:$0xff]
    %1110 = vrot.lane.b32.xlu0 %v940, 96
    %v1111 = vpop.permute.xlu0 %1110
    %1112 = vrot.lane.b32.xlu0 %v941, 96
    %v1113 = vpop.permute.xlu0 %1112
    %1114 = vrot.lane.b32.xlu0 %v943, 96
    %v1115 = vpop.permute.xlu0 %1114
    %v1116 = vsel %vm245, %v1111, %v1113
    %v1117 = vsel %vm245, %v1113, %v1115
    %v1121 = vsel %vm959, %v1109, 0
    %1123 = vmatprep.subr.mxu0 0.0
    %1124 = vmatpush1.msra.mxu0 0.0
    %1125 = vmatprep.subr.mxu0 0.0
    %1126 = vmatpush1.msra.mxu0 0.0
    %1127 = vmatprep.subr.mxu0 0.0
    %1128 = vmatpush1.msra.mxu0 0.0
    %1129 = vmatprep.subr.mxu0 0.0
    %1130 = vmatpush1.msra.mxu0 0.0
    %1131 = vmatprep.subr.mxu0 0.0
    %1132 = vmatpush1.msra.mxu0 0.0
    %1133 = vmatprep.subr.mxu0 0.0
    %1134 = vmatpush1.msra.mxu0 0.0
    %1135 = vmatprep.subr.mxu0 0.0
    %1136 = vmatpush1.msra.mxu0 0.0
    %1137 = vmatprep.subr.mxu0 0.0
    %1138 = vmatpush1.msra.mxu0 0.0
    %1139 = vmatprep.subr.mxu0 0.0
    %1140 = vmatpush1.msra.mxu0 0.0
    %1141 = vmatprep.subr.mxu0 0.0
    %1142 = vmatpush1.msra.mxu0 0.0
    %1143 = vmatprep.subr.mxu0 0.0
    %1144 = vmatpush1.msra.mxu0 0.0
    %1145 = vmatprep.subr.mxu0 0.0
    %1146 = vmatpush1.msra.mxu0 0.0
    %1147 = vmatprep.subr.mxu0 0.0
    %1148 = vmatpush1.msra.mxu0 0.0
    %1149 = vmatprep.subr.mxu0 0.0
    %1150 = vmatpush1.msra.mxu0 0.0
    %1151 = vmatprep.subr.mxu0 0.0
    %1152 = vmatpush1.msra.mxu0 0.0
    %1153 = vmatprep.subr.mxu0 %v1117
    %1154 = vmatpush1.msra.mxu0 %v1116
    %1155 = vmatprep.subr.mxu0 0.0
    %1156 = vmatpush2.msra.mxu0 0.0
    %1157 = vmatprep.subr.mxu0 0.0
    %1158 = vmatpush2.msra.mxu0 0.0
    %1159 = vmatprep.subr.mxu0 0.0
    %1160 = vmatpush2.msra.mxu0 0.0
    %1161 = vmatprep.subr.mxu0 0.0
    %1162 = vmatpush2.msra.mxu0 0.0
    %1163 = vmatprep.subr.mxu0 0.0
    %1164 = vmatpush2.msra.mxu0 0.0
    %1165 = vmatprep.subr.mxu0 0.0
    %1166 = vmatpush2.msra.mxu0 0.0
    %1167 = vmatprep.subr.mxu0 0.0
    %1168 = vmatpush2.msra.mxu0 0.0
    %1169 = vmatprep.subr.mxu0 0.0
    %1170 = vmatpush2.msra.mxu0 0.0
    %1171 = vmatprep.subr.mxu0 0.0
    %1172 = vmatpush2.msra.mxu0 0.0
    %1173 = vmatprep.subr.mxu0 0.0
    %1174 = vmatpush2.msra.mxu0 0.0
    %1175 = vmatprep.subr.mxu0 0.0
    %1176 = vmatpush2.msra.mxu0 0.0
    %1177 = vmatprep.subr.mxu0 0.0
    %1178 = vmatpush2.msra.mxu0 0.0
    %1179 = vmatprep.subr.mxu0 0.0
    %1180 = vmatpush2.msra.mxu0 0.0
    %1181 = vmatprep.subr.mxu0 0.0
    %1182 = vmatpush2.msra.mxu0 0.0
    %1183 = vmatprep.subr.mxu0 0.0
    %1184 = vmatpush2.msra.mxu0 0.0
    %1185 = vmatprep.subr.mxu0 0.0
    %1186 = vmatpush2.msra.mxu0 0.0
    %1187 = vmatprep.mubr.f32.mxu0 0.0
    %1188 = vmatmul.mubr.f32.gmra.mxu0 %v1121
    %v1189 = vpop.f32.mrf.mxu0
    %v1190 = vadd.f32 0.0, %v1189
    %v1191 = vpop.f32.mrf.mxu0
    %v1192 = vadd.f32 0.0, %v1191
    %1193 = vdwg.mxu0
    %v1194 = vadd.f32 %v1104, %v1190
    %v1195 = vadd.f32 %v1106, %v1192
    %v1197 = vlaneseq
    %v1198 = vshrl.u32 %v1197, 7
    %v1199 = vsub.s32 0, %v1198
    %v1200 = vrot.slane %v41, %v1199
    %v1201 = vlaneseq
    %v1202 = vshrl.u32 %v1201, 7
    %v1203 = vsub.s32 1, %v1202
    %v1204 = vrot.slane %v41, %v1203
    %v1207 = vmul.f32 %v1194, %v1200
    %v1208 = vmul.f32 %v1195, %v1204
    %s1209 = scalar_lea.vmem %s3, 8
    %v1210 = vld [vmem:[%s1209] sm:$0xff]
    %s1211 = scalar_lea.vmem %s3, 32
    %v1212 = vld [vmem:[%s1211] sm:$0xff]
    %1213 = vrot.lane.b32.xlu0 %v940, 111
    %v1214 = vpop.permute.xlu0 %1213
    %1215 = vrot.lane.b32.xlu0 %v941, 111
    %v1216 = vpop.permute.xlu0 %1215
    %1217 = vrot.lane.b32.xlu0 %v943, 111
    %v1218 = vpop.permute.xlu0 %1217
    %v1219 = vsel %vm356, %v1214, %v1216
    %v1220 = vsel %vm356, %v1216, %v1218
    %v1224 = vsel %vm959, %v1212, 0
    %1226 = vmatprep.subr.mxu0 0.0
    %1227 = vmatpush1.msra.mxu0 0.0
    %1228 = vmatprep.subr.mxu0 0.0
    %1229 = vmatpush1.msra.mxu0 0.0
    %1230 = vmatprep.subr.mxu0 0.0
    %1231 = vmatpush1.msra.mxu0 0.0
    %1232 = vmatprep.subr.mxu0 0.0
    %1233 = vmatpush1.msra.mxu0 0.0
    %1234 = vmatprep.subr.mxu0 0.0
    %1235 = vmatpush1.msra.mxu0 0.0
    %1236 = vmatprep.subr.mxu0 0.0
    %1237 = vmatpush1.msra.mxu0 0.0
    %1238 = vmatprep.subr.mxu0 0.0
    %1239 = vmatpush1.msra.mxu0 0.0
    %1240 = vmatprep.subr.mxu0 0.0
    %1241 = vmatpush1.msra.mxu0 0.0
    %1242 = vmatprep.subr.mxu0 0.0
    %1243 = vmatpush1.msra.mxu0 0.0
    %1244 = vmatprep.subr.mxu0 0.0
    %1245 = vmatpush1.msra.mxu0 0.0
    %1246 = vmatprep.subr.mxu0 0.0
    %1247 = vmatpush1.msra.mxu0 0.0
    %1248 = vmatprep.subr.mxu0 0.0
    %1249 = vmatpush1.msra.mxu0 0.0
    %1250 = vmatprep.subr.mxu0 0.0
    %1251 = vmatpush1.msra.mxu0 0.0
    %1252 = vmatprep.subr.mxu0 0.0
    %1253 = vmatpush1.msra.mxu0 0.0
    %1254 = vmatprep.subr.mxu0 0.0
    %1255 = vmatpush1.msra.mxu0 0.0
    %1256 = vmatprep.subr.mxu0 %v1220
    %1257 = vmatpush1.msra.mxu0 %v1219
    %1258 = vmatprep.subr.mxu0 0.0
    %1259 = vmatpush2.msra.mxu0 0.0
    %1260 = vmatprep.subr.mxu0 0.0
    %1261 = vmatpush2.msra.mxu0 0.0
    %1262 = vmatprep.subr.mxu0 0.0
    %1263 = vmatpush2.msra.mxu0 0.0
    %1264 = vmatprep.subr.mxu0 0.0
    %1265 = vmatpush2.msra.mxu0 0.0
    %1266 = vmatprep.subr.mxu0 0.0
    %1267 = vmatpush2.msra.mxu0 0.0
    %1268 = vmatprep.subr.mxu0 0.0
    %1269 = vmatpush2.msra.mxu0 0.0
    %1270 = vmatprep.subr.mxu0 0.0
    %1271 = vmatpush2.msra.mxu0 0.0
    %1272 = vmatprep.subr.mxu0 0.0
    %1273 = vmatpush2.msra.mxu0 0.0
    %1274 = vmatprep.subr.mxu0 0.0
    %1275 = vmatpush2.msra.mxu0 0.0
    %1276 = vmatprep.subr.mxu0 0.0
    %1277 = vmatpush2.msra.mxu0 0.0
    %1278 = vmatprep.subr.mxu0 0.0
    %1279 = vmatpush2.msra.mxu0 0.0
    %1280 = vmatprep.subr.mxu0 0.0
    %1281 = vmatpush2.msra.mxu0 0.0
    %1282 = vmatprep.subr.mxu0 0.0
    %1283 = vmatpush2.msra.mxu0 0.0
    %1284 = vmatprep.subr.mxu0 0.0
    %1285 = vmatpush2.msra.mxu0 0.0
    %1286 = vmatprep.subr.mxu0 0.0
    %1287 = vmatpush2.msra.mxu0 0.0
    %1288 = vmatprep.subr.mxu0 0.0
    %1289 = vmatpush2.msra.mxu0 0.0
    %1290 = vmatprep.mubr.f32.mxu0 0.0
    %1291 = vmatmul.mubr.f32.gmra.mxu0 %v1224
    %v1292 = vpop.f32.mrf.mxu0
    %v1293 = vadd.f32 0.0, %v1292
    %v1294 = vpop.f32.mrf.mxu0
    %v1295 = vadd.f32 0.0, %v1294
    %1296 = vdwg.mxu0
    %1297 = vrot.lane.b32.xlu0 %v940, 127
    %v1298 = vpop.permute.xlu0 %1297
    %1299 = vrot.lane.b32.xlu0 %v941, 127
    %v1300 = vpop.permute.xlu0 %1299
    %1301 = vrot.lane.b32.xlu0 %v943, 127
    %v1302 = vpop.permute.xlu0 %1301
    %v1303 = vsel %vm443, %v1298, %v1300
    %v1304 = vsel %vm443, %v1300, %v1302
    %v1308 = vsel %vm959, %v1210, 0
    %1310 = vmatprep.subr.mxu0 0.0
    %1311 = vmatpush1.msra.mxu0 0.0
    %1312 = vmatprep.subr.mxu0 0.0
    %1313 = vmatpush1.msra.mxu0 0.0
    %1314 = vmatprep.subr.mxu0 0.0
    %1315 = vmatpush1.msra.mxu0 0.0
    %1316 = vmatprep.subr.mxu0 0.0
    %1317 = vmatpush1.msra.mxu0 0.0
    %1318 = vmatprep.subr.mxu0 0.0
    %1319 = vmatpush1.msra.mxu0 0.0
    %1320 = vmatprep.subr.mxu0 0.0
    %1321 = vmatpush1.msra.mxu0 0.0
    %1322 = vmatprep.subr.mxu0 0.0
    %1323 = vmatpush1.msra.mxu0 0.0
    %1324 = vmatprep.subr.mxu0 0.0
    %1325 = vmatpush1.msra.mxu0 0.0
    %1326 = vmatprep.subr.mxu0 0.0
    %1327 = vmatpush1.msra.mxu0 0.0
    %1328 = vmatprep.subr.mxu0 0.0
    %1329 = vmatpush1.msra.mxu0 0.0
    %1330 = vmatprep.subr.mxu0 0.0
    %1331 = vmatpush1.msra.mxu0 0.0
    %1332 = vmatprep.subr.mxu0 0.0
    %1333 = vmatpush1.msra.mxu0 0.0
    %1334 = vmatprep.subr.mxu0 0.0
    %1335 = vmatpush1.msra.mxu0 0.0
    %1336 = vmatprep.subr.mxu0 0.0
    %1337 = vmatpush1.msra.mxu0 0.0
    %1338 = vmatprep.subr.mxu0 0.0
    %1339 = vmatpush1.msra.mxu0 0.0
    %1340 = vmatprep.subr.mxu0 %v1304
    %1341 = vmatpush1.msra.mxu0 %v1303
    %1342 = vmatprep.subr.mxu0 0.0
    %1343 = vmatpush2.msra.mxu0 0.0
    %1344 = vmatprep.subr.mxu0 0.0
    %1345 = vmatpush2.msra.mxu0 0.0
    %1346 = vmatprep.subr.mxu0 0.0
    %1347 = vmatpush2.msra.mxu0 0.0
    %1348 = vmatprep.subr.mxu0 0.0
    %1349 = vmatpush2.msra.mxu0 0.0
    %1350 = vmatprep.subr.mxu0 0.0
    %1351 = vmatpush2.msra.mxu0 0.0
    %1352 = vmatprep.subr.mxu0 0.0
    %1353 = vmatpush2.msra.mxu0 0.0
    %1354 = vmatprep.subr.mxu0 0.0
    %1355 = vmatpush2.msra.mxu0 0.0
    %1356 = vmatprep.subr.mxu0 0.0
    %1357 = vmatpush2.msra.mxu0 0.0
    %1358 = vmatprep.subr.mxu0 0.0
    %1359 = vmatpush2.msra.mxu0 0.0
    %1360 = vmatprep.subr.mxu0 0.0
    %1361 = vmatpush2.msra.mxu0 0.0
    %1362 = vmatprep.subr.mxu0 0.0
    %1363 = vmatpush2.msra.mxu0 0.0
    %1364 = vmatprep.subr.mxu0 0.0
    %1365 = vmatpush2.msra.mxu0 0.0
    %1366 = vmatprep.subr.mxu0 0.0
    %1367 = vmatpush2.msra.mxu0 0.0
    %1368 = vmatprep.subr.mxu0 0.0
    %1369 = vmatpush2.msra.mxu0 0.0
    %1370 = vmatprep.subr.mxu0 0.0
    %1371 = vmatpush2.msra.mxu0 0.0
    %1372 = vmatprep.subr.mxu0 0.0
    %1373 = vmatpush2.msra.mxu0 0.0
    %1374 = vmatprep.mubr.f32.mxu0 0.0
    %1375 = vmatmul.mubr.f32.gmra.mxu0 %v1308
    %v1376 = vpop.f32.mrf.mxu0
    %v1377 = vadd.f32 %v1293, %v1376
    %v1378 = vpop.f32.mrf.mxu0
    %v1379 = vadd.f32 %v1295, %v1378
    %1380 = vdwg.mxu0
    %s1381 = scalar_lea.vmem %s3, 56
    %v1382 = vld [vmem:[%s1381] sm:$0xff]
    %1383 = vrot.lane.b32.xlu0 %v940, 95
    %v1384 = vpop.permute.xlu0 %1383
    %1385 = vrot.lane.b32.xlu0 %v941, 95
    %v1386 = vpop.permute.xlu0 %1385
    %1387 = vrot.lane.b32.xlu0 %v943, 95
    %v1388 = vpop.permute.xlu0 %1387
    %v1389 = vsel %vm537, %v1384, %v1386
    %v1390 = vsel %vm537, %v1386, %v1388
    %v1394 = vsel %vm959, %v1382, 0
    %1396 = vmatprep.subr.mxu0 0.0
    %1397 = vmatpush1.msra.mxu0 0.0
    %1398 = vmatprep.subr.mxu0 0.0
    %1399 = vmatpush1.msra.mxu0 0.0
    %1400 = vmatprep.subr.mxu0 0.0
    %1401 = vmatpush1.msra.mxu0 0.0
    %1402 = vmatprep.subr.mxu0 0.0
    %1403 = vmatpush1.msra.mxu0 0.0
    %1404 = vmatprep.subr.mxu0 0.0
    %1405 = vmatpush1.msra.mxu0 0.0
    %1406 = vmatprep.subr.mxu0 0.0
    %1407 = vmatpush1.msra.mxu0 0.0
    %1408 = vmatprep.subr.mxu0 0.0
    %1409 = vmatpush1.msra.mxu0 0.0
    %1410 = vmatprep.subr.mxu0 0.0
    %1411 = vmatpush1.msra.mxu0 0.0
    %1412 = vmatprep.subr.mxu0 0.0
    %1413 = vmatpush1.msra.mxu0 0.0
    %1414 = vmatprep.subr.mxu0 0.0
    %1415 = vmatpush1.msra.mxu0 0.0
    %1416 = vmatprep.subr.mxu0 0.0
    %1417 = vmatpush1.msra.mxu0 0.0
    %1418 = vmatprep.subr.mxu0 0.0
    %1419 = vmatpush1.msra.mxu0 0.0
    %1420 = vmatprep.subr.mxu0 0.0
    %1421 = vmatpush1.msra.mxu0 0.0
    %1422 = vmatprep.subr.mxu0 0.0
    %1423 = vmatpush1.msra.mxu0 0.0
    %1424 = vmatprep.subr.mxu0 0.0
    %1425 = vmatpush1.msra.mxu0 0.0
    %1426 = vmatprep.subr.mxu0 %v1390
    %1427 = vmatpush1.msra.mxu0 %v1389
    %1428 = vmatprep.subr.mxu0 0.0
    %1429 = vmatpush2.msra.mxu0 0.0
    %1430 = vmatprep.subr.mxu0 0.0
    %1431 = vmatpush2.msra.mxu0 0.0
    %1432 = vmatprep.subr.mxu0 0.0
    %1433 = vmatpush2.msra.mxu0 0.0
    %1434 = vmatprep.subr.mxu0 0.0
    %1435 = vmatpush2.msra.mxu0 0.0
    %1436 = vmatprep.subr.mxu0 0.0
    %1437 = vmatpush2.msra.mxu0 0.0
    %1438 = vmatprep.subr.mxu0 0.0
    %1439 = vmatpush2.msra.mxu0 0.0
    %1440 = vmatprep.subr.mxu0 0.0
    %1441 = vmatpush2.msra.mxu0 0.0
    %1442 = vmatprep.subr.mxu0 0.0
    %1443 = vmatpush2.msra.mxu0 0.0
    %1444 = vmatprep.subr.mxu0 0.0
    %1445 = vmatpush2.msra.mxu0 0.0
    %1446 = vmatprep.subr.mxu0 0.0
    %1447 = vmatpush2.msra.mxu0 0.0
    %1448 = vmatprep.subr.mxu0 0.0
    %1449 = vmatpush2.msra.mxu0 0.0
    %1450 = vmatprep.subr.mxu0 0.0
    %1451 = vmatpush2.msra.mxu0 0.0
    %1452 = vmatprep.subr.mxu0 0.0
    %1453 = vmatpush2.msra.mxu0 0.0
    %1454 = vmatprep.subr.mxu0 0.0
    %1455 = vmatpush2.msra.mxu0 0.0
    %1456 = vmatprep.subr.mxu0 0.0
    %1457 = vmatpush2.msra.mxu0 0.0
    %1458 = vmatprep.subr.mxu0 0.0
    %1459 = vmatpush2.msra.mxu0 0.0
    %1460 = vmatprep.mubr.f32.mxu0 0.0
    %1461 = vmatmul.mubr.f32.gmra.mxu0 %v1394
    %v1462 = vpop.f32.mrf.mxu0
    %v1463 = vadd.f32 0.0, %v1462
    %v1464 = vpop.f32.mrf.mxu0
    %v1465 = vadd.f32 0.0, %v1464
    %1466 = vdwg.mxu0
    %v1467 = vadd.f32 %v1377, %v1463
    %v1468 = vadd.f32 %v1379, %v1465
    %v1469 = vadd.f32 %v1207, %v1467
    %v1470 = vadd.f32 %v1208, %v1468
    %s1471 = scalar_lea.vmem %s3, 16
    %v1472 = vld [vmem:[%s1471] sm:$0xff]
    %s1473 = scalar_lea.vmem %s3, 40
    %v1474 = vld [vmem:[%s1473] sm:$0xff]
    %1475 = vrot.lane.b32.xlu0 %v940, 110
    %v1476 = vpop.permute.xlu0 %1475
    %1477 = vrot.lane.b32.xlu0 %v941, 110
    %v1478 = vpop.permute.xlu0 %1477
    %1479 = vrot.lane.b32.xlu0 %v943, 110
    %v1480 = vpop.permute.xlu0 %1479
    %v1481 = vsel %vm637, %v1476, %v1478
    %v1482 = vsel %vm637, %v1478, %v1480
    %v1486 = vsel %vm959, %v1474, 0
    %1488 = vmatprep.subr.mxu0 0.0
    %1489 = vmatpush1.msra.mxu0 0.0
    %1490 = vmatprep.subr.mxu0 0.0
    %1491 = vmatpush1.msra.mxu0 0.0
    %1492 = vmatprep.subr.mxu0 0.0
    %1493 = vmatpush1.msra.mxu0 0.0
    %1494 = vmatprep.subr.mxu0 0.0
    %1495 = vmatpush1.msra.mxu0 0.0
    %1496 = vmatprep.subr.mxu0 0.0
    %1497 = vmatpush1.msra.mxu0 0.0
    %1498 = vmatprep.subr.mxu0 0.0
    %1499 = vmatpush1.msra.mxu0 0.0
    %1500 = vmatprep.subr.mxu0 0.0
    %1501 = vmatpush1.msra.mxu0 0.0
    %1502 = vmatprep.subr.mxu0 0.0
    %1503 = vmatpush1.msra.mxu0 0.0
    %1504 = vmatprep.subr.mxu0 0.0
    %1505 = vmatpush1.msra.mxu0 0.0
    %1506 = vmatprep.subr.mxu0 0.0
    %1507 = vmatpush1.msra.mxu0 0.0
    %1508 = vmatprep.subr.mxu0 0.0
    %1509 = vmatpush1.msra.mxu0 0.0
    %1510 = vmatprep.subr.mxu0 0.0
    %1511 = vmatpush1.msra.mxu0 0.0
    %1512 = vmatprep.subr.mxu0 0.0
    %1513 = vmatpush1.msra.mxu0 0.0
    %1514 = vmatprep.subr.mxu0 0.0
    %1515 = vmatpush1.msra.mxu0 0.0
    %1516 = vmatprep.subr.mxu0 0.0
    %1517 = vmatpush1.msra.mxu0 0.0
    %1518 = vmatprep.subr.mxu0 %v1482
    %1519 = vmatpush1.msra.mxu0 %v1481
    %1520 = vmatprep.subr.mxu0 0.0
    %1521 = vmatpush2.msra.mxu0 0.0
    %1522 = vmatprep.subr.mxu0 0.0
    %1523 = vmatpush2.msra.mxu0 0.0
    %1524 = vmatprep.subr.mxu0 0.0
    %1525 = vmatpush2.msra.mxu0 0.0
    %1526 = vmatprep.subr.mxu0 0.0
    %1527 = vmatpush2.msra.mxu0 0.0
    %1528 = vmatprep.subr.mxu0 0.0
    %1529 = vmatpush2.msra.mxu0 0.0
    %1530 = vmatprep.subr.mxu0 0.0
    %1531 = vmatpush2.msra.mxu0 0.0
    %1532 = vmatprep.subr.mxu0 0.0
    %1533 = vmatpush2.msra.mxu0 0.0
    %1534 = vmatprep.subr.mxu0 0.0
    %1535 = vmatpush2.msra.mxu0 0.0
    %1536 = vmatprep.subr.mxu0 0.0
    %1537 = vmatpush2.msra.mxu0 0.0
    %1538 = vmatprep.subr.mxu0 0.0
    %1539 = vmatpush2.msra.mxu0 0.0
    %1540 = vmatprep.subr.mxu0 0.0
    %1541 = vmatpush2.msra.mxu0 0.0
    %1542 = vmatprep.subr.mxu0 0.0
    %1543 = vmatpush2.msra.mxu0 0.0
    %1544 = vmatprep.subr.mxu0 0.0
    %1545 = vmatpush2.msra.mxu0 0.0
    %1546 = vmatprep.subr.mxu0 0.0
    %1547 = vmatpush2.msra.mxu0 0.0
    %1548 = vmatprep.subr.mxu0 0.0
    %1549 = vmatpush2.msra.mxu0 0.0
    %1550 = vmatprep.subr.mxu0 0.0
    %1551 = vmatpush2.msra.mxu0 0.0
    %1552 = vmatprep.mubr.f32.mxu0 0.0
    %1553 = vmatmul.mubr.f32.gmra.mxu0 %v1486
    %v1554 = vpop.f32.mrf.mxu0
    %v1555 = vadd.f32 0.0, %v1554
    %v1556 = vpop.f32.mrf.mxu0
    %v1557 = vadd.f32 0.0, %v1556
    %1558 = vdwg.mxu0
    %1559 = vrot.lane.b32.xlu0 %v940, 126
    %v1560 = vpop.permute.xlu0 %1559
    %1561 = vrot.lane.b32.xlu0 %v941, 126
    %v1562 = vpop.permute.xlu0 %1561
    %1563 = vrot.lane.b32.xlu0 %v943, 126
    %v1564 = vpop.permute.xlu0 %1563
    %v1565 = vsel %vm724, %v1560, %v1562
    %v1566 = vsel %vm724, %v1562, %v1564
    %v1570 = vsel %vm959, %v1472, 0
    %1572 = vmatprep.subr.mxu0 0.0
    %1573 = vmatpush1.msra.mxu0 0.0
    %1574 = vmatprep.subr.mxu0 0.0
    %1575 = vmatpush1.msra.mxu0 0.0
    %1576 = vmatprep.subr.mxu0 0.0
    %1577 = vmatpush1.msra.mxu0 0.0
    %1578 = vmatprep.subr.mxu0 0.0
    %1579 = vmatpush1.msra.mxu0 0.0
    %1580 = vmatprep.subr.mxu0 0.0
    %1581 = vmatpush1.msra.mxu0 0.0
    %1582 = vmatprep.subr.mxu0 0.0
    %1583 = vmatpush1.msra.mxu0 0.0
    %1584 = vmatprep.subr.mxu0 0.0
    %1585 = vmatpush1.msra.mxu0 0.0
    %1586 = vmatprep.subr.mxu0 0.0
    %1587 = vmatpush1.msra.mxu0 0.0
    %1588 = vmatprep.subr.mxu0 0.0
    %1589 = vmatpush1.msra.mxu0 0.0
    %1590 = vmatprep.subr.mxu0 0.0
    %1591 = vmatpush1.msra.mxu0 0.0
    %1592 = vmatprep.subr.mxu0 0.0
    %1593 = vmatpush1.msra.mxu0 0.0
    %1594 = vmatprep.subr.mxu0 0.0
    %1595 = vmatpush1.msra.mxu0 0.0
    %1596 = vmatprep.subr.mxu0 0.0
    %1597 = vmatpush1.msra.mxu0 0.0
    %1598 = vmatprep.subr.mxu0 0.0
    %1599 = vmatpush1.msra.mxu0 0.0
    %1600 = vmatprep.subr.mxu0 0.0
    %1601 = vmatpush1.msra.mxu0 0.0
    %1602 = vmatprep.subr.mxu0 %v1566
    %1603 = vmatpush1.msra.mxu0 %v1565
    %1604 = vmatprep.subr.mxu0 0.0
    %1605 = vmatpush2.msra.mxu0 0.0
    %1606 = vmatprep.subr.mxu0 0.0
    %1607 = vmatpush2.msra.mxu0 0.0
    %1608 = vmatprep.subr.mxu0 0.0
    %1609 = vmatpush2.msra.mxu0 0.0
    %1610 = vmatprep.subr.mxu0 0.0
    %1611 = vmatpush2.msra.mxu0 0.0
    %1612 = vmatprep.subr.mxu0 0.0
    %1613 = vmatpush2.msra.mxu0 0.0
    %1614 = vmatprep.subr.mxu0 0.0
    %1615 = vmatpush2.msra.mxu0 0.0
    %1616 = vmatprep.subr.mxu0 0.0
    %1617 = vmatpush2.msra.mxu0 0.0
    %1618 = vmatprep.subr.mxu0 0.0
    %1619 = vmatpush2.msra.mxu0 0.0
    %1620 = vmatprep.subr.mxu0 0.0
    %1621 = vmatpush2.msra.mxu0 0.0
    %1622 = vmatprep.subr.mxu0 0.0
    %1623 = vmatpush2.msra.mxu0 0.0
    %1624 = vmatprep.subr.mxu0 0.0
    %1625 = vmatpush2.msra.mxu0 0.0
    %1626 = vmatprep.subr.mxu0 0.0
    %1627 = vmatpush2.msra.mxu0 0.0
    %1628 = vmatprep.subr.mxu0 0.0
    %1629 = vmatpush2.msra.mxu0 0.0
    %1630 = vmatprep.subr.mxu0 0.0
    %1631 = vmatpush2.msra.mxu0 0.0
    %1632 = vmatprep.subr.mxu0 0.0
    %1633 = vmatpush2.msra.mxu0 0.0
    %1634 = vmatprep.subr.mxu0 0.0
    %1635 = vmatpush2.msra.mxu0 0.0
    %1636 = vmatprep.mubr.f32.mxu0 0.0
    %1637 = vmatmul.mubr.f32.gmra.mxu0 %v1570
    %v1638 = vpop.f32.mrf.mxu0
    %v1639 = vadd.f32 %v1555, %v1638
    %v1640 = vpop.f32.mrf.mxu0
    %v1641 = vadd.f32 %v1557, %v1640
    %1642 = vdwg.mxu0
    %s1643 = scalar_lea.vmem %s3, 64
    %v1644 = vld [vmem:[%s1643] sm:$0xff]
    %1645 = vrot.lane.b32.xlu0 %v940, 94
    %v1646 = vpop.permute.xlu0 %1645
    %1647 = vrot.lane.b32.xlu0 %v941, 94
    %v1648 = vpop.permute.xlu0 %1647
    %1649 = vrot.lane.b32.xlu0 %v943, 94
    %v1650 = vpop.permute.xlu0 %1649
    %v1651 = vsel %vm818, %v1646, %v1648
    %v1652 = vsel %vm818, %v1648, %v1650
    %v1656 = vsel %vm959, %v1644, 0
    %1658 = vmatprep.subr.mxu0 0.0
    %1659 = vmatpush1.msra.mxu0 0.0
    %1660 = vmatprep.subr.mxu0 0.0
    %1661 = vmatpush1.msra.mxu0 0.0
    %1662 = vmatprep.subr.mxu0 0.0
    %1663 = vmatpush1.msra.mxu0 0.0
    %1664 = vmatprep.subr.mxu0 0.0
    %1665 = vmatpush1.msra.mxu0 0.0
    %1666 = vmatprep.subr.mxu0 0.0
    %1667 = vmatpush1.msra.mxu0 0.0
    %1668 = vmatprep.subr.mxu0 0.0
    %1669 = vmatpush1.msra.mxu0 0.0
    %1670 = vmatprep.subr.mxu0 0.0
    %1671 = vmatpush1.msra.mxu0 0.0
    %1672 = vmatprep.subr.mxu0 0.0
    %1673 = vmatpush1.msra.mxu0 0.0
    %1674 = vmatprep.subr.mxu0 0.0
    %1675 = vmatpush1.msra.mxu0 0.0
    %1676 = vmatprep.subr.mxu0 0.0
    %1677 = vmatpush1.msra.mxu0 0.0
    %1678 = vmatprep.subr.mxu0 0.0
    %1679 = vmatpush1.msra.mxu0 0.0
    %1680 = vmatprep.subr.mxu0 0.0
    %1681 = vmatpush1.msra.mxu0 0.0
    %1682 = vmatprep.subr.mxu0 0.0
    %1683 = vmatpush1.msra.mxu0 0.0
    %1684 = vmatprep.subr.mxu0 0.0
    %1685 = vmatpush1.msra.mxu0 0.0
    %1686 = vmatprep.subr.mxu0 0.0
    %1687 = vmatpush1.msra.mxu0 0.0
    %1688 = vmatprep.subr.mxu0 %v1652
    %1689 = vmatpush1.msra.mxu0 %v1651
    %1690 = vmatprep.subr.mxu0 0.0
    %1691 = vmatpush2.msra.mxu0 0.0
    %1692 = vmatprep.subr.mxu0 0.0
    %1693 = vmatpush2.msra.mxu0 0.0
    %1694 = vmatprep.subr.mxu0 0.0
    %1695 = vmatpush2.msra.mxu0 0.0
    %1696 = vmatprep.subr.mxu0 0.0
    %1697 = vmatpush2.msra.mxu0 0.0
    %1698 = vmatprep.subr.mxu0 0.0
    %1699 = vmatpush2.msra.mxu0 0.0
    %1700 = vmatprep.subr.mxu0 0.0
    %1701 = vmatpush2.msra.mxu0 0.0
    %1702 = vmatprep.subr.mxu0 0.0
    %1703 = vmatpush2.msra.mxu0 0.0
    %1704 = vmatprep.subr.mxu0 0.0
    %1705 = vmatpush2.msra.mxu0 0.0
    %1706 = vmatprep.subr.mxu0 0.0
    %1707 = vmatpush2.msra.mxu0 0.0
    %1708 = vmatprep.subr.mxu0 0.0
    %1709 = vmatpush2.msra.mxu0 0.0
    %1710 = vmatprep.subr.mxu0 0.0
    %1711 = vmatpush2.msra.mxu0 0.0
    %1712 = vmatprep.subr.mxu0 0.0
    %1713 = vmatpush2.msra.mxu0 0.0
    %1714 = vmatprep.subr.mxu0 0.0
    %1715 = vmatpush2.msra.mxu0 0.0
    %1716 = vmatprep.subr.mxu0 0.0
    %1717 = vmatpush2.msra.mxu0 0.0
    %1718 = vmatprep.subr.mxu0 0.0
    %1719 = vmatpush2.msra.mxu0 0.0
    %1720 = vmatprep.subr.mxu0 0.0
    %1721 = vmatpush2.msra.mxu0 0.0
    %1722 = vmatprep.mubr.f32.mxu0 0.0
    %1723 = vmatmul.mubr.f32.gmra.mxu0 %v1656
    %v1724 = vpop.f32.mrf.mxu0
    %v1725 = vadd.f32 0.0, %v1724
    %v1726 = vpop.f32.mrf.mxu0
    %v1727 = vadd.f32 0.0, %v1726
    %1728 = vdwg.mxu0
    %v1729 = vadd.f32 %v1639, %v1725
    %v1730 = vadd.f32 %v1641, %v1727
    %v1732 = vlaneseq
    %v1733 = vshrl.u32 %v1732, 7
    %v1734 = vsub.s32 0, %v1733
    %v1735 = vrot.slane %v43, %v1734
    %v1736 = vlaneseq
    %v1737 = vshrl.u32 %v1736, 7
    %v1738 = vsub.s32 1, %v1737
    %v1739 = vrot.slane %v43, %v1738
    %v1742 = vmul.f32 %v1729, %v1735
    %v1743 = vmul.f32 %v1730, %v1739
    %v1744 = vadd.f32 %v1469, %v1742
    %v1745 = vadd.f32 %v1470, %v1743
    %v1746 = vld [vmem:[%s5] sm:$0xff]
    %v1747 = vcombine.high %v44, %v44
    %v1749 = vsel %vm74, %v1746, 0
    %v1751 = vsel %vm78, %v44, 0
    %v1753 = vsel %vm78, %v1747, 0
    %1755 = vmatprep.subr.mxu0 0.0
    %1756 = vmatpush1.msra.mxu0 0.0
    %1757 = vmatprep.subr.mxu0 0.0
    %1758 = vmatpush1.msra.mxu0 0.0
    %1759 = vmatprep.subr.mxu0 0.0
    %1760 = vmatpush1.msra.mxu0 0.0
    %1761 = vmatprep.subr.mxu0 0.0
    %1762 = vmatpush1.msra.mxu0 0.0
    %1763 = vmatprep.subr.mxu0 0.0
    %1764 = vmatpush1.msra.mxu0 0.0
    %1765 = vmatprep.subr.mxu0 0.0
    %1766 = vmatpush1.msra.mxu0 0.0
    %1767 = vmatprep.subr.mxu0 0.0
    %1768 = vmatpush1.msra.mxu0 0.0
    %1769 = vmatprep.subr.mxu0 0.0
    %1770 = vmatpush1.msra.mxu0 0.0
    %1771 = vmatprep.subr.mxu0 0.0
    %1772 = vmatpush1.msra.mxu0 0.0
    %1773 = vmatprep.subr.mxu0 0.0
    %1774 = vmatpush1.msra.mxu0 0.0
    %1775 = vmatprep.subr.mxu0 0.0
    %1776 = vmatpush1.msra.mxu0 0.0
    %1777 = vmatprep.subr.mxu0 0.0
    %1778 = vmatpush1.msra.mxu0 0.0
    %1779 = vmatprep.subr.mxu0 0.0
    %1780 = vmatpush1.msra.mxu0 0.0
    %1781 = vmatprep.subr.mxu0 0.0
    %1782 = vmatpush1.msra.mxu0 0.0
    %1783 = vmatprep.subr.mxu0 0.0
    %1784 = vmatpush1.msra.mxu0 0.0
    %1785 = vmatprep.subr.mxu0 %v1753
    %1786 = vmatpush1.msra.mxu0 %v1751
    %1787 = vmatprep.subr.mxu0 0.0
    %1788 = vmatpush2.msra.mxu0 0.0
    %1789 = vmatprep.subr.mxu0 0.0
    %1790 = vmatpush2.msra.mxu0 0.0
    %1791 = vmatprep.subr.mxu0 0.0
    %1792 = vmatpush2.msra.mxu0 0.0
    %1793 = vmatprep.subr.mxu0 0.0
    %1794 = vmatpush2.msra.mxu0 0.0
    %1795 = vmatprep.subr.mxu0 0.0
    %1796 = vmatpush2.msra.mxu0 0.0
    %1797 = vmatprep.subr.mxu0 0.0
    %1798 = vmatpush2.msra.mxu0 0.0
    %1799 = vmatprep.subr.mxu0 0.0
    %1800 = vmatpush2.msra.mxu0 0.0
    %1801 = vmatprep.subr.mxu0 0.0
    %1802 = vmatpush2.msra.mxu0 0.0
    %1803 = vmatprep.subr.mxu0 0.0
    %1804 = vmatpush2.msra.mxu0 0.0
    %1805 = vmatprep.subr.mxu0 0.0
    %1806 = vmatpush2.msra.mxu0 0.0
    %1807 = vmatprep.subr.mxu0 0.0
    %1808 = vmatpush2.msra.mxu0 0.0
    %1809 = vmatprep.subr.mxu0 0.0
    %1810 = vmatpush2.msra.mxu0 0.0
    %1811 = vmatprep.subr.mxu0 0.0
    %1812 = vmatpush2.msra.mxu0 0.0
    %1813 = vmatprep.subr.mxu0 0.0
    %1814 = vmatpush2.msra.mxu0 0.0
    %1815 = vmatprep.subr.mxu0 0.0
    %1816 = vmatpush2.msra.mxu0 0.0
    %1817 = vmatprep.subr.mxu0 0.0
    %1818 = vmatpush2.msra.mxu0 0.0
    %1819 = vmatprep.mubr.f32.mxu0 0.0
    %1820 = vmatmul.mubr.f32.gmra.mxu0 %v1749
    %v1821 = vpop.f32.mrf.mxu0
    %v1822 = vadd.f32 0.0, %v1821
    %v1823 = vpop.f32.mrf.mxu0
    %v1824 = vadd.f32 0.0, %v1823
    %1825 = vdwg.mxu0
    %v1826 = vld [vmem:[%s4] sm:$0xff]
    %1828 = vset.pattern.permute.xlu0 0
    %1829 = vperm.xlu0 %1828, %v1826
    %v1830 = vpop.permute.xlu0 %1829
    %v1832 = vadd.f32 %v1744, %v1830
    %v1833 = vadd.f32 %v1745, %v1830
    %v1834 = vadd.f32 %v1832, %v1822
    %v1835 = vadd.f32 %v1833, %v1824
    %v1836 = vmax.f32 %v1834, 0.0
    %v1837 = vmax.f32 %v1835, 0.0
    %1838 = vst [vmem:[#allocation4] sm:$0xff] %v1836
    %1839 = vst [vmem:[#allocation4 + $0x8] sm:$0xff] %v1837
    %s1840 = scalar_lea.vmem %s0, 8
    %v1841 = vld [vmem:[%s1840] sm:$0xff]
    %1843 = vrot.lane.b32.xlu0 %v1841, 17
    %v1844 = vpop.permute.xlu0 %1843
    %v1845 = vrot.slane %v1844, 4
    %v1846 = vsel %vm34, %v1845, %v1844
    %1849 = vst.msk [vmem:[#allocation2] sm:$0xff] %vm54, %v1846
    %1850 = vst.msk [vmem:[#allocation2 + $0x8] sm:$0xf] %vm30, %v1845
    %v1851 = vld [vmem:[#allocation2] sm:$0xff]
    %v1852 = vld [vmem:[%s1] sm:$0xff]
    %v1853 = vld [vmem:[#allocation2 + $0x8] sm:$0xf]
    %v1854 = vld [vmem:[%s60] sm:$0xff]
    %v1857 = vcombine.high %v1851, %v1851
    %1858 = vrot.lane.b32.xlu0 %v1851, 112
    %v1859 = vpop.permute.xlu0 %1858
    %1860 = vrot.lane.b32.xlu0 %v1857, 112
    %v1861 = vpop.permute.xlu0 %1860
    %1862 = vrot.lane.b32.xlu0 %v1853, 112
    %v1863 = vpop.permute.xlu0 %1862
    %v1864 = vsel %vm71, %v1859, %v1861
    %v1865 = vsel %vm71, %v1861, %v1863
    %v1867 = vsel %vm74, %v1854, 0
    %v1869 = vsel %vm78, %v1864, 0
    %v1871 = vsel %vm78, %v1865, 0
    %1873 = vmatprep.subr.mxu0 0.0
    %1874 = vmatpush1.msra.mxu0 0.0
    %1875 = vmatprep.subr.mxu0 0.0
    %1876 = vmatpush1.msra.mxu0 0.0
    %1877 = vmatprep.subr.mxu0 0.0
    %1878 = vmatpush1.msra.mxu0 0.0
    %1879 = vmatprep.subr.mxu0 0.0
    %1880 = vmatpush1.msra.mxu0 0.0
    %1881 = vmatprep.subr.mxu0 0.0
    %1882 = vmatpush1.msra.mxu0 0.0
    %1883 = vmatprep.subr.mxu0 0.0
    %1884 = vmatpush1.msra.mxu0 0.0
    %1885 = vmatprep.subr.mxu0 0.0
    %1886 = vmatpush1.msra.mxu0 0.0
    %1887 = vmatprep.subr.mxu0 0.0
    %1888 = vmatpush1.msra.mxu0 0.0
    %1889 = vmatprep.subr.mxu0 0.0
    %1890 = vmatpush1.msra.mxu0 0.0
    %1891 = vmatprep.subr.mxu0 0.0
    %1892 = vmatpush1.msra.mxu0 0.0
    %1893 = vmatprep.subr.mxu0 0.0
    %1894 = vmatpush1.msra.mxu0 0.0
    %1895 = vmatprep.subr.mxu0 0.0
    %1896 = vmatpush1.msra.mxu0 0.0
    %1897 = vmatprep.subr.mxu0 0.0
    %1898 = vmatpush1.msra.mxu0 0.0
    %1899 = vmatprep.subr.mxu0 0.0
    %1900 = vmatpush1.msra.mxu0 0.0
    %1901 = vmatprep.subr.mxu0 0.0
    %1902 = vmatpush1.msra.mxu0 0.0
    %1903 = vmatprep.subr.mxu0 %v1871
    %1904 = vmatpush1.msra.mxu0 %v1869
    %1905 = vmatprep.subr.mxu0 0.0
    %1906 = vmatpush2.msra.mxu0 0.0
    %1907 = vmatprep.subr.mxu0 0.0
    %1908 = vmatpush2.msra.mxu0 0.0
    %1909 = vmatprep.subr.mxu0 0.0
    %1910 = vmatpush2.msra.mxu0 0.0
    %1911 = vmatprep.subr.mxu0 0.0
    %1912 = vmatpush2.msra.mxu0 0.0
    %1913 = vmatprep.subr.mxu0 0.0
    %1914 = vmatpush2.msra.mxu0 0.0
    %1915 = vmatprep.subr.mxu0 0.0
    %1916 = vmatpush2.msra.mxu0 0.0
    %1917 = vmatprep.subr.mxu0 0.0
    %1918 = vmatpush2.msra.mxu0 0.0
    %1919 = vmatprep.subr.mxu0 0.0
    %1920 = vmatpush2.msra.mxu0 0.0
    %1921 = vmatprep.subr.mxu0 0.0
    %1922 = vmatpush2.msra.mxu0 0.0
    %1923 = vmatprep.subr.mxu0 0.0
    %1924 = vmatpush2.msra.mxu0 0.0
    %1925 = vmatprep.subr.mxu0 0.0
    %1926 = vmatpush2.msra.mxu0 0.0
    %1927 = vmatprep.subr.mxu0 0.0
    %1928 = vmatpush2.msra.mxu0 0.0
    %1929 = vmatprep.subr.mxu0 0.0
    %1930 = vmatpush2.msra.mxu0 0.0
    %1931 = vmatprep.subr.mxu0 0.0
    %1932 = vmatpush2.msra.mxu0 0.0
    %1933 = vmatprep.subr.mxu0 0.0
    %1934 = vmatpush2.msra.mxu0 0.0
    %1935 = vmatprep.subr.mxu0 0.0
    %1936 = vmatpush2.msra.mxu0 0.0
    %1937 = vmatprep.mubr.f32.mxu0 0.0
    %1938 = vmatmul.mubr.f32.gmra.mxu0 %v1867
    %v1939 = vpop.f32.mrf.mxu0
    %v1940 = vadd.f32 0.0, %v1939
    %v1941 = vpop.f32.mrf.mxu0
    %v1942 = vadd.f32 0.0, %v1941
    %1943 = vdwg.mxu0
    %v1945 = vsel %vm74, %v1852, 0
    %v1947 = vsel %vm78, %v1851, 0
    %v1949 = vsel %vm78, %v1857, 0
    %1951 = vmatprep.subr.mxu0 0.0
    %1952 = vmatpush1.msra.mxu0 0.0
    %1953 = vmatprep.subr.mxu0 0.0
    %1954 = vmatpush1.msra.mxu0 0.0
    %1955 = vmatprep.subr.mxu0 0.0
    %1956 = vmatpush1.msra.mxu0 0.0
    %1957 = vmatprep.subr.mxu0 0.0
    %1958 = vmatpush1.msra.mxu0 0.0
    %1959 = vmatprep.subr.mxu0 0.0
    %1960 = vmatpush1.msra.mxu0 0.0
    %1961 = vmatprep.subr.mxu0 0.0
    %1962 = vmatpush1.msra.mxu0 0.0
    %1963 = vmatprep.subr.mxu0 0.0
    %1964 = vmatpush1.msra.mxu0 0.0
    %1965 = vmatprep.subr.mxu0 0.0
    %1966 = vmatpush1.msra.mxu0 0.0
    %1967 = vmatprep.subr.mxu0 0.0
    %1968 = vmatpush1.msra.mxu0 0.0
    %1969 = vmatprep.subr.mxu0 0.0
    %1970 = vmatpush1.msra.mxu0 0.0
    %1971 = vmatprep.subr.mxu0 0.0
    %1972 = vmatpush1.msra.mxu0 0.0
    %1973 = vmatprep.subr.mxu0 0.0
    %1974 = vmatpush1.msra.mxu0 0.0
    %1975 = vmatprep.subr.mxu0 0.0
    %1976 = vmatpush1.msra.mxu0 0.0
    %1977 = vmatprep.subr.mxu0 0.0
    %1978 = vmatpush1.msra.mxu0 0.0
    %1979 = vmatprep.subr.mxu0 0.0
    %1980 = vmatpush1.msra.mxu0 0.0
    %1981 = vmatprep.subr.mxu0 %v1949
    %1982 = vmatpush1.msra.mxu0 %v1947
    %1983 = vmatprep.subr.mxu0 0.0
    %1984 = vmatpush2.msra.mxu0 0.0
    %1985 = vmatprep.subr.mxu0 0.0
    %1986 = vmatpush2.msra.mxu0 0.0
    %1987 = vmatprep.subr.mxu0 0.0
    %1988 = vmatpush2.msra.mxu0 0.0
    %1989 = vmatprep.subr.mxu0 0.0
    %1990 = vmatpush2.msra.mxu0 0.0
    %1991 = vmatprep.subr.mxu0 0.0
    %1992 = vmatpush2.msra.mxu0 0.0
    %1993 = vmatprep.subr.mxu0 0.0
    %1994 = vmatpush2.msra.mxu0 0.0
    %1995 = vmatprep.subr.mxu0 0.0
    %1996 = vmatpush2.msra.mxu0 0.0
    %1997 = vmatprep.subr.mxu0 0.0
    %1998 = vmatpush2.msra.mxu0 0.0
    %1999 = vmatprep.subr.mxu0 0.0
    %2000 = vmatpush2.msra.mxu0 0.0
    %2001 = vmatprep.subr.mxu0 0.0
    %2002 = vmatpush2.msra.mxu0 0.0
    %2003 = vmatprep.subr.mxu0 0.0
    %2004 = vmatpush2.msra.mxu0 0.0
    %2005 = vmatprep.subr.mxu0 0.0
    %2006 = vmatpush2.msra.mxu0 0.0
    %2007 = vmatprep.subr.mxu0 0.0
    %2008 = vmatpush2.msra.mxu0 0.0
    %2009 = vmatprep.subr.mxu0 0.0
    %2010 = vmatpush2.msra.mxu0 0.0
    %2011 = vmatprep.subr.mxu0 0.0
    %2012 = vmatpush2.msra.mxu0 0.0
    %2013 = vmatprep.subr.mxu0 0.0
    %2014 = vmatpush2.msra.mxu0 0.0
    %2015 = vmatprep.mubr.f32.mxu0 0.0
    %2016 = vmatmul.mubr.f32.gmra.mxu0 %v1945
    %v2017 = vpop.f32.mrf.mxu0
    %v2018 = vadd.f32 %v1940, %v2017
    %v2019 = vpop.f32.mrf.mxu0
    %v2020 = vadd.f32 %v1942, %v2019
    %2021 = vdwg.mxu0
    %v2022 = vld [vmem:[#allocation2] sm:$0xff]
    %v2023 = vld [vmem:[#allocation2 + $0x8] sm:$0xf]
    %v2024 = vld [vmem:[%s234] sm:$0xff]
    %v2027 = vcombine.high %v2022, %v2022
    %2028 = vrot.lane.b32.xlu0 %v2022, 96
    %v2029 = vpop.permute.xlu0 %2028
    %2030 = vrot.lane.b32.xlu0 %v2027, 96
    %v2031 = vpop.permute.xlu0 %2030
    %2032 = vrot.lane.b32.xlu0 %v2023, 96
    %v2033 = vpop.permute.xlu0 %2032
    %v2034 = vsel %vm245, %v2029, %v2031
    %v2035 = vsel %vm245, %v2031, %v2033
    %v2037 = vsel %vm74, %v2024, 0
    %v2039 = vsel %vm78, %v2034, 0
    %v2041 = vsel %vm78, %v2035, 0
    %2043 = vmatprep.subr.mxu0 0.0
    %2044 = vmatpush1.msra.mxu0 0.0
    %2045 = vmatprep.subr.mxu0 0.0
    %2046 = vmatpush1.msra.mxu0 0.0
    %2047 = vmatprep.subr.mxu0 0.0
    %2048 = vmatpush1.msra.mxu0 0.0
    %2049 = vmatprep.subr.mxu0 0.0
    %2050 = vmatpush1.msra.mxu0 0.0
    %2051 = vmatprep.subr.mxu0 0.0
    %2052 = vmatpush1.msra.mxu0 0.0
    %2053 = vmatprep.subr.mxu0 0.0
    %2054 = vmatpush1.msra.mxu0 0.0
    %2055 = vmatprep.subr.mxu0 0.0
    %2056 = vmatpush1.msra.mxu0 0.0
    %2057 = vmatprep.subr.mxu0 0.0
    %2058 = vmatpush1.msra.mxu0 0.0
    %2059 = vmatprep.subr.mxu0 0.0
    %2060 = vmatpush1.msra.mxu0 0.0
    %2061 = vmatprep.subr.mxu0 0.0
    %2062 = vmatpush1.msra.mxu0 0.0
    %2063 = vmatprep.subr.mxu0 0.0
    %2064 = vmatpush1.msra.mxu0 0.0
    %2065 = vmatprep.subr.mxu0 0.0
    %2066 = vmatpush1.msra.mxu0 0.0
    %2067 = vmatprep.subr.mxu0 0.0
    %2068 = vmatpush1.msra.mxu0 0.0
    %2069 = vmatprep.subr.mxu0 0.0
    %2070 = vmatpush1.msra.mxu0 0.0
    %2071 = vmatprep.subr.mxu0 0.0
    %2072 = vmatpush1.msra.mxu0 0.0
    %2073 = vmatprep.subr.mxu0 %v2041
    %2074 = vmatpush1.msra.mxu0 %v2039
    %2075 = vmatprep.subr.mxu0 0.0
    %2076 = vmatpush2.msra.mxu0 0.0
    %2077 = vmatprep.subr.mxu0 0.0
    %2078 = vmatpush2.msra.mxu0 0.0
    %2079 = vmatprep.subr.mxu0 0.0
    %2080 = vmatpush2.msra.mxu0 0.0
    %2081 = vmatprep.subr.mxu0 0.0
    %2082 = vmatpush2.msra.mxu0 0.0
    %2083 = vmatprep.subr.mxu0 0.0
    %2084 = vmatpush2.msra.mxu0 0.0
    %2085 = vmatprep.subr.mxu0 0.0
    %2086 = vmatpush2.msra.mxu0 0.0
    %2087 = vmatprep.subr.mxu0 0.0
    %2088 = vmatpush2.msra.mxu0 0.0
    %2089 = vmatprep.subr.mxu0 0.0
    %2090 = vmatpush2.msra.mxu0 0.0
    %2091 = vmatprep.subr.mxu0 0.0
    %2092 = vmatpush2.msra.mxu0 0.0
    %2093 = vmatprep.subr.mxu0 0.0
    %2094 = vmatpush2.msra.mxu0 0.0
    %2095 = vmatprep.subr.mxu0 0.0
    %2096 = vmatpush2.msra.mxu0 0.0
    %2097 = vmatprep.subr.mxu0 0.0
    %2098 = vmatpush2.msra.mxu0 0.0
    %2099 = vmatprep.subr.mxu0 0.0
    %2100 = vmatpush2.msra.mxu0 0.0
    %2101 = vmatprep.subr.mxu0 0.0
    %2102 = vmatpush2.msra.mxu0 0.0
    %2103 = vmatprep.subr.mxu0 0.0
    %2104 = vmatpush2.msra.mxu0 0.0
    %2105 = vmatprep.subr.mxu0 0.0
    %2106 = vmatpush2.msra.mxu0 0.0
    %2107 = vmatprep.mubr.f32.mxu0 0.0
    %2108 = vmatmul.mubr.f32.gmra.mxu0 %v2037
    %v2109 = vpop.f32.mrf.mxu0
    %v2110 = vadd.f32 0.0, %v2109
    %v2111 = vpop.f32.mrf.mxu0
    %v2112 = vadd.f32 0.0, %v2111
    %2113 = vdwg.mxu0
    %v2114 = vadd.f32 %v2018, %v2110
    %v2115 = vadd.f32 %v2020, %v2112
    %v2116 = vmul.f32 %v2114, %v332
    %v2117 = vmul.f32 %v2115, %v336
    %v2118 = vld [vmem:[#allocation2] sm:$0xff]
    %v2119 = vld [vmem:[#allocation2 + $0x8] sm:$0xf]
    %v2120 = vld [vmem:[%s343] sm:$0xff]
    %v2121 = vld [vmem:[%s345] sm:$0xff]
    %v2124 = vcombine.high %v2118, %v2118
    %2125 = vrot.lane.b32.xlu0 %v2118, 111
    %v2126 = vpop.permute.xlu0 %2125
    %2127 = vrot.lane.b32.xlu0 %v2124, 111
    %v2128 = vpop.permute.xlu0 %2127
    %2129 = vrot.lane.b32.xlu0 %v2119, 111
    %v2130 = vpop.permute.xlu0 %2129
    %v2131 = vsel %vm356, %v2126, %v2128
    %v2132 = vsel %vm356, %v2128, %v2130
    %v2134 = vsel %vm74, %v2121, 0
    %v2136 = vsel %vm78, %v2131, 0
    %v2138 = vsel %vm78, %v2132, 0
    %2140 = vmatprep.subr.mxu0 0.0
    %2141 = vmatpush1.msra.mxu0 0.0
    %2142 = vmatprep.subr.mxu0 0.0
    %2143 = vmatpush1.msra.mxu0 0.0
    %2144 = vmatprep.subr.mxu0 0.0
    %2145 = vmatpush1.msra.mxu0 0.0
    %2146 = vmatprep.subr.mxu0 0.0
    %2147 = vmatpush1.msra.mxu0 0.0
    %2148 = vmatprep.subr.mxu0 0.0
    %2149 = vmatpush1.msra.mxu0 0.0
    %2150 = vmatprep.subr.mxu0 0.0
    %2151 = vmatpush1.msra.mxu0 0.0
    %2152 = vmatprep.subr.mxu0 0.0
    %2153 = vmatpush1.msra.mxu0 0.0
    %2154 = vmatprep.subr.mxu0 0.0
    %2155 = vmatpush1.msra.mxu0 0.0
    %2156 = vmatprep.subr.mxu0 0.0
    %2157 = vmatpush1.msra.mxu0 0.0
    %2158 = vmatprep.subr.mxu0 0.0
    %2159 = vmatpush1.msra.mxu0 0.0
    %2160 = vmatprep.subr.mxu0 0.0
    %2161 = vmatpush1.msra.mxu0 0.0
    %2162 = vmatprep.subr.mxu0 0.0
    %2163 = vmatpush1.msra.mxu0 0.0
    %2164 = vmatprep.subr.mxu0 0.0
    %2165 = vmatpush1.msra.mxu0 0.0
    %2166 = vmatprep.subr.mxu0 0.0
    %2167 = vmatpush1.msra.mxu0 0.0
    %2168 = vmatprep.subr.mxu0 0.0
    %2169 = vmatpush1.msra.mxu0 0.0
    %2170 = vmatprep.subr.mxu0 %v2138
    %2171 = vmatpush1.msra.mxu0 %v2136
    %2172 = vmatprep.subr.mxu0 0.0
    %2173 = vmatpush2.msra.mxu0 0.0
    %2174 = vmatprep.subr.mxu0 0.0
    %2175 = vmatpush2.msra.mxu0 0.0
    %2176 = vmatprep.subr.mxu0 0.0
    %2177 = vmatpush2.msra.mxu0 0.0
    %2178 = vmatprep.subr.mxu0 0.0
    %2179 = vmatpush2.msra.mxu0 0.0
    %2180 = vmatprep.subr.mxu0 0.0
    %2181 = vmatpush2.msra.mxu0 0.0
    %2182 = vmatprep.subr.mxu0 0.0
    %2183 = vmatpush2.msra.mxu0 0.0
    %2184 = vmatprep.subr.mxu0 0.0
    %2185 = vmatpush2.msra.mxu0 0.0
    %2186 = vmatprep.subr.mxu0 0.0
    %2187 = vmatpush2.msra.mxu0 0.0
    %2188 = vmatprep.subr.mxu0 0.0
    %2189 = vmatpush2.msra.mxu0 0.0
    %2190 = vmatprep.subr.mxu0 0.0
    %2191 = vmatpush2.msra.mxu0 0.0
    %2192 = vmatprep.subr.mxu0 0.0
    %2193 = vmatpush2.msra.mxu0 0.0
    %2194 = vmatprep.subr.mxu0 0.0
    %2195 = vmatpush2.msra.mxu0 0.0
    %2196 = vmatprep.subr.mxu0 0.0
    %2197 = vmatpush2.msra.mxu0 0.0
    %2198 = vmatprep.subr.mxu0 0.0
    %2199 = vmatpush2.msra.mxu0 0.0
    %2200 = vmatprep.subr.mxu0 0.0
    %2201 = vmatpush2.msra.mxu0 0.0
    %2202 = vmatprep.subr.mxu0 0.0
    %2203 = vmatpush2.msra.mxu0 0.0
    %2204 = vmatprep.mubr.f32.mxu0 0.0
    %2205 = vmatmul.mubr.f32.gmra.mxu0 %v2134
    %v2206 = vpop.f32.mrf.mxu0
    %v2207 = vadd.f32 0.0, %v2206
    %v2208 = vpop.f32.mrf.mxu0
    %v2209 = vadd.f32 0.0, %v2208
    %2210 = vdwg.mxu0
    %2211 = vrot.lane.b32.xlu0 %v2118, 127
    %v2212 = vpop.permute.xlu0 %2211
    %2213 = vrot.lane.b32.xlu0 %v2124, 127
    %v2214 = vpop.permute.xlu0 %2213
    %2215 = vrot.lane.b32.xlu0 %v2119, 127
    %v2216 = vpop.permute.xlu0 %2215
    %v2217 = vsel %vm443, %v2212, %v2214
    %v2218 = vsel %vm443, %v2214, %v2216
    %v2220 = vsel %vm74, %v2120, 0
    %v2222 = vsel %vm78, %v2217, 0
    %v2224 = vsel %vm78, %v2218, 0
    %2226 = vmatprep.subr.mxu0 0.0
    %2227 = vmatpush1.msra.mxu0 0.0
    %2228 = vmatprep.subr.mxu0 0.0
    %2229 = vmatpush1.msra.mxu0 0.0
    %2230 = vmatprep.subr.mxu0 0.0
    %2231 = vmatpush1.msra.mxu0 0.0
    %2232 = vmatprep.subr.mxu0 0.0
    %2233 = vmatpush1.msra.mxu0 0.0
    %2234 = vmatprep.subr.mxu0 0.0
    %2235 = vmatpush1.msra.mxu0 0.0
    %2236 = vmatprep.subr.mxu0 0.0
    %2237 = vmatpush1.msra.mxu0 0.0
    %2238 = vmatprep.subr.mxu0 0.0
    %2239 = vmatpush1.msra.mxu0 0.0
    %2240 = vmatprep.subr.mxu0 0.0
    %2241 = vmatpush1.msra.mxu0 0.0
    %2242 = vmatprep.subr.mxu0 0.0
    %2243 = vmatpush1.msra.mxu0 0.0
    %2244 = vmatprep.subr.mxu0 0.0
    %2245 = vmatpush1.msra.mxu0 0.0
    %2246 = vmatprep.subr.mxu0 0.0
    %2247 = vmatpush1.msra.mxu0 0.0
    %2248 = vmatprep.subr.mxu0 0.0
    %2249 = vmatpush1.msra.mxu0 0.0
    %2250 = vmatprep.subr.mxu0 0.0
    %2251 = vmatpush1.msra.mxu0 0.0
    %2252 = vmatprep.subr.mxu0 0.0
    %2253 = vmatpush1.msra.mxu0 0.0
    %2254 = vmatprep.subr.mxu0 0.0
    %2255 = vmatpush1.msra.mxu0 0.0
    %2256 = vmatprep.subr.mxu0 %v2224
    %2257 = vmatpush1.msra.mxu0 %v2222
    %2258 = vmatprep.subr.mxu0 0.0
    %2259 = vmatpush2.msra.mxu0 0.0
    %2260 = vmatprep.subr.mxu0 0.0
    %2261 = vmatpush2.msra.mxu0 0.0
    %2262 = vmatprep.subr.mxu0 0.0
    %2263 = vmatpush2.msra.mxu0 0.0
    %2264 = vmatprep.subr.mxu0 0.0
    %2265 = vmatpush2.msra.mxu0 0.0
    %2266 = vmatprep.subr.mxu0 0.0
    %2267 = vmatpush2.msra.mxu0 0.0
    %2268 = vmatprep.subr.mxu0 0.0
    %2269 = vmatpush2.msra.mxu0 0.0
    %2270 = vmatprep.subr.mxu0 0.0
    %2271 = vmatpush2.msra.mxu0 0.0
    %2272 = vmatprep.subr.mxu0 0.0
    %2273 = vmatpush2.msra.mxu0 0.0
    %2274 = vmatprep.subr.mxu0 0.0
    %2275 = vmatpush2.msra.mxu0 0.0
    %2276 = vmatprep.subr.mxu0 0.0
    %2277 = vmatpush2.msra.mxu0 0.0
    %2278 = vmatprep.subr.mxu0 0.0
    %2279 = vmatpush2.msra.mxu0 0.0
    %2280 = vmatprep.subr.mxu0 0.0
    %2281 = vmatpush2.msra.mxu0 0.0
    %2282 = vmatprep.subr.mxu0 0.0
    %2283 = vmatpush2.msra.mxu0 0.0
    %2284 = vmatprep.subr.mxu0 0.0
    %2285 = vmatpush2.msra.mxu0 0.0
    %2286 = vmatprep.subr.mxu0 0.0
    %2287 = vmatpush2.msra.mxu0 0.0
    %2288 = vmatprep.subr.mxu0 0.0
    %2289 = vmatpush2.msra.mxu0 0.0
    %2290 = vmatprep.mubr.f32.mxu0 0.0
    %2291 = vmatmul.mubr.f32.gmra.mxu0 %v2220
    %v2292 = vpop.f32.mrf.mxu0
    %v2293 = vadd.f32 %v2207, %v2292
    %v2294 = vpop.f32.mrf.mxu0
    %v2295 = vadd.f32 %v2209, %v2294
    %2296 = vdwg.mxu0
    %v2297 = vld [vmem:[#allocation2] sm:$0xff]
    %v2298 = vld [vmem:[#allocation2 + $0x8] sm:$0xf]
    %v2299 = vld [vmem:[%s526] sm:$0xff]
    %v2302 = vcombine.high %v2297, %v2297
    %2303 = vrot.lane.b32.xlu0 %v2297, 95
    %v2304 = vpop.permute.xlu0 %2303
    %2305 = vrot.lane.b32.xlu0 %v2302, 95
    %v2306 = vpop.permute.xlu0 %2305
    %2307 = vrot.lane.b32.xlu0 %v2298, 95
    %v2308 = vpop.permute.xlu0 %2307
    %v2309 = vsel %vm537, %v2304, %v2306
    %v2310 = vsel %vm537, %v2306, %v2308
    %v2312 = vsel %vm74, %v2299, 0
    %v2314 = vsel %vm78, %v2309, 0
    %v2316 = vsel %vm78, %v2310, 0
    %2318 = vmatprep.subr.mxu0 0.0
    %2319 = vmatpush1.msra.mxu0 0.0
    %2320 = vmatprep.subr.mxu0 0.0
    %2321 = vmatpush1.msra.mxu0 0.0
    %2322 = vmatprep.subr.mxu0 0.0
    %2323 = vmatpush1.msra.mxu0 0.0
    %2324 = vmatprep.subr.mxu0 0.0
    %2325 = vmatpush1.msra.mxu0 0.0
    %2326 = vmatprep.subr.mxu0 0.0
    %2327 = vmatpush1.msra.mxu0 0.0
    %2328 = vmatprep.subr.mxu0 0.0
    %2329 = vmatpush1.msra.mxu0 0.0
    %2330 = vmatprep.subr.mxu0 0.0
    %2331 = vmatpush1.msra.mxu0 0.0
    %2332 = vmatprep.subr.mxu0 0.0
    %2333 = vmatpush1.msra.mxu0 0.0
    %2334 = vmatprep.subr.mxu0 0.0
    %2335 = vmatpush1.msra.mxu0 0.0
    %2336 = vmatprep.subr.mxu0 0.0
    %2337 = vmatpush1.msra.mxu0 0.0
    %2338 = vmatprep.subr.mxu0 0.0
    %2339 = vmatpush1.msra.mxu0 0.0
    %2340 = vmatprep.subr.mxu0 0.0
    %2341 = vmatpush1.msra.mxu0 0.0
    %2342 = vmatprep.subr.mxu0 0.0
    %2343 = vmatpush1.msra.mxu0 0.0
    %2344 = vmatprep.subr.mxu0 0.0
    %2345 = vmatpush1.msra.mxu0 0.0
    %2346 = vmatprep.subr.mxu0 0.0
    %2347 = vmatpush1.msra.mxu0 0.0
    %2348 = vmatprep.subr.mxu0 %v2316
    %2349 = vmatpush1.msra.mxu0 %v2314
    %2350 = vmatprep.subr.mxu0 0.0
    %2351 = vmatpush2.msra.mxu0 0.0
    %2352 = vmatprep.subr.mxu0 0.0
    %2353 = vmatpush2.msra.mxu0 0.0
    %2354 = vmatprep.subr.mxu0 0.0
    %2355 = vmatpush2.msra.mxu0 0.0
    %2356 = vmatprep.subr.mxu0 0.0
    %2357 = vmatpush2.msra.mxu0 0.0
    %2358 = vmatprep.subr.mxu0 0.0
    %2359 = vmatpush2.msra.mxu0 0.0
    %2360 = vmatprep.subr.mxu0 0.0
    %2361 = vmatpush2.msra.mxu0 0.0
    %2362 = vmatprep.subr.mxu0 0.0
    %2363 = vmatpush2.msra.mxu0 0.0
    %2364 = vmatprep.subr.mxu0 0.0
    %2365 = vmatpush2.msra.mxu0 0.0
    %2366 = vmatprep.subr.mxu0 0.0
    %2367 = vmatpush2.msra.mxu0 0.0
    %2368 = vmatprep.subr.mxu0 0.0
    %2369 = vmatpush2.msra.mxu0 0.0
    %2370 = vmatprep.subr.mxu0 0.0
    %2371 = vmatpush2.msra.mxu0 0.0
    %2372 = vmatprep.subr.mxu0 0.0
    %2373 = vmatpush2.msra.mxu0 0.0
    %2374 = vmatprep.subr.mxu0 0.0
    %2375 = vmatpush2.msra.mxu0 0.0
    %2376 = vmatprep.subr.mxu0 0.0
    %2377 = vmatpush2.msra.mxu0 0.0
    %2378 = vmatprep.subr.mxu0 0.0
    %2379 = vmatpush2.msra.mxu0 0.0
    %2380 = vmatprep.subr.mxu0 0.0
    %2381 = vmatpush2.msra.mxu0 0.0
    %2382 = vmatprep.mubr.f32.mxu0 0.0
    %2383 = vmatmul.mubr.f32.gmra.mxu0 %v2312
    %v2384 = vpop.f32.mrf.mxu0
    %v2385 = vadd.f32 0.0, %v2384
    %v2386 = vpop.f32.mrf.mxu0
    %v2387 = vadd.f32 0.0, %v2386
    %2388 = vdwg.mxu0
    %v2389 = vadd.f32 %v2293, %v2385
    %v2390 = vadd.f32 %v2295, %v2387
    %v2391 = vadd.f32 %v2116, %v2389
    %v2392 = vadd.f32 %v2117, %v2390
    %v2393 = vld [vmem:[#allocation2] sm:$0xff]
    %v2394 = vld [vmem:[#allocation2 + $0x8] sm:$0xf]
    %v2395 = vld [vmem:[%s624] sm:$0xff]
    %v2396 = vld [vmem:[%s626] sm:$0xff]
    %v2399 = vcombine.high %v2393, %v2393
    %2400 = vrot.lane.b32.xlu0 %v2393, 110
    %v2401 = vpop.permute.xlu0 %2400
    %2402 = vrot.lane.b32.xlu0 %v2399, 110
    %v2403 = vpop.permute.xlu0 %2402
    %2404 = vrot.lane.b32.xlu0 %v2394, 110
    %v2405 = vpop.permute.xlu0 %2404
    %v2406 = vsel %vm637, %v2401, %v2403
    %v2407 = vsel %vm637, %v2403, %v2405
    %v2409 = vsel %vm74, %v2396, 0
    %v2411 = vsel %vm78, %v2406, 0
    %v2413 = vsel %vm78, %v2407, 0
    %2415 = vmatprep.subr.mxu0 0.0
    %2416 = vmatpush1.msra.mxu0 0.0
    %2417 = vmatprep.subr.mxu0 0.0
    %2418 = vmatpush1.msra.mxu0 0.0
    %2419 = vmatprep.subr.mxu0 0.0
    %2420 = vmatpush1.msra.mxu0 0.0
    %2421 = vmatprep.subr.mxu0 0.0
    %2422 = vmatpush1.msra.mxu0 0.0
    %2423 = vmatprep.subr.mxu0 0.0
    %2424 = vmatpush1.msra.mxu0 0.0
    %2425 = vmatprep.subr.mxu0 0.0
    %2426 = vmatpush1.msra.mxu0 0.0
    %2427 = vmatprep.subr.mxu0 0.0
    %2428 = vmatpush1.msra.mxu0 0.0
    %2429 = vmatprep.subr.mxu0 0.0
    %2430 = vmatpush1.msra.mxu0 0.0
    %2431 = vmatprep.subr.mxu0 0.0
    %2432 = vmatpush1.msra.mxu0 0.0
    %2433 = vmatprep.subr.mxu0 0.0
    %2434 = vmatpush1.msra.mxu0 0.0
    %2435 = vmatprep.subr.mxu0 0.0
    %2436 = vmatpush1.msra.mxu0 0.0
    %2437 = vmatprep.subr.mxu0 0.0
    %2438 = vmatpush1.msra.mxu0 0.0
    %2439 = vmatprep.subr.mxu0 0.0
    %2440 = vmatpush1.msra.mxu0 0.0
    %2441 = vmatprep.subr.mxu0 0.0
    %2442 = vmatpush1.msra.mxu0 0.0
    %2443 = vmatprep.subr.mxu0 0.0
    %2444 = vmatpush1.msra.mxu0 0.0
    %2445 = vmatprep.subr.mxu0 %v2413
    %2446 = vmatpush1.msra.mxu0 %v2411
    %2447 = vmatprep.subr.mxu0 0.0
    %2448 = vmatpush2.msra.mxu0 0.0
    %2449 = vmatprep.subr.mxu0 0.0
    %2450 = vmatpush2.msra.mxu0 0.0
    %2451 = vmatprep.subr.mxu0 0.0
    %2452 = vmatpush2.msra.mxu0 0.0
    %2453 = vmatprep.subr.mxu0 0.0
    %2454 = vmatpush2.msra.mxu0 0.0
    %2455 = vmatprep.subr.mxu0 0.0
    %2456 = vmatpush2.msra.mxu0 0.0
    %2457 = vmatprep.subr.mxu0 0.0
    %2458 = vmatpush2.msra.mxu0 0.0
    %2459 = vmatprep.subr.mxu0 0.0
    %2460 = vmatpush2.msra.mxu0 0.0
    %2461 = vmatprep.subr.mxu0 0.0
    %2462 = vmatpush2.msra.mxu0 0.0
    %2463 = vmatprep.subr.mxu0 0.0
    %2464 = vmatpush2.msra.mxu0 0.0
    %2465 = vmatprep.subr.mxu0 0.0
    %2466 = vmatpush2.msra.mxu0 0.0
    %2467 = vmatprep.subr.mxu0 0.0
    %2468 = vmatpush2.msra.mxu0 0.0
    %2469 = vmatprep.subr.mxu0 0.0
    %2470 = vmatpush2.msra.mxu0 0.0
    %2471 = vmatprep.subr.mxu0 0.0
    %2472 = vmatpush2.msra.mxu0 0.0
    %2473 = vmatprep.subr.mxu0 0.0
    %2474 = vmatpush2.msra.mxu0 0.0
    %2475 = vmatprep.subr.mxu0 0.0
    %2476 = vmatpush2.msra.mxu0 0.0
    %2477 = vmatprep.subr.mxu0 0.0
    %2478 = vmatpush2.msra.mxu0 0.0
    %2479 = vmatprep.mubr.f32.mxu0 0.0
    %2480 = vmatmul.mubr.f32.gmra.mxu0 %v2409
    %v2481 = vpop.f32.mrf.mxu0
    %v2482 = vadd.f32 0.0, %v2481
    %v2483 = vpop.f32.mrf.mxu0
    %v2484 = vadd.f32 0.0, %v2483
    %2485 = vdwg.mxu0
    %2486 = vrot.lane.b32.xlu0 %v2393, 126
    %v2487 = vpop.permute.xlu0 %2486
    %2488 = vrot.lane.b32.xlu0 %v2399, 126
    %v2489 = vpop.permute.xlu0 %2488
    %2490 = vrot.lane.b32.xlu0 %v2394, 126
    %v2491 = vpop.permute.xlu0 %2490
    %v2492 = vsel %vm724, %v2487, %v2489
    %v2493 = vsel %vm724, %v2489, %v2491
    %v2495 = vsel %vm74, %v2395, 0
    %v2497 = vsel %vm78, %v2492, 0
    %v2499 = vsel %vm78, %v2493, 0
    %2501 = vmatprep.subr.mxu0 0.0
    %2502 = vmatpush1.msra.mxu0 0.0
    %2503 = vmatprep.subr.mxu0 0.0
    %2504 = vmatpush1.msra.mxu0 0.0
    %2505 = vmatprep.subr.mxu0 0.0
    %2506 = vmatpush1.msra.mxu0 0.0
    %2507 = vmatprep.subr.mxu0 0.0
    %2508 = vmatpush1.msra.mxu0 0.0
    %2509 = vmatprep.subr.mxu0 0.0
    %2510 = vmatpush1.msra.mxu0 0.0
    %2511 = vmatprep.subr.mxu0 0.0
    %2512 = vmatpush1.msra.mxu0 0.0
    %2513 = vmatprep.subr.mxu0 0.0
    %2514 = vmatpush1.msra.mxu0 0.0
    %2515 = vmatprep.subr.mxu0 0.0
    %2516 = vmatpush1.msra.mxu0 0.0
    %2517 = vmatprep.subr.mxu0 0.0
    %2518 = vmatpush1.msra.mxu0 0.0
    %2519 = vmatprep.subr.mxu0 0.0
    %2520 = vmatpush1.msra.mxu0 0.0
    %2521 = vmatprep.subr.mxu0 0.0
    %2522 = vmatpush1.msra.mxu0 0.0
    %2523 = vmatprep.subr.mxu0 0.0
    %2524 = vmatpush1.msra.mxu0 0.0
    %2525 = vmatprep.subr.mxu0 0.0
    %2526 = vmatpush1.msra.mxu0 0.0
    %2527 = vmatprep.subr.mxu0 0.0
    %2528 = vmatpush1.msra.mxu0 0.0
    %2529 = vmatprep.subr.mxu0 0.0
    %2530 = vmatpush1.msra.mxu0 0.0
    %2531 = vmatprep.subr.mxu0 %v2499
    %2532 = vmatpush1.msra.mxu0 %v2497
    %2533 = vmatprep.subr.mxu0 0.0
    %2534 = vmatpush2.msra.mxu0 0.0
    %2535 = vmatprep.subr.mxu0 0.0
    %2536 = vmatpush2.msra.mxu0 0.0
    %2537 = vmatprep.subr.mxu0 0.0
    %2538 = vmatpush2.msra.mxu0 0.0
    %2539 = vmatprep.subr.mxu0 0.0
    %2540 = vmatpush2.msra.mxu0 0.0
    %2541 = vmatprep.subr.mxu0 0.0
    %2542 = vmatpush2.msra.mxu0 0.0
    %2543 = vmatprep.subr.mxu0 0.0
    %2544 = vmatpush2.msra.mxu0 0.0
    %2545 = vmatprep.subr.mxu0 0.0
    %2546 = vmatpush2.msra.mxu0 0.0
    %2547 = vmatprep.subr.mxu0 0.0
    %2548 = vmatpush2.msra.mxu0 0.0
    %2549 = vmatprep.subr.mxu0 0.0
    %2550 = vmatpush2.msra.mxu0 0.0
    %2551 = vmatprep.subr.mxu0 0.0
    %2552 = vmatpush2.msra.mxu0 0.0
    %2553 = vmatprep.subr.mxu0 0.0
    %2554 = vmatpush2.msra.mxu0 0.0
    %2555 = vmatprep.subr.mxu0 0.0
    %2556 = vmatpush2.msra.mxu0 0.0
    %2557 = vmatprep.subr.mxu0 0.0
    %2558 = vmatpush2.msra.mxu0 0.0
    %2559 = vmatprep.subr.mxu0 0.0
    %2560 = vmatpush2.msra.mxu0 0.0
    %2561 = vmatprep.subr.mxu0 0.0
    %2562 = vmatpush2.msra.mxu0 0.0
    %2563 = vmatprep.subr.mxu0 0.0
    %2564 = vmatpush2.msra.mxu0 0.0
    %2565 = vmatprep.mubr.f32.mxu0 0.0
    %2566 = vmatmul.mubr.f32.gmra.mxu0 %v2495
    %v2567 = vpop.f32.mrf.mxu0
    %v2568 = vadd.f32 %v2482, %v2567
    %v2569 = vpop.f32.mrf.mxu0
    %v2570 = vadd.f32 %v2484, %v2569
    %2571 = vdwg.mxu0
    %v2572 = vld [vmem:[#allocation2] sm:$0xff]
    %v2573 = vld [vmem:[#allocation2 + $0x8] sm:$0xf]
    %v2574 = vld [vmem:[%s807] sm:$0xff]
    %v2577 = vcombine.high %v2572, %v2572
    %2578 = vrot.lane.b32.xlu0 %v2572, 94
    %v2579 = vpop.permute.xlu0 %2578
    %2580 = vrot.lane.b32.xlu0 %v2577, 94
    %v2581 = vpop.permute.xlu0 %2580
    %2582 = vrot.lane.b32.xlu0 %v2573, 94
    %v2583 = vpop.permute.xlu0 %2582
    %v2584 = vsel %vm818, %v2579, %v2581
    %v2585 = vsel %vm818, %v2581, %v2583
    %v2587 = vsel %vm74, %v2574, 0
    %v2589 = vsel %vm78, %v2584, 0
    %v2591 = vsel %vm78, %v2585, 0
    %2593 = vmatprep.subr.mxu0 0.0
    %2594 = vmatpush1.msra.mxu0 0.0
    %2595 = vmatprep.subr.mxu0 0.0
    %2596 = vmatpush1.msra.mxu0 0.0
    %2597 = vmatprep.subr.mxu0 0.0
    %2598 = vmatpush1.msra.mxu0 0.0
    %2599 = vmatprep.subr.mxu0 0.0
    %2600 = vmatpush1.msra.mxu0 0.0
    %2601 = vmatprep.subr.mxu0 0.0
    %2602 = vmatpush1.msra.mxu0 0.0
    %2603 = vmatprep.subr.mxu0 0.0
    %2604 = vmatpush1.msra.mxu0 0.0
    %2605 = vmatprep.subr.mxu0 0.0
    %2606 = vmatpush1.msra.mxu0 0.0
    %2607 = vmatprep.subr.mxu0 0.0
    %2608 = vmatpush1.msra.mxu0 0.0
    %2609 = vmatprep.subr.mxu0 0.0
    %2610 = vmatpush1.msra.mxu0 0.0
    %2611 = vmatprep.subr.mxu0 0.0
    %2612 = vmatpush1.msra.mxu0 0.0
    %2613 = vmatprep.subr.mxu0 0.0
    %2614 = vmatpush1.msra.mxu0 0.0
    %2615 = vmatprep.subr.mxu0 0.0
    %2616 = vmatpush1.msra.mxu0 0.0
    %2617 = vmatprep.subr.mxu0 0.0
    %2618 = vmatpush1.msra.mxu0 0.0
    %2619 = vmatprep.subr.mxu0 0.0
    %2620 = vmatpush1.msra.mxu0 0.0
    %2621 = vmatprep.subr.mxu0 0.0
    %2622 = vmatpush1.msra.mxu0 0.0
    %2623 = vmatprep.subr.mxu0 %v2591
    %2624 = vmatpush1.msra.mxu0 %v2589
    %2625 = vmatprep.subr.mxu0 0.0
    %2626 = vmatpush2.msra.mxu0 0.0
    %2627 = vmatprep.subr.mxu0 0.0
    %2628 = vmatpush2.msra.mxu0 0.0
    %2629 = vmatprep.subr.mxu0 0.0
    %2630 = vmatpush2.msra.mxu0 0.0
    %2631 = vmatprep.subr.mxu0 0.0
    %2632 = vmatpush2.msra.mxu0 0.0
    %2633 = vmatprep.subr.mxu0 0.0
    %2634 = vmatpush2.msra.mxu0 0.0
    %2635 = vmatprep.subr.mxu0 0.0
    %2636 = vmatpush2.msra.mxu0 0.0
    %2637 = vmatprep.subr.mxu0 0.0
    %2638 = vmatpush2.msra.mxu0 0.0
    %2639 = vmatprep.subr.mxu0 0.0
    %2640 = vmatpush2.msra.mxu0 0.0
    %2641 = vmatprep.subr.mxu0 0.0
    %2642 = vmatpush2.msra.mxu0 0.0
    %2643 = vmatprep.subr.mxu0 0.0
    %2644 = vmatpush2.msra.mxu0 0.0
    %2645 = vmatprep.subr.mxu0 0.0
    %2646 = vmatpush2.msra.mxu0 0.0
    %2647 = vmatprep.subr.mxu0 0.0
    %2648 = vmatpush2.msra.mxu0 0.0
    %2649 = vmatprep.subr.mxu0 0.0
    %2650 = vmatpush2.msra.mxu0 0.0
    %2651 = vmatprep.subr.mxu0 0.0
    %2652 = vmatpush2.msra.mxu0 0.0
    %2653 = vmatprep.subr.mxu0 0.0
    %2654 = vmatpush2.msra.mxu0 0.0
    %2655 = vmatprep.subr.mxu0 0.0
    %2656 = vmatpush2.msra.mxu0 0.0
    %2657 = vmatprep.mubr.f32.mxu0 0.0
    %2658 = vmatmul.mubr.f32.gmra.mxu0 %v2587
    %v2659 = vpop.f32.mrf.mxu0
    %v2660 = vadd.f32 0.0, %v2659
    %v2661 = vpop.f32.mrf.mxu0
    %v2662 = vadd.f32 0.0, %v2661
    %2663 = vdwg.mxu0
    %v2664 = vadd.f32 %v2568, %v2660
    %v2665 = vadd.f32 %v2570, %v2662
    %v2666 = vmul.f32 %v2664, %v905
    %v2667 = vmul.f32 %v2665, %v909
    %v2668 = vadd.f32 %v2391, %v2666
    %v2669 = vadd.f32 %v2392, %v2667
    %v2670 = vld [vmem:[%s2] sm:$0xff]
    %2672 = vset.pattern.permute.xlu0 0
    %2673 = vperm.xlu0 %2672, %v2670
    %v2674 = vpop.permute.xlu0 %2673
    %v2676 = vadd.f32 %v2668, %v2674
    %v2677 = vadd.f32 %v2669, %v2674
    %v2678 = vmax.f32 %v2676, 0.0
    %v2679 = vmax.f32 %v2677, 0.0
    %2682 = vrot.lane.b32.xlu0 %v2678, 17
    %v2683 = vpop.permute.xlu0 %2682
    %2684 = vrot.lane.b32.xlu0 %v2679, 17
    %v2685 = vpop.permute.xlu0 %2684
    %v2686 = vsel %vm34, %v2683, %v2685
    %2690 = vst.msk [vmem:[#allocation3] sm:$0xff] %vm936, %v2683
    %2691 = vst [vmem:[#allocation3 + $0x8] sm:$0xff] %v2686
    %2692 = vst.msk [vmem:[#allocation3 + $0x10] sm:$0xff] %vm34, %v2685
    %v2693 = vld [vmem:[#allocation3] sm:$0xff]
    %v2694 = vld [vmem:[#allocation3 + $0x8] sm:$0xff]
    %v2695 = vld [vmem:[%s3] sm:$0xff]
    %v2696 = vld [vmem:[#allocation3 + $0x10] sm:$0xff]
    %v2697 = vld [vmem:[%s944] sm:$0xff]
    %2701 = vrot.lane.b32.xlu0 %v2693, 112
    %v2702 = vpop.permute.xlu0 %2701
    %2703 = vrot.lane.b32.xlu0 %v2694, 112
    %v2704 = vpop.permute.xlu0 %2703
    %2705 = vrot.lane.b32.xlu0 %v2696, 112
    %v2706 = vpop.permute.xlu0 %2705
    %v2707 = vsel %vm71, %v2702, %v2704
    %v2708 = vsel %vm71, %v2704, %v2706
    %v2712 = vsel %vm959, %v2697, 0
    %2714 = vmatprep.subr.mxu0 0.0
    %2715 = vmatpush1.msra.mxu0 0.0
    %2716 = vmatprep.subr.mxu0 0.0
    %2717 = vmatpush1.msra.mxu0 0.0
    %2718 = vmatprep.subr.mxu0 0.0
    %2719 = vmatpush1.msra.mxu0 0.0
    %2720 = vmatprep.subr.mxu0 0.0
    %2721 = vmatpush1.msra.mxu0 0.0
    %2722 = vmatprep.subr.mxu0 0.0
    %2723 = vmatpush1.msra.mxu0 0.0
    %2724 = vmatprep.subr.mxu0 0.0
    %2725 = vmatpush1.msra.mxu0 0.0
    %2726 = vmatprep.subr.mxu0 0.0
    %2727 = vmatpush1.msra.mxu0 0.0
    %2728 = vmatprep.subr.mxu0 0.0
    %2729 = vmatpush1.msra.mxu0 0.0
    %2730 = vmatprep.subr.mxu0 0.0
    %2731 = vmatpush1.msra.mxu0 0.0
    %2732 = vmatprep.subr.mxu0 0.0
    %2733 = vmatpush1.msra.mxu0 0.0
    %2734 = vmatprep.subr.mxu0 0.0
    %2735 = vmatpush1.msra.mxu0 0.0
    %2736 = vmatprep.subr.mxu0 0.0
    %2737 = vmatpush1.msra.mxu0 0.0
    %2738 = vmatprep.subr.mxu0 0.0
    %2739 = vmatpush1.msra.mxu0 0.0
    %2740 = vmatprep.subr.mxu0 0.0
    %2741 = vmatpush1.msra.mxu0 0.0
    %2742 = vmatprep.subr.mxu0 0.0
    %2743 = vmatpush1.msra.mxu0 0.0
    %2744 = vmatprep.subr.mxu0 %v2708
    %2745 = vmatpush1.msra.mxu0 %v2707
    %2746 = vmatprep.subr.mxu0 0.0
    %2747 = vmatpush2.msra.mxu0 0.0
    %2748 = vmatprep.subr.mxu0 0.0
    %2749 = vmatpush2.msra.mxu0 0.0
    %2750 = vmatprep.subr.mxu0 0.0
    %2751 = vmatpush2.msra.mxu0 0.0
    %2752 = vmatprep.subr.mxu0 0.0
    %2753 = vmatpush2.msra.mxu0 0.0
    %2754 = vmatprep.subr.mxu0 0.0
    %2755 = vmatpush2.msra.mxu0 0.0
    %2756 = vmatprep.subr.mxu0 0.0
    %2757 = vmatpush2.msra.mxu0 0.0
    %2758 = vmatprep.subr.mxu0 0.0
    %2759 = vmatpush2.msra.mxu0 0.0
    %2760 = vmatprep.subr.mxu0 0.0
    %2761 = vmatpush2.msra.mxu0 0.0
    %2762 = vmatprep.subr.mxu0 0.0
    %2763 = vmatpush2.msra.mxu0 0.0
    %2764 = vmatprep.subr.mxu0 0.0
    %2765 = vmatpush2.msra.mxu0 0.0
    %2766 = vmatprep.subr.mxu0 0.0
    %2767 = vmatpush2.msra.mxu0 0.0
    %2768 = vmatprep.subr.mxu0 0.0
    %2769 = vmatpush2.msra.mxu0 0.0
    %2770 = vmatprep.subr.mxu0 0.0
    %2771 = vmatpush2.msra.mxu0 0.0
    %2772 = vmatprep.subr.mxu0 0.0
    %2773 = vmatpush2.msra.mxu0 0.0
    %2774 = vmatprep.subr.mxu0 0.0
    %2775 = vmatpush2.msra.mxu0 0.0
    %2776 = vmatprep.subr.mxu0 0.0
    %2777 = vmatpush2.msra.mxu0 0.0
    %2778 = vmatprep.mubr.f32.mxu0 0.0
    %2779 = vmatmul.mubr.f32.gmra.mxu0 %v2712
    %v2780 = vpop.f32.mrf.mxu0
    %v2781 = vadd.f32 0.0, %v2780
    %v2782 = vpop.f32.mrf.mxu0
    %v2783 = vadd.f32 0.0, %v2782
    %2784 = vdwg.mxu0
    %v2786 = vsel %vm959, %v2695, 0
    %2788 = vmatprep.subr.mxu0 0.0
    %2789 = vmatpush1.msra.mxu0 0.0
    %2790 = vmatprep.subr.mxu0 0.0
    %2791 = vmatpush1.msra.mxu0 0.0
    %2792 = vmatprep.subr.mxu0 0.0
    %2793 = vmatpush1.msra.mxu0 0.0
    %2794 = vmatprep.subr.mxu0 0.0
    %2795 = vmatpush1.msra.mxu0 0.0
    %2796 = vmatprep.subr.mxu0 0.0
    %2797 = vmatpush1.msra.mxu0 0.0
    %2798 = vmatprep.subr.mxu0 0.0
    %2799 = vmatpush1.msra.mxu0 0.0
    %2800 = vmatprep.subr.mxu0 0.0
    %2801 = vmatpush1.msra.mxu0 0.0
    %2802 = vmatprep.subr.mxu0 0.0
    %2803 = vmatpush1.msra.mxu0 0.0
    %2804 = vmatprep.subr.mxu0 0.0
    %2805 = vmatpush1.msra.mxu0 0.0
    %2806 = vmatprep.subr.mxu0 0.0
    %2807 = vmatpush1.msra.mxu0 0.0
    %2808 = vmatprep.subr.mxu0 0.0
    %2809 = vmatpush1.msra.mxu0 0.0
    %2810 = vmatprep.subr.mxu0 0.0
    %2811 = vmatpush1.msra.mxu0 0.0
    %2812 = vmatprep.subr.mxu0 0.0
    %2813 = vmatpush1.msra.mxu0 0.0
    %2814 = vmatprep.subr.mxu0 0.0
    %2815 = vmatpush1.msra.mxu0 0.0
    %2816 = vmatprep.subr.mxu0 0.0
    %2817 = vmatpush1.msra.mxu0 0.0
    %2818 = vmatprep.subr.mxu0 %v2694
    %2819 = vmatpush1.msra.mxu0 %v2693
    %2820 = vmatprep.subr.mxu0 0.0
    %2821 = vmatpush2.msra.mxu0 0.0
    %2822 = vmatprep.subr.mxu0 0.0
    %2823 = vmatpush2.msra.mxu0 0.0
    %2824 = vmatprep.subr.mxu0 0.0
    %2825 = vmatpush2.msra.mxu0 0.0
    %2826 = vmatprep.subr.mxu0 0.0
    %2827 = vmatpush2.msra.mxu0 0.0
    %2828 = vmatprep.subr.mxu0 0.0
    %2829 = vmatpush2.msra.mxu0 0.0
    %2830 = vmatprep.subr.mxu0 0.0
    %2831 = vmatpush2.msra.mxu0 0.0
    %2832 = vmatprep.subr.mxu0 0.0
    %2833 = vmatpush2.msra.mxu0 0.0
    %2834 = vmatprep.subr.mxu0 0.0
    %2835 = vmatpush2.msra.mxu0 0.0
    %2836 = vmatprep.subr.mxu0 0.0
    %2837 = vmatpush2.msra.mxu0 0.0
    %2838 = vmatprep.subr.mxu0 0.0
    %2839 = vmatpush2.msra.mxu0 0.0
    %2840 = vmatprep.subr.mxu0 0.0
    %2841 = vmatpush2.msra.mxu0 0.0
    %2842 = vmatprep.subr.mxu0 0.0
    %2843 = vmatpush2.msra.mxu0 0.0
    %2844 = vmatprep.subr.mxu0 0.0
    %2845 = vmatpush2.msra.mxu0 0.0
    %2846 = vmatprep.subr.mxu0 0.0
    %2847 = vmatpush2.msra.mxu0 0.0
    %2848 = vmatprep.subr.mxu0 0.0
    %2849 = vmatpush2.msra.mxu0 0.0
    %2850 = vmatprep.subr.mxu0 0.0
    %2851 = vmatpush2.msra.mxu0 0.0
    %2852 = vmatprep.mubr.f32.mxu0 0.0
    %2853 = vmatmul.mubr.f32.gmra.mxu0 %v2786
    %v2854 = vpop.f32.mrf.mxu0
    %v2855 = vadd.f32 %v2781, %v2854
    %v2856 = vpop.f32.mrf.mxu0
    %v2857 = vadd.f32 %v2783, %v2856
    %2858 = vdwg.mxu0
    %v2859 = vld [vmem:[%s1108] sm:$0xff]
    %2860 = vrot.lane.b32.xlu0 %v2693, 96
    %v2861 = vpop.permute.xlu0 %2860
    %2862 = vrot.lane.b32.xlu0 %v2694, 96
    %v2863 = vpop.permute.xlu0 %2862
    %2864 = vrot.lane.b32.xlu0 %v2696, 96
    %v2865 = vpop.permute.xlu0 %2864
    %v2866 = vsel %vm245, %v2861, %v2863
    %v2867 = vsel %vm245, %v2863, %v2865
    %v2871 = vsel %vm959, %v2859, 0
    %2873 = vmatprep.subr.mxu0 0.0
    %2874 = vmatpush1.msra.mxu0 0.0
    %2875 = vmatprep.subr.mxu0 0.0
    %2876 = vmatpush1.msra.mxu0 0.0
    %2877 = vmatprep.subr.mxu0 0.0
    %2878 = vmatpush1.msra.mxu0 0.0
    %2879 = vmatprep.subr.mxu0 0.0
    %2880 = vmatpush1.msra.mxu0 0.0
    %2881 = vmatprep.subr.mxu0 0.0
    %2882 = vmatpush1.msra.mxu0 0.0
    %2883 = vmatprep.subr.mxu0 0.0
    %2884 = vmatpush1.msra.mxu0 0.0
    %2885 = vmatprep.subr.mxu0 0.0
    %2886 = vmatpush1.msra.mxu0 0.0
    %2887 = vmatprep.subr.mxu0 0.0
    %2888 = vmatpush1.msra.mxu0 0.0
    %2889 = vmatprep.subr.mxu0 0.0
    %2890 = vmatpush1.msra.mxu0 0.0
    %2891 = vmatprep.subr.mxu0 0.0
    %2892 = vmatpush1.msra.mxu0 0.0
    %2893 = vmatprep.subr.mxu0 0.0
    %2894 = vmatpush1.msra.mxu0 0.0
    %2895 = vmatprep.subr.mxu0 0.0
    %2896 = vmatpush1.msra.mxu0 0.0
    %2897 = vmatprep.subr.mxu0 0.0
    %2898 = vmatpush1.msra.mxu0 0.0
    %2899 = vmatprep.subr.mxu0 0.0
    %2900 = vmatpush1.msra.mxu0 0.0
    %2901 = vmatprep.subr.mxu0 0.0
    %2902 = vmatpush1.msra.mxu0 0.0
    %2903 = vmatprep.subr.mxu0 %v2867
    %2904 = vmatpush1.msra.mxu0 %v2866
    %2905 = vmatprep.subr.mxu0 0.0
    %2906 = vmatpush2.msra.mxu0 0.0
    %2907 = vmatprep.subr.mxu0 0.0
    %2908 = vmatpush2.msra.mxu0 0.0
    %2909 = vmatprep.subr.mxu0 0.0
    %2910 = vmatpush2.msra.mxu0 0.0
    %2911 = vmatprep.subr.mxu0 0.0
    %2912 = vmatpush2.msra.mxu0 0.0
    %2913 = vmatprep.subr.mxu0 0.0
    %2914 = vmatpush2.msra.mxu0 0.0
    %2915 = vmatprep.subr.mxu0 0.0
    %2916 = vmatpush2.msra.mxu0 0.0
    %2917 = vmatprep.subr.mxu0 0.0
    %2918 = vmatpush2.msra.mxu0 0.0
    %2919 = vmatprep.subr.mxu0 0.0
    %2920 = vmatpush2.msra.mxu0 0.0
    %2921 = vmatprep.subr.mxu0 0.0
    %2922 = vmatpush2.msra.mxu0 0.0
    %2923 = vmatprep.subr.mxu0 0.0
    %2924 = vmatpush2.msra.mxu0 0.0
    %2925 = vmatprep.subr.mxu0 0.0
    %2926 = vmatpush2.msra.mxu0 0.0
    %2927 = vmatprep.subr.mxu0 0.0
    %2928 = vmatpush2.msra.mxu0 0.0
    %2929 = vmatprep.subr.mxu0 0.0
    %2930 = vmatpush2.msra.mxu0 0.0
    %2931 = vmatprep.subr.mxu0 0.0
    %2932 = vmatpush2.msra.mxu0 0.0
    %2933 = vmatprep.subr.mxu0 0.0
    %2934 = vmatpush2.msra.mxu0 0.0
    %2935 = vmatprep.subr.mxu0 0.0
    %2936 = vmatpush2.msra.mxu0 0.0
    %2937 = vmatprep.mubr.f32.mxu0 0.0
    %2938 = vmatmul.mubr.f32.gmra.mxu0 %v2871
    %v2939 = vpop.f32.mrf.mxu0
    %v2940 = vadd.f32 0.0, %v2939
    %v2941 = vpop.f32.mrf.mxu0
    %v2942 = vadd.f32 0.0, %v2941
    %2943 = vdwg.mxu0
    %v2944 = vadd.f32 %v2855, %v2940
    %v2945 = vadd.f32 %v2857, %v2942
    %v2946 = vmul.f32 %v2944, %v1200
    %v2947 = vmul.f32 %v2945, %v1204
    %v2948 = vld [vmem:[%s1209] sm:$0xff]
    %v2949 = vld [vmem:[%s1211] sm:$0xff]
    %2950 = vrot.lane.b32.xlu0 %v2693, 111
    %v2951 = vpop.permute.xlu0 %2950
    %2952 = vrot.lane.b32.xlu0 %v2694, 111
    %v2953 = vpop.permute.xlu0 %2952
    %2954 = vrot.lane.b32.xlu0 %v2696, 111
    %v2955 = vpop.permute.xlu0 %2954
    %v2956 = vsel %vm356, %v2951, %v2953
    %v2957 = vsel %vm356, %v2953, %v2955
    %v2961 = vsel %vm959, %v2949, 0
    %2963 = vmatprep.subr.mxu0 0.0
    %2964 = vmatpush1.msra.mxu0 0.0
    %2965 = vmatprep.subr.mxu0 0.0
    %2966 = vmatpush1.msra.mxu0 0.0
    %2967 = vmatprep.subr.mxu0 0.0
    %2968 = vmatpush1.msra.mxu0 0.0
    %2969 = vmatprep.subr.mxu0 0.0
    %2970 = vmatpush1.msra.mxu0 0.0
    %2971 = vmatprep.subr.mxu0 0.0
    %2972 = vmatpush1.msra.mxu0 0.0
    %2973 = vmatprep.subr.mxu0 0.0
    %2974 = vmatpush1.msra.mxu0 0.0
    %2975 = vmatprep.subr.mxu0 0.0
    %2976 = vmatpush1.msra.mxu0 0.0
    %2977 = vmatprep.subr.mxu0 0.0
    %2978 = vmatpush1.msra.mxu0 0.0
    %2979 = vmatprep.subr.mxu0 0.0
    %2980 = vmatpush1.msra.mxu0 0.0
    %2981 = vmatprep.subr.mxu0 0.0
    %2982 = vmatpush1.msra.mxu0 0.0
    %2983 = vmatprep.subr.mxu0 0.0
    %2984 = vmatpush1.msra.mxu0 0.0
    %2985 = vmatprep.subr.mxu0 0.0
    %2986 = vmatpush1.msra.mxu0 0.0
    %2987 = vmatprep.subr.mxu0 0.0
    %2988 = vmatpush1.msra.mxu0 0.0
    %2989 = vmatprep.subr.mxu0 0.0
    %2990 = vmatpush1.msra.mxu0 0.0
    %2991 = vmatprep.subr.mxu0 0.0
    %2992 = vmatpush1.msra.mxu0 0.0
    %2993 = vmatprep.subr.mxu0 %v2957
    %2994 = vmatpush1.msra.mxu0 %v2956
    %2995 = vmatprep.subr.mxu0 0.0
    %2996 = vmatpush2.msra.mxu0 0.0
    %2997 = vmatprep.subr.mxu0 0.0
    %2998 = vmatpush2.msra.mxu0 0.0
    %2999 = vmatprep.subr.mxu0 0.0
    %3000 = vmatpush2.msra.mxu0 0.0
    %3001 = vmatprep.subr.mxu0 0.0
    %3002 = vmatpush2.msra.mxu0 0.0
    %3003 = vmatprep.subr.mxu0 0.0
    %3004 = vmatpush2.msra.mxu0 0.0
    %3005 = vmatprep.subr.mxu0 0.0
    %3006 = vmatpush2.msra.mxu0 0.0
    %3007 = vmatprep.subr.mxu0 0.0
    %3008 = vmatpush2.msra.mxu0 0.0
    %3009 = vmatprep.subr.mxu0 0.0
    %3010 = vmatpush2.msra.mxu0 0.0
    %3011 = vmatprep.subr.mxu0 0.0
    %3012 = vmatpush2.msra.mxu0 0.0
    %3013 = vmatprep.subr.mxu0 0.0
    %3014 = vmatpush2.msra.mxu0 0.0
    %3015 = vmatprep.subr.mxu0 0.0
    %3016 = vmatpush2.msra.mxu0 0.0
    %3017 = vmatprep.subr.mxu0 0.0
    %3018 = vmatpush2.msra.mxu0 0.0
    %3019 = vmatprep.subr.mxu0 0.0
    %3020 = vmatpush2.msra.mxu0 0.0
    %3021 = vmatprep.subr.mxu0 0.0
    %3022 = vmatpush2.msra.mxu0 0.0
    %3023 = vmatprep.subr.mxu0 0.0
    %3024 = vmatpush2.msra.mxu0 0.0
    %3025 = vmatprep.subr.mxu0 0.0
    %3026 = vmatpush2.msra.mxu0 0.0
    %3027 = vmatprep.mubr.f32.mxu0 0.0
    %3028 = vmatmul.mubr.f32.gmra.mxu0 %v2961
    %v3029 = vpop.f32.mrf.mxu0
    %v3030 = vadd.f32 0.0, %v3029
    %v3031 = vpop.f32.mrf.mxu0
    %v3032 = vadd.f32 0.0, %v3031
    %3033 = vdwg.mxu0
    %3034 = vrot.lane.b32.xlu0 %v2693, 127
    %v3035 = vpop.permute.xlu0 %3034
    %3036 = vrot.lane.b32.xlu0 %v2694, 127
    %v3037 = vpop.permute.xlu0 %3036
    %3038 = vrot.lane.b32.xlu0 %v2696, 127
    %v3039 = vpop.permute.xlu0 %3038
    %v3040 = vsel %vm443, %v3035, %v3037
    %v3041 = vsel %vm443, %v3037, %v3039
    %v3045 = vsel %vm959, %v2948, 0
    %3047 = vmatprep.subr.mxu0 0.0
    %3048 = vmatpush1.msra.mxu0 0.0
    %3049 = vmatprep.subr.mxu0 0.0
    %3050 = vmatpush1.msra.mxu0 0.0
    %3051 = vmatprep.subr.mxu0 0.0
    %3052 = vmatpush1.msra.mxu0 0.0
    %3053 = vmatprep.subr.mxu0 0.0
    %3054 = vmatpush1.msra.mxu0 0.0
    %3055 = vmatprep.subr.mxu0 0.0
    %3056 = vmatpush1.msra.mxu0 0.0
    %3057 = vmatprep.subr.mxu0 0.0
    %3058 = vmatpush1.msra.mxu0 0.0
    %3059 = vmatprep.subr.mxu0 0.0
    %3060 = vmatpush1.msra.mxu0 0.0
    %3061 = vmatprep.subr.mxu0 0.0
    %3062 = vmatpush1.msra.mxu0 0.0
    %3063 = vmatprep.subr.mxu0 0.0
    %3064 = vmatpush1.msra.mxu0 0.0
    %3065 = vmatprep.subr.mxu0 0.0
    %3066 = vmatpush1.msra.mxu0 0.0
    %3067 = vmatprep.subr.mxu0 0.0
    %3068 = vmatpush1.msra.mxu0 0.0
    %3069 = vmatprep.subr.mxu0 0.0
    %3070 = vmatpush1.msra.mxu0 0.0
    %3071 = vmatprep.subr.mxu0 0.0
    %3072 = vmatpush1.msra.mxu0 0.0
    %3073 = vmatprep.subr.mxu0 0.0
    %3074 = vmatpush1.msra.mxu0 0.0
    %3075 = vmatprep.subr.mxu0 0.0
    %3076 = vmatpush1.msra.mxu0 0.0
    %3077 = vmatprep.subr.mxu0 %v3041
    %3078 = vmatpush1.msra.mxu0 %v3040
    %3079 = vmatprep.subr.mxu0 0.0
    %3080 = vmatpush2.msra.mxu0 0.0
    %3081 = vmatprep.subr.mxu0 0.0
    %3082 = vmatpush2.msra.mxu0 0.0
    %3083 = vmatprep.subr.mxu0 0.0
    %3084 = vmatpush2.msra.mxu0 0.0
    %3085 = vmatprep.subr.mxu0 0.0
    %3086 = vmatpush2.msra.mxu0 0.0
    %3087 = vmatprep.subr.mxu0 0.0
    %3088 = vmatpush2.msra.mxu0 0.0
    %3089 = vmatprep.subr.mxu0 0.0
    %3090 = vmatpush2.msra.mxu0 0.0
    %3091 = vmatprep.subr.mxu0 0.0
    %3092 = vmatpush2.msra.mxu0 0.0
    %3093 = vmatprep.subr.mxu0 0.0
    %3094 = vmatpush2.msra.mxu0 0.0
    %3095 = vmatprep.subr.mxu0 0.0
    %3096 = vmatpush2.msra.mxu0 0.0
    %3097 = vmatprep.subr.mxu0 0.0
    %3098 = vmatpush2.msra.mxu0 0.0
    %3099 = vmatprep.subr.mxu0 0.0
    %3100 = vmatpush2.msra.mxu0 0.0
    %3101 = vmatprep.subr.mxu0 0.0
    %3102 = vmatpush2.msra.mxu0 0.0
    %3103 = vmatprep.subr.mxu0 0.0
    %3104 = vmatpush2.msra.mxu0 0.0
    %3105 = vmatprep.subr.mxu0 0.0
    %3106 = vmatpush2.msra.mxu0 0.0
    %3107 = vmatprep.subr.mxu0 0.0
    %3108 = vmatpush2.msra.mxu0 0.0
    %3109 = vmatprep.subr.mxu0 0.0
    %3110 = vmatpush2.msra.mxu0 0.0
    %3111 = vmatprep.mubr.f32.mxu0 0.0
    %3112 = vmatmul.mubr.f32.gmra.mxu0 %v3045
    %v3113 = vpop.f32.mrf.mxu0
    %v3114 = vadd.f32 %v3030, %v3113
    %v3115 = vpop.f32.mrf.mxu0
    %v3116 = vadd.f32 %v3032, %v3115
    %3117 = vdwg.mxu0
    %v3118 = vld [vmem:[%s1381] sm:$0xff]
    %3119 = vrot.lane.b32.xlu0 %v2693, 95
    %v3120 = vpop.permute.xlu0 %3119
    %3121 = vrot.lane.b32.xlu0 %v2694, 95
    %v3122 = vpop.permute.xlu0 %3121
    %3123 = vrot.lane.b32.xlu0 %v2696, 95
    %v3124 = vpop.permute.xlu0 %3123
    %v3125 = vsel %vm537, %v3120, %v3122
    %v3126 = vsel %vm537, %v3122, %v3124
    %v3130 = vsel %vm959, %v3118, 0
    %3132 = vmatprep.subr.mxu0 0.0
    %3133 = vmatpush1.msra.mxu0 0.0
    %3134 = vmatprep.subr.mxu0 0.0
    %3135 = vmatpush1.msra.mxu0 0.0
    %3136 = vmatprep.subr.mxu0 0.0
    %3137 = vmatpush1.msra.mxu0 0.0
    %3138 = vmatprep.subr.mxu0 0.0
    %3139 = vmatpush1.msra.mxu0 0.0
    %3140 = vmatprep.subr.mxu0 0.0
    %3141 = vmatpush1.msra.mxu0 0.0
    %3142 = vmatprep.subr.mxu0 0.0
    %3143 = vmatpush1.msra.mxu0 0.0
    %3144 = vmatprep.subr.mxu0 0.0
    %3145 = vmatpush1.msra.mxu0 0.0
    %3146 = vmatprep.subr.mxu0 0.0
    %3147 = vmatpush1.msra.mxu0 0.0
    %3148 = vmatprep.subr.mxu0 0.0
    %3149 = vmatpush1.msra.mxu0 0.0
    %3150 = vmatprep.subr.mxu0 0.0
    %3151 = vmatpush1.msra.mxu0 0.0
    %3152 = vmatprep.subr.mxu0 0.0
    %3153 = vmatpush1.msra.mxu0 0.0
    %3154 = vmatprep.subr.mxu0 0.0
    %3155 = vmatpush1.msra.mxu0 0.0
    %3156 = vmatprep.subr.mxu0 0.0
    %3157 = vmatpush1.msra.mxu0 0.0
    %3158 = vmatprep.subr.mxu0 0.0
    %3159 = vmatpush1.msra.mxu0 0.0
    %3160 = vmatprep.subr.mxu0 0.0
    %3161 = vmatpush1.msra.mxu0 0.0
    %3162 = vmatprep.subr.mxu0 %v3126
    %3163 = vmatpush1.msra.mxu0 %v3125
    %3164 = vmatprep.subr.mxu0 0.0
    %3165 = vmatpush2.msra.mxu0 0.0
    %3166 = vmatprep.subr.mxu0 0.0
    %3167 = vmatpush2.msra.mxu0 0.0
    %3168 = vmatprep.subr.mxu0 0.0
    %3169 = vmatpush2.msra.mxu0 0.0
    %3170 = vmatprep.subr.mxu0 0.0
    %3171 = vmatpush2.msra.mxu0 0.0
    %3172 = vmatprep.subr.mxu0 0.0
    %3173 = vmatpush2.msra.mxu0 0.0
    %3174 = vmatprep.subr.mxu0 0.0
    %3175 = vmatpush2.msra.mxu0 0.0
    %3176 = vmatprep.subr.mxu0 0.0
    %3177 = vmatpush2.msra.mxu0 0.0
    %3178 = vmatprep.subr.mxu0 0.0
    %3179 = vmatpush2.msra.mxu0 0.0
    %3180 = vmatprep.subr.mxu0 0.0
    %3181 = vmatpush2.msra.mxu0 0.0
    %3182 = vmatprep.subr.mxu0 0.0
    %3183 = vmatpush2.msra.mxu0 0.0
    %3184 = vmatprep.subr.mxu0 0.0
    %3185 = vmatpush2.msra.mxu0 0.0
    %3186 = vmatprep.subr.mxu0 0.0
    %3187 = vmatpush2.msra.mxu0 0.0
    %3188 = vmatprep.subr.mxu0 0.0
    %3189 = vmatpush2.msra.mxu0 0.0
    %3190 = vmatprep.subr.mxu0 0.0
    %3191 = vmatpush2.msra.mxu0 0.0
    %3192 = vmatprep.subr.mxu0 0.0
    %3193 = vmatpush2.msra.mxu0 0.0
    %3194 = vmatprep.subr.mxu0 0.0
    %3195 = vmatpush2.msra.mxu0 0.0
    %3196 = vmatprep.mubr.f32.mxu0 0.0
    %3197 = vmatmul.mubr.f32.gmra.mxu0 %v3130
    %v3198 = vpop.f32.mrf.mxu0
    %v3199 = vadd.f32 0.0, %v3198
    %v3200 = vpop.f32.mrf.mxu0
    %v3201 = vadd.f32 0.0, %v3200
    %3202 = vdwg.mxu0
    %v3203 = vadd.f32 %v3114, %v3199
    %v3204 = vadd.f32 %v3116, %v3201
    %v3205 = vadd.f32 %v2946, %v3203
    %v3206 = vadd.f32 %v2947, %v3204
    %v3207 = vld [vmem:[%s1471] sm:$0xff]
    %v3208 = vld [vmem:[%s1473] sm:$0xff]
    %3209 = vrot.lane.b32.xlu0 %v2693, 110
    %v3210 = vpop.permute.xlu0 %3209
    %3211 = vrot.lane.b32.xlu0 %v2694, 110
    %v3212 = vpop.permute.xlu0 %3211
    %3213 = vrot.lane.b32.xlu0 %v2696, 110
    %v3214 = vpop.permute.xlu0 %3213
    %v3215 = vsel %vm637, %v3210, %v3212
    %v3216 = vsel %vm637, %v3212, %v3214
    %v3220 = vsel %vm959, %v3208, 0
    %3222 = vmatprep.subr.mxu0 0.0
    %3223 = vmatpush1.msra.mxu0 0.0
    %3224 = vmatprep.subr.mxu0 0.0
    %3225 = vmatpush1.msra.mxu0 0.0
    %3226 = vmatprep.subr.mxu0 0.0
    %3227 = vmatpush1.msra.mxu0 0.0
    %3228 = vmatprep.subr.mxu0 0.0
    %3229 = vmatpush1.msra.mxu0 0.0
    %3230 = vmatprep.subr.mxu0 0.0
    %3231 = vmatpush1.msra.mxu0 0.0
    %3232 = vmatprep.subr.mxu0 0.0
    %3233 = vmatpush1.msra.mxu0 0.0
    %3234 = vmatprep.subr.mxu0 0.0
    %3235 = vmatpush1.msra.mxu0 0.0
    %3236 = vmatprep.subr.mxu0 0.0
    %3237 = vmatpush1.msra.mxu0 0.0
    %3238 = vmatprep.subr.mxu0 0.0
    %3239 = vmatpush1.msra.mxu0 0.0
    %3240 = vmatprep.subr.mxu0 0.0
    %3241 = vmatpush1.msra.mxu0 0.0
    %3242 = vmatprep.subr.mxu0 0.0
    %3243 = vmatpush1.msra.mxu0 0.0
    %3244 = vmatprep.subr.mxu0 0.0
    %3245 = vmatpush1.msra.mxu0 0.0
    %3246 = vmatprep.subr.mxu0 0.0
    %3247 = vmatpush1.msra.mxu0 0.0
    %3248 = vmatprep.subr.mxu0 0.0
    %3249 = vmatpush1.msra.mxu0 0.0
    %3250 = vmatprep.subr.mxu0 0.0
    %3251 = vmatpush1.msra.mxu0 0.0
    %3252 = vmatprep.subr.mxu0 %v3216
    %3253 = vmatpush1.msra.mxu0 %v3215
    %3254 = vmatprep.subr.mxu0 0.0
    %3255 = vmatpush2.msra.mxu0 0.0
    %3256 = vmatprep.subr.mxu0 0.0
    %3257 = vmatpush2.msra.mxu0 0.0
    %3258 = vmatprep.subr.mxu0 0.0
    %3259 = vmatpush2.msra.mxu0 0.0
    %3260 = vmatprep.subr.mxu0 0.0
    %3261 = vmatpush2.msra.mxu0 0.0
    %3262 = vmatprep.subr.mxu0 0.0
    %3263 = vmatpush2.msra.mxu0 0.0
    %3264 = vmatprep.subr.mxu0 0.0
    %3265 = vmatpush2.msra.mxu0 0.0
    %3266 = vmatprep.subr.mxu0 0.0
    %3267 = vmatpush2.msra.mxu0 0.0
    %3268 = vmatprep.subr.mxu0 0.0
    %3269 = vmatpush2.msra.mxu0 0.0
    %3270 = vmatprep.subr.mxu0 0.0
    %3271 = vmatpush2.msra.mxu0 0.0
    %3272 = vmatprep.subr.mxu0 0.0
    %3273 = vmatpush2.msra.mxu0 0.0
    %3274 = vmatprep.subr.mxu0 0.0
    %3275 = vmatpush2.msra.mxu0 0.0
    %3276 = vmatprep.subr.mxu0 0.0
    %3277 = vmatpush2.msra.mxu0 0.0
    %3278 = vmatprep.subr.mxu0 0.0
    %3279 = vmatpush2.msra.mxu0 0.0
    %3280 = vmatprep.subr.mxu0 0.0
    %3281 = vmatpush2.msra.mxu0 0.0
    %3282 = vmatprep.subr.mxu0 0.0
    %3283 = vmatpush2.msra.mxu0 0.0
    %3284 = vmatprep.subr.mxu0 0.0
    %3285 = vmatpush2.msra.mxu0 0.0
    %3286 = vmatprep.mubr.f32.mxu0 0.0
    %3287 = vmatmul.mubr.f32.gmra.mxu0 %v3220
    %v3288 = vpop.f32.mrf.mxu0
    %v3289 = vadd.f32 0.0, %v3288
    %v3290 = vpop.f32.mrf.mxu0
    %v3291 = vadd.f32 0.0, %v3290
    %3292 = vdwg.mxu0
    %3293 = vrot.lane.b32.xlu0 %v2693, 126
    %v3294 = vpop.permute.xlu0 %3293
    %3295 = vrot.lane.b32.xlu0 %v2694, 126
    %v3296 = vpop.permute.xlu0 %3295
    %3297 = vrot.lane.b32.xlu0 %v2696, 126
    %v3298 = vpop.permute.xlu0 %3297
    %v3299 = vsel %vm724, %v3294, %v3296
    %v3300 = vsel %vm724, %v3296, %v3298
    %v3304 = vsel %vm959, %v3207, 0
    %3306 = vmatprep.subr.mxu0 0.0
    %3307 = vmatpush1.msra.mxu0 0.0
    %3308 = vmatprep.subr.mxu0 0.0
    %3309 = vmatpush1.msra.mxu0 0.0
    %3310 = vmatprep.subr.mxu0 0.0
    %3311 = vmatpush1.msra.mxu0 0.0
    %3312 = vmatprep.subr.mxu0 0.0
    %3313 = vmatpush1.msra.mxu0 0.0
    %3314 = vmatprep.subr.mxu0 0.0
    %3315 = vmatpush1.msra.mxu0 0.0
    %3316 = vmatprep.subr.mxu0 0.0
    %3317 = vmatpush1.msra.mxu0 0.0
    %3318 = vmatprep.subr.mxu0 0.0
    %3319 = vmatpush1.msra.mxu0 0.0
    %3320 = vmatprep.subr.mxu0 0.0
    %3321 = vmatpush1.msra.mxu0 0.0
    %3322 = vmatprep.subr.mxu0 0.0
    %3323 = vmatpush1.msra.mxu0 0.0
    %3324 = vmatprep.subr.mxu0 0.0
    %3325 = vmatpush1.msra.mxu0 0.0
    %3326 = vmatprep.subr.mxu0 0.0
    %3327 = vmatpush1.msra.mxu0 0.0
    %3328 = vmatprep.subr.mxu0 0.0
    %3329 = vmatpush1.msra.mxu0 0.0
    %3330 = vmatprep.subr.mxu0 0.0
    %3331 = vmatpush1.msra.mxu0 0.0
    %3332 = vmatprep.subr.mxu0 0.0
    %3333 = vmatpush1.msra.mxu0 0.0
    %3334 = vmatprep.subr.mxu0 0.0
    %3335 = vmatpush1.msra.mxu0 0.0
    %3336 = vmatprep.subr.mxu0 %v3300
    %3337 = vmatpush1.msra.mxu0 %v3299
    %3338 = vmatprep.subr.mxu0 0.0
    %3339 = vmatpush2.msra.mxu0 0.0
    %3340 = vmatprep.subr.mxu0 0.0
    %3341 = vmatpush2.msra.mxu0 0.0
    %3342 = vmatprep.subr.mxu0 0.0
    %3343 = vmatpush2.msra.mxu0 0.0
    %3344 = vmatprep.subr.mxu0 0.0
    %3345 = vmatpush2.msra.mxu0 0.0
    %3346 = vmatprep.subr.mxu0 0.0
    %3347 = vmatpush2.msra.mxu0 0.0
    %3348 = vmatprep.subr.mxu0 0.0
    %3349 = vmatpush2.msra.mxu0 0.0
    %3350 = vmatprep.subr.mxu0 0.0
    %3351 = vmatpush2.msra.mxu0 0.0
    %3352 = vmatprep.subr.mxu0 0.0
    %3353 = vmatpush2.msra.mxu0 0.0
    %3354 = vmatprep.subr.mxu0 0.0
    %3355 = vmatpush2.msra.mxu0 0.0
    %3356 = vmatprep.subr.mxu0 0.0
    %3357 = vmatpush2.msra.mxu0 0.0
    %3358 = vmatprep.subr.mxu0 0.0
    %3359 = vmatpush2.msra.mxu0 0.0
    %3360 = vmatprep.subr.mxu0 0.0
    %3361 = vmatpush2.msra.mxu0 0.0
    %3362 = vmatprep.subr.mxu0 0.0
    %3363 = vmatpush2.msra.mxu0 0.0
    %3364 = vmatprep.subr.mxu0 0.0
    %3365 = vmatpush2.msra.mxu0 0.0
    %3366 = vmatprep.subr.mxu0 0.0
    %3367 = vmatpush2.msra.mxu0 0.0
    %3368 = vmatprep.subr.mxu0 0.0
    %3369 = vmatpush2.msra.mxu0 0.0
    %3370 = vmatprep.mubr.f32.mxu0 0.0
    %3371 = vmatmul.mubr.f32.gmra.mxu0 %v3304
    %v3372 = vpop.f32.mrf.mxu0
    %v3373 = vadd.f32 %v3289, %v3372
    %v3374 = vpop.f32.mrf.mxu0
    %v3375 = vadd.f32 %v3291, %v3374
    %3376 = vdwg.mxu0
    %v3377 = vld [vmem:[%s1643] sm:$0xff]
    %3378 = vrot.lane.b32.xlu0 %v2693, 94
    %v3379 = vpop.permute.xlu0 %3378
    %3380 = vrot.lane.b32.xlu0 %v2694, 94
    %v3381 = vpop.permute.xlu0 %3380
    %3382 = vrot.lane.b32.xlu0 %v2696, 94
    %v3383 = vpop.permute.xlu0 %3382
    %v3384 = vsel %vm818, %v3379, %v3381
    %v3385 = vsel %vm818, %v3381, %v3383
    %v3389 = vsel %vm959, %v3377, 0
    %3391 = vmatprep.subr.mxu0 0.0
    %3392 = vmatpush1.msra.mxu0 0.0
    %3393 = vmatprep.subr.mxu0 0.0
    %3394 = vmatpush1.msra.mxu0 0.0
    %3395 = vmatprep.subr.mxu0 0.0
    %3396 = vmatpush1.msra.mxu0 0.0
    %3397 = vmatprep.subr.mxu0 0.0
    %3398 = vmatpush1.msra.mxu0 0.0
    %3399 = vmatprep.subr.mxu0 0.0
    %3400 = vmatpush1.msra.mxu0 0.0
    %3401 = vmatprep.subr.mxu0 0.0
    %3402 = vmatpush1.msra.mxu0 0.0
    %3403 = vmatprep.subr.mxu0 0.0
    %3404 = vmatpush1.msra.mxu0 0.0
    %3405 = vmatprep.subr.mxu0 0.0
    %3406 = vmatpush1.msra.mxu0 0.0
    %3407 = vmatprep.subr.mxu0 0.0
    %3408 = vmatpush1.msra.mxu0 0.0
    %3409 = vmatprep.subr.mxu0 0.0
    %3410 = vmatpush1.msra.mxu0 0.0
    %3411 = vmatprep.subr.mxu0 0.0
    %3412 = vmatpush1.msra.mxu0 0.0
    %3413 = vmatprep.subr.mxu0 0.0
    %3414 = vmatpush1.msra.mxu0 0.0
    %3415 = vmatprep.subr.mxu0 0.0
    %3416 = vmatpush1.msra.mxu0 0.0
    %3417 = vmatprep.subr.mxu0 0.0
    %3418 = vmatpush1.msra.mxu0 0.0
    %3419 = vmatprep.subr.mxu0 0.0
    %3420 = vmatpush1.msra.mxu0 0.0
    %3421 = vmatprep.subr.mxu0 %v3385
    %3422 = vmatpush1.msra.mxu0 %v3384
    %3423 = vmatprep.subr.mxu0 0.0
    %3424 = vmatpush2.msra.mxu0 0.0
    %3425 = vmatprep.subr.mxu0 0.0
    %3426 = vmatpush2.msra.mxu0 0.0
    %3427 = vmatprep.subr.mxu0 0.0
    %3428 = vmatpush2.msra.mxu0 0.0
    %3429 = vmatprep.subr.mxu0 0.0
    %3430 = vmatpush2.msra.mxu0 0.0
    %3431 = vmatprep.subr.mxu0 0.0
    %3432 = vmatpush2.msra.mxu0 0.0
    %3433 = vmatprep.subr.mxu0 0.0
    %3434 = vmatpush2.msra.mxu0 0.0
    %3435 = vmatprep.subr.mxu0 0.0
    %3436 = vmatpush2.msra.mxu0 0.0
    %3437 = vmatprep.subr.mxu0 0.0
    %3438 = vmatpush2.msra.mxu0 0.0
    %3439 = vmatprep.subr.mxu0 0.0
    %3440 = vmatpush2.msra.mxu0 0.0
    %3441 = vmatprep.subr.mxu0 0.0
    %3442 = vmatpush2.msra.mxu0 0.0
    %3443 = vmatprep.subr.mxu0 0.0
    %3444 = vmatpush2.msra.mxu0 0.0
    %3445 = vmatprep.subr.mxu0 0.0
    %3446 = vmatpush2.msra.mxu0 0.0
    %3447 = vmatprep.subr.mxu0 0.0
    %3448 = vmatpush2.msra.mxu0 0.0
    %3449 = vmatprep.subr.mxu0 0.0
    %3450 = vmatpush2.msra.mxu0 0.0
    %3451 = vmatprep.subr.mxu0 0.0
    %3452 = vmatpush2.msra.mxu0 0.0
    %3453 = vmatprep.subr.mxu0 0.0
    %3454 = vmatpush2.msra.mxu0 0.0
    %3455 = vmatprep.mubr.f32.mxu0 0.0
    %3456 = vmatmul.mubr.f32.gmra.mxu0 %v3389
    %v3457 = vpop.f32.mrf.mxu0
    %v3458 = vadd.f32 0.0, %v3457
    %v3459 = vpop.f32.mrf.mxu0
    %v3460 = vadd.f32 0.0, %v3459
    %3461 = vdwg.mxu0
    %v3462 = vadd.f32 %v3373, %v3458
    %v3463 = vadd.f32 %v3375, %v3460
    %v3464 = vmul.f32 %v3462, %v1735
    %v3465 = vmul.f32 %v3463, %v1739
    %v3466 = vadd.f32 %v3205, %v3464
    %v3467 = vadd.f32 %v3206, %v3465
    %v3468 = vld [vmem:[%s5] sm:$0xff]
    %v3469 = vcombine.high %v1841, %v1841
    %v3471 = vsel %vm74, %v3468, 0
    %v3473 = vsel %vm78, %v1841, 0
    %v3475 = vsel %vm78, %v3469, 0
    %3477 = vmatprep.subr.mxu0 0.0
    %3478 = vmatpush1.msra.mxu0 0.0
    %3479 = vmatprep.subr.mxu0 0.0
    %3480 = vmatpush1.msra.mxu0 0.0
    %3481 = vmatprep.subr.mxu0 0.0
    %3482 = vmatpush1.msra.mxu0 0.0
    %3483 = vmatprep.subr.mxu0 0.0
    %3484 = vmatpush1.msra.mxu0 0.0
    %3485 = vmatprep.subr.mxu0 0.0
    %3486 = vmatpush1.msra.mxu0 0.0
    %3487 = vmatprep.subr.mxu0 0.0
    %3488 = vmatpush1.msra.mxu0 0.0
    %3489 = vmatprep.subr.mxu0 0.0
    %3490 = vmatpush1.msra.mxu0 0.0
    %3491 = vmatprep.subr.mxu0 0.0
    %3492 = vmatpush1.msra.mxu0 0.0
    %3493 = vmatprep.subr.mxu0 0.0
    %3494 = vmatpush1.msra.mxu0 0.0
    %3495 = vmatprep.subr.mxu0 0.0
    %3496 = vmatpush1.msra.mxu0 0.0
    %3497 = vmatprep.subr.mxu0 0.0
    %3498 = vmatpush1.msra.mxu0 0.0
    %3499 = vmatprep.subr.mxu0 0.0
    %3500 = vmatpush1.msra.mxu0 0.0
    %3501 = vmatprep.subr.mxu0 0.0
    %3502 = vmatpush1.msra.mxu0 0.0
    %3503 = vmatprep.subr.mxu0 0.0
    %3504 = vmatpush1.msra.mxu0 0.0
    %3505 = vmatprep.subr.mxu0 0.0
    %3506 = vmatpush1.msra.mxu0 0.0
    %3507 = vmatprep.subr.mxu0 %v3475
    %3508 = vmatpush1.msra.mxu0 %v3473
    %3509 = vmatprep.subr.mxu0 0.0
    %3510 = vmatpush2.msra.mxu0 0.0
    %3511 = vmatprep.subr.mxu0 0.0
    %3512 = vmatpush2.msra.mxu0 0.0
    %3513 = vmatprep.subr.mxu0 0.0
    %3514 = vmatpush2.msra.mxu0 0.0
    %3515 = vmatprep.subr.mxu0 0.0
    %3516 = vmatpush2.msra.mxu0 0.0
    %3517 = vmatprep.subr.mxu0 0.0
    %3518 = vmatpush2.msra.mxu0 0.0
    %3519 = vmatprep.subr.mxu0 0.0
    %3520 = vmatpush2.msra.mxu0 0.0
    %3521 = vmatprep.subr.mxu0 0.0
    %3522 = vmatpush2.msra.mxu0 0.0
    %3523 = vmatprep.subr.mxu0 0.0
    %3524 = vmatpush2.msra.mxu0 0.0
    %3525 = vmatprep.subr.mxu0 0.0
    %3526 = vmatpush2.msra.mxu0 0.0
    %3527 = vmatprep.subr.mxu0 0.0
    %3528 = vmatpush2.msra.mxu0 0.0
    %3529 = vmatprep.subr.mxu0 0.0
    %3530 = vmatpush2.msra.mxu0 0.0
    %3531 = vmatprep.subr.mxu0 0.0
    %3532 = vmatpush2.msra.mxu0 0.0
    %3533 = vmatprep.subr.mxu0 0.0
    %3534 = vmatpush2.msra.mxu0 0.0
    %3535 = vmatprep.subr.mxu0 0.0
    %3536 = vmatpush2.msra.mxu0 0.0
    %3537 = vmatprep.subr.mxu0 0.0
    %3538 = vmatpush2.msra.mxu0 0.0
    %3539 = vmatprep.subr.mxu0 0.0
    %3540 = vmatpush2.msra.mxu0 0.0
    %3541 = vmatprep.mubr.f32.mxu0 0.0
    %3542 = vmatmul.mubr.f32.gmra.mxu0 %v3471
    %v3543 = vpop.f32.mrf.mxu0
    %v3544 = vadd.f32 0.0, %v3543
    %v3545 = vpop.f32.mrf.mxu0
    %v3546 = vadd.f32 0.0, %v3545
    %3547 = vdwg.mxu0
    %v3548 = vld [vmem:[%s4] sm:$0xff]
    %3550 = vset.pattern.permute.xlu0 0
    %3551 = vperm.xlu0 %3550, %v3548
    %v3552 = vpop.permute.xlu0 %3551
    %v3554 = vadd.f32 %v3466, %v3552
    %v3555 = vadd.f32 %v3467, %v3552
    %v3556 = vadd.f32 %v3554, %v3544
    %v3557 = vadd.f32 %v3555, %v3546
    %v3558 = vmax.f32 %v3556, 0.0
    %v3559 = vmax.f32 %v3557, 0.0
    %s3560 = scalar_lea.vmem [#allocation4], 16
    %3561 = vst [vmem:[%s3560] sm:$0xff] %v3558
    %3562 = vst [vmem:[%s3560 + $0x8] sm:$0xff] %v3559
    // Predicated region
    $region34: #{tpu_custom_call.1} parent=1 // pred_check
      _
    $region35: #{tpu_custom_call.1} parent=1 // pred_check_branch
      %3564 = sbr.rel (0) target = $region37
    $region36: #{tpu_custom_call.1} parent=1 // pred_region
      %s3566 = ssub.s32 512, 512
      %3567 = vsyncadd [#allocation5], %s3566
      %s3568 = sshll.u32 [#allocation4], 4
      %s3569 = int_to_ptr.vmem [resolvable:$true] %s3568
      %3574 = dma.vmem_to_hbm [thread:$0]  %s3569, 512, %s8, [#allocation5], 256, 256, 16
    $region37: #{tpu_custom_call.1} parent=1 // pred_fallthru
      _
    // Predicated region
    $region38: #{tpu_custom_call.1} parent=1 // pred_check
      _
    $region39: #{tpu_custom_call.1} parent=1 // pred_check_branch
      %3576 = sbr.rel (0) target = $region41
    $region40: #{tpu_custom_call.1} parent=1 // pred_region
      %3577 = dma.done [#allocation5], 512
    $region41: #{tpu_custom_call.1} parent=1 // pred_fallthru
      _
    %3578 = vsyncpa [#allocation5], 1

</llo_original>
